<compile_context>
chip_gen: v7x
topology: tpu7x:2x2x1
jax: 0.10.0
libtpu: 0.0.40
codegen_flags: <defaults>
</compile_context>

<pallas_src>
import functools
import math

import jax
import jax.numpy as jnp
from jax.experimental import pallas as pl
from jax.experimental.pallas import tpu as pltpu

_VMEM_LIMIT = 32 * 1024 * 1024   # fits v5e/v6e/v7x scoped-VMEM budgets


def _round_up(v, m):
    return (v + m - 1) // m * m


# ---------------------------------------------------------------------------
# Pallas kernel 1: matmul + bias (+ optional ReLU), K never tiled.
# ---------------------------------------------------------------------------
def _matmul_bias_kernel(x_ref, w_ref, b_ref, o_ref, *, apply_relu):
    r = jnp.dot(x_ref[...], w_ref[...], preferred_element_type=jnp.float32)
    r = r + b_ref[...]
    if apply_relu:
        r = jnp.maximum(r, 0.0)
    o_ref[...] = r.astype(o_ref.dtype)


def matmul_bias_act(x, w, b, relu, out_dtype=jnp.bfloat16):
    """(M,K) @ (K,N) + b[N], optional ReLU.  bf16 MXU inputs, f32 accumulate.

    K always fits VMEM for this network, so there is no K grid axis (no
    accumulator scratch, no init/finalize phases)."""
    M, K = x.shape
    N = w.shape[1]
    Kp = _round_up(K, 8)                            # minimal K padding only
    Np = _round_up(N, 128) if N < 128 else N        # lane-dense output
    Mcap = 4096
    mt = pl.cdiv(M, Mcap)
    TM = _round_up(pl.cdiv(M, mt), 8)
    Mp = mt * TM

    xp = x.astype(jnp.bfloat16)
    if (Mp, Kp) != (M, K):
        xp = jnp.pad(xp, ((0, Mp - M), (0, Kp - K)))
    wp = w.astype(jnp.bfloat16)
    if (Kp, Np) != (K, N):
        wp = jnp.pad(wp, ((0, Kp - K), (0, Np - N)))
    bp = b.astype(jnp.float32).reshape(1, N)
    if Np != N:
        bp = jnp.pad(bp, ((0, 0), (0, Np - N)))

    out = pl.pallas_call(
        functools.partial(_matmul_bias_kernel, apply_relu=relu),
        out_shape=jax.ShapeDtypeStruct((Mp, Np), out_dtype),
        grid_spec=pltpu.PrefetchScalarGridSpec(
            num_scalar_prefetch=0,
            grid=(mt,),
            in_specs=[
                pl.BlockSpec((TM, Kp), lambda i: (i, 0)),
                pl.BlockSpec((Kp, Np), lambda i: (0, 0)),   # resident
                pl.BlockSpec((1, Np), lambda i: (0, 0)),    # resident
            ],
            out_specs=pl.BlockSpec((TM, Np), lambda i: (i, 0)),
        ),
        compiler_params=pltpu.CompilerParams(
            dimension_semantics=("parallel",),
            vmem_limit_bytes=_VMEM_LIMIT),
    )(xp, wp, bp)
    if (Mp, Np) != (M, N):
        out = out[:M, :N]
    return out


# ---------------------------------------------------------------------------
# Pallas kernel 2: fused 3x3 conv (shifted-matmul, in-VMEM "im2col").
#
# The activation is row-flattened with its width padded to a multiple of 8
# (wrow).  A "wide" output row p = h*wrow + w is
#     Y[p] = sum_{dh,dw} Xflat[p + dh*wrow + dw] @ W[dh,dw]
# so per (dh) we load one 8-aligned dynamic row band and take 3 cheap static
# shifts of it; columns w >= Wo are garbage and sliced off afterwards.
# ---------------------------------------------------------------------------
def _conv3x3_kernel(x_ref, w_ref, b_ref, o_ref, acc_ref, *, wrow, tm, apply_relu):
    base = pl.multiple_of(pl.program_id(1) * tm, 8)
    acc_ref[...] = jnp.broadcast_to(b_ref[...], acc_ref.shape)   # bias init
    for dh in range(3):
        blk = x_ref[pl.ds(base + dh * wrow, tm + 8), :]          # aligned load
        for dw in range(3):
            acc_ref[...] += jnp.dot(blk[dw:dw + tm, :], w_ref[dh * 3 + dw],
                                    preferred_element_type=jnp.float32)
    r = acc_ref[...]
    if apply_relu:
        r = jnp.maximum(r, 0.0)
    o_ref[...] = r.astype(o_ref.dtype)


def conv3x3_nhwc(x, w, b, padding, relu):
    # x: (N,H,W,Cin)   w: (Cout,Cin,3,3) -- PyTorch Conv2d layout
    x = x.astype(jnp.bfloat16)
    N, H, W, Cin = x.shape
    Cout = w.shape[0]
    H_conv = H + 2 * padding
    W_conv = W + 2 * padding
    W8 = _round_up(W_conv, 8)                 # padded row width (lane-friendly)
    Ho, Wo = H_conv - 2, W_conv - 2
    Mwide = Ho * W8

    # output-channel tile: full Cout, halved until dbl-buffered weight <= 10 MiB
    TN = min(Cout, 512)
    while TN > 128 and 9 * Cin * TN * 2 * 2 > 10 * 1024 * 1024:
        TN //= 2
    nt = Cout // TN

    # row tile: as large as possible with the f32 accumulator <= 1 MiB
    cap = max(256, min(4096, (1 << 20) // (TN * 4)))
    mt = pl.cdiv(Mwide, cap)
    TM = _round_up(pl.cdiv(Mwide, mt), 8)
    Mp = mt * TM

    # flatten rows; add zero rows so every shifted band stays in bounds
    P_needed = Mp + 2 * W8 + 8
    extra_rows = pl.cdiv(P_needed - H_conv * W8, W8)
    Hp = H_conv + extra_rows
    P = Hp * W8
    xpad = jnp.pad(x, ((0, 0),
                       (padding, padding + extra_rows),
                       (padding, W8 - W - padding),
                       (0, 0)))
    xf = xpad.reshape(N, P, Cin)
    wf = jnp.transpose(w, (2, 3, 1, 0)).reshape(9, Cin, Cout).astype(jnp.bfloat16)
    bf = b.astype(jnp.float32).reshape(1, Cout)

    out = pl.pallas_call(
        functools.partial(_conv3x3_kernel, wrow=W8, tm=TM, apply_relu=relu),
        out_shape=jax.ShapeDtypeStruct((N, Mp, Cout), jnp.bfloat16),
        grid_spec=pltpu.PrefetchScalarGridSpec(
            num_scalar_prefetch=0,
            grid=(N, mt, nt),
            in_specs=[
                pl.BlockSpec((None, P, Cin), lambda n, i, j: (n, 0, 0)),   # resident
                pl.BlockSpec((9, Cin, TN), lambda n, i, j: (0, 0, j)),
                pl.BlockSpec((1, TN), lambda n, i, j: (0, j)),
            ],
            out_specs=pl.BlockSpec((None, TM, TN), lambda n, i, j: (n, i, j)),
            scratch_shapes=[pltpu.VMEM((TM, TN), jnp.float32)],
        ),
        compiler_params=pltpu.CompilerParams(
            dimension_semantics=("parallel", "parallel", "parallel"),
            vmem_limit_bytes=_VMEM_LIMIT),
    )(xf, wf, bf)

    out = out[:, :Mwide, :].reshape(N, Ho, W8, Cout)[:, :, :Wo, :]
    return out


# ---------------------------------------------------------------------------
# Pallas kernel 3: 2x2 stride-2 max pooling (input pre-reshaped so both
# reductions are elementwise maxima; lane axis holds [w-even ch | w-odd ch]).
# ---------------------------------------------------------------------------
def _maxpool_kernel(x_ref, o_ref, *, C):
    top = x_ref[0, :, 0, :, :]
    bot = x_ref[0, :, 1, :, :]
    m = jnp.maximum(top, bot)
    o_ref[0] = jnp.maximum(m[:, :, :C], m[:, :, C:])


def maxpool2x2(x):
    N, H, W, C = x.shape
    Ho, Wo = H // 2, W // 2
    xr = x.reshape(N, Ho, 2, Wo, 2 * C)
    # split the row axis when big enough so v7x's two TensorCores both get work
    TH = Ho // 2 if (Ho % 2 == 0 and Ho >= 32) else Ho
    return pl.pallas_call(
        functools.partial(_maxpool_kernel, C=C),
        out_shape=jax.ShapeDtypeStruct((N, Ho, Wo, C), x.dtype),
        grid_spec=pltpu.PrefetchScalarGridSpec(
            num_scalar_prefetch=0,
            grid=(N, Ho // TH),
            in_specs=[pl.BlockSpec((1, TH, 2, Wo, 2 * C),
                                   lambda n, r: (n, r, 0, 0, 0))],
            out_specs=pl.BlockSpec((1, TH, Wo, C), lambda n, r: (n, r, 0, 0)),
        ),
        compiler_params=pltpu.CompilerParams(
            dimension_semantics=("parallel", "parallel")),
    )(xr)


# ---------------------------------------------------------------------------
# Conv wrappers around the matmul kernel (first conv, deconv, 1x1 conv)
# ---------------------------------------------------------------------------
def conv2d_im2col_nhwc(x, w, b, padding, relu):
    # used only for the Cin=1 first layer (K = 9, so im2col is tiny)
    N, H, W, Cin = x.shape
    Cout, _, KH, KW = w.shape
    if padding:
        x = jnp.pad(x, ((0, 0), (padding,) * 2, (padding,) * 2, (0, 0)))
        H += 2 * padding
        W += 2 * padding
    Ho, Wo = H - KH + 1, W - KW + 1
    cols = [x[:, i:i + Ho, j:j + Wo, :] for i in range(KH) for j in range(KW)]
    xcol = jnp.concatenate(cols, axis=-1).reshape(N * Ho * Wo, KH * KW * Cin)
    wcol = jnp.transpose(w, (2, 3, 1, 0)).reshape(KH * KW * Cin, Cout)
    out = matmul_bias_act(xcol, wcol, b, relu)
    return out.reshape(N, Ho, Wo, Cout)


def conv_transpose2x2_nhwc(x, w, b):
    # w: (Cin, Cout, 2, 2) -- PyTorch ConvTranspose2d layout; kernel=2, stride=2
    N, H, W, Cin = x.shape
    Cout = w.shape[1]
    wm = w.reshape(Cin, Cout * 4)
    bm = jnp.repeat(b, 4)
    out = matmul_bias_act(x.reshape(N * H * W, Cin), wm, bm, relu=False)
    out = out.reshape(N, H, W, Cout, 2, 2)
    out = jnp.transpose(out, (0, 1, 4, 2, 5, 3))   # (N, H, 2, W, 2, Cout)
    return out.reshape(N, 2 * H, 2 * W, Cout)


def conv1x1_nhwc(x, w, b, relu, out_dtype=jnp.float32):
    N, H, W, Cin = x.shape
    Cout = w.shape[0]
    wm = jnp.transpose(w.reshape(Cout, Cin), (1, 0))
    out = matmul_bias_act(x.reshape(N * H * W, Cin), wm, b, relu,
                          out_dtype=out_dtype)
    return out.reshape(N, H, W, Cout)


# ---------------------------------------------------------------------------
# Parameters (deterministic, matching the module's __init__ shapes/init)
# ---------------------------------------------------------------------------
def init_params(key):
    def conv_p(k, cout, cin, kh, kw):
        std = math.sqrt(2.0 / (kh * kw * cout))   # matches _initialize_weights
        w = std * jax.random.normal(k, (cout, cin, kh, kw), jnp.float32)
        return {"w": w, "b": jnp.zeros((cout,), jnp.float32)}

    def convT_p(k, cin, cout):
        std = math.sqrt(2.0 / (2 * 2 * cout))
        w = std * jax.random.normal(k, (cin, cout, 2, 2), jnp.float32)
        return {"w": w, "b": jnp.zeros((cout,), jnp.float32)}

    keys = iter(jax.random.split(key, 32))
    p = {}
    for i, (ci, co) in enumerate([(1, 64), (64, 128), (128, 256), (256, 512)], 1):
        p[f"down{i}"] = {"c1": conv_p(next(keys), co, ci, 3, 3),
                         "c2": conv_p(next(keys), co, co, 3, 3)}
    p["center"] = {"c1": conv_p(next(keys), 1024, 512, 3, 3),
                   "c2": conv_p(next(keys), 1024, 1024, 3, 3)}
    for i, (ci, co) in enumerate([(1024, 512), (512, 256), (256, 128), (128, 64)], 1):
        p[f"up{i}"] = {"up": convT_p(next(keys), ci, co),
                       "c1": conv_p(next(keys), co, ci, 3, 3),
                       "c2": conv_p(next(keys), co, co, 3, 3)}
    p["out"] = conv_p(next(keys), 1, 64, 1, 1)
    return p


# ---------------------------------------------------------------------------
# UNet_BN forward
# ---------------------------------------------------------------------------
def unet_bn_forward(x_nchw, p):
    x = jnp.transpose(x_nchw, (0, 2, 3, 1)).astype(jnp.bfloat16)  # -> NHWC

    def cbr(x, pp, pad):
        # ConvBnRelu.forward = conv -> relu (bn is defined but never applied)
        if x.shape[-1] < 8:   # first layer (Cin=1): tiny im2col path
            return conv2d_im2col_nhwc(x, pp["w"], pp["b"], padding=pad, relu=True)
        return conv3x3_nhwc(x, pp["w"], pp["b"], padding=pad, relu=True)

    def encoder(x, pp):
        x = cbr(x, pp["c1"], 0)
        x = cbr(x, pp["c2"], 0)
        return maxpool2x2(x), x

    x, t1 = encoder(x, p["down1"])
    x, t2 = encoder(x, p["down2"])
    x, t3 = encoder(x, p["down3"])
    x, t4 = encoder(x, p["down4"])

    # TODO(synk): Dropout2d treated as identity (eval-mode); stochastic
    # training-mode channel masking is not implemented.
    x = cbr(x, p["center"]["c1"], 0)
    x = cbr(x, p["center"]["c2"], 0)

    def decoder(x, trace, pp):
        x = conv_transpose2x2_nhwc(x, pp["up"]["w"], pp["up"]["b"])
        c = (trace.shape[1] - x.shape[1]) // 2            # center crop
        tc = trace[:, c:trace.shape[1] - c, c:trace.shape[2] - c, :]
        x = jnp.concatenate([tc, x], axis=-1)             # bypass first (torch.cat)
        x = cbr(x, pp["c1"], 1)
        x = cbr(x, pp["c2"], 1)
        return x

    x = decoder(x, t4, p["up1"])
    x = decoder(x, t3, p["up2"])
    x = decoder(x, t2, p["up3"])
    x = decoder(x, t1, p["up4"])

    x = conv1x1_nhwc(x, p["out"]["w"], p["out"]["b"], relu=False,
                     out_dtype=jnp.float32)
    return jnp.transpose(x, (0, 3, 1, 2))                 # back to NCHW


# ---------------------------------------------------------------------------
# Small numerical self-checks of the two matmul-bearing kernels
# ---------------------------------------------------------------------------
def _self_check():
    k1, k2, k3, k4 = jax.random.split(jax.random.PRNGKey(42), 4)
    # 3x3 shifted-matmul conv vs lax.conv reference (bf16 tolerance)
    x = jax.random.normal(k1, (2, 10, 10, 64), jnp.float32)
    w = 0.06 * jax.random.normal(k2, (64, 64, 3, 3), jnp.float32)
    b = 0.1 * jax.random.normal(k3, (64,), jnp.float32)
    ref = jax.lax.conv_general_dilated(
        x, w, (1, 1), ((1, 1), (1, 1)),
        dimension_numbers=("NHWC", "OIHW", "NHWC"))
    ref = jnp.maximum(ref + b, 0.0)
    got = conv3x3_nhwc(x, w, b, padding=1, relu=True).astype(jnp.float32)
    err = float(jnp.max(jnp.abs(got - ref)))
    scale = float(jnp.max(jnp.abs(ref)))
    assert err <= 0.05 * scale + 0.05, (err, scale)
    # matmul kernel with odd M/K/N (exercises the minimal-padding path)
    a = jax.random.normal(k4, (37, 9), jnp.float32)
    wb = 0.2 * jax.random.normal(k2, (9, 5), jnp.float32)
    bb = 0.1 * jax.random.normal(k3, (5,), jnp.float32)
    refm = a @ wb + bb
    gotm = matmul_bias_act(a, wb, bb, relu=False, out_dtype=jnp.float32)
    errm = float(jnp.max(jnp.abs(gotm - refm)))
    assert errm <= 0.05 * float(jnp.max(jnp.abs(refm))) + 0.05, errm


if __name__ == "__main__":
    _self_check()

    key = jax.random.PRNGKey(0)
    pkey, xkey = jax.random.split(key)
    params = init_params(pkey)
    # Smallest spatial size compatible with this valid-conv U-Net topology:
    # S must satisfy S ≡ 12 (mod 16) and S >= 140  ->  S = 140 (output 16x16).
    x = jax.random.normal(xkey, (1, 1, 140, 140), jnp.float32)
    fwd = jax.jit(unet_bn_forward)
    y = jax.block_until_ready(fwd(x, params))
    assert y.shape == (1, 1, 16, 16), y.shape
    assert bool(jnp.all(jnp.isfinite(y)))
    print("KERNEL_OK")
</pallas_src>

<mosaic_0001>
module attributes {stable_mosaic.version = 11 : i64} {
  func.func @_conv3x3_kernel(%arg0: i32, %arg1: i32, %arg2: i32, %arg3: memref<1x208x64xbf16, #tpu.memory_space<vmem>>, %arg4: memref<9x64x64xbf16, #tpu.memory_space<vmem>>, %arg5: memref<1x64xf32, #tpu.memory_space<vmem>>, %arg6: memref<1x160x64xbf16, #tpu.memory_space<vmem>>, %arg7: memref<160x64xf32, #tpu.memory_space<vmem>>) attributes {dimension_semantics = [#tpu.dimension_semantics<parallel>, #tpu.dimension_semantics<parallel>, #tpu.dimension_semantics<parallel>], iteration_bounds = array<i64: 2, 1, 1>, scalar_prefetch = 0 : i64, scratch_operands = 1 : i64, tpu.core_type = #tpu.core_type<tc>, window_params = [{transform_indices = @transform_0, window_bounds = array<i64: 1, 208, 64>}, {transform_indices = @transform_1, window_bounds = array<i64: 9, 64, 64>}, {transform_indices = @transform_2, window_bounds = array<i64: 1, 64>}, {transform_indices = @transform_3, window_bounds = array<i64: 1, 160, 64>}]} {
    %c160_i32 = arith.constant 160 : i32
    %0 = arith.muli %arg1, %c160_i32 : i32
    %1 = tpu.assume_multiple %0, 8 : i32
    %c0 = arith.constant 0 : index
    %c0_0 = arith.constant 0 : index
    %2 = vector.load %arg5[%c0, %c0_0] : memref<1x64xf32, #tpu.memory_space<vmem>>, vector<1x64xf32>
    %3 = vector.shape_cast %2 : vector<1x64xf32> to vector<1x64xf32>
    %4 = vector.broadcast %3 : vector<1x64xf32> to vector<160x64xf32>
    %c0_1 = arith.constant 0 : index
    %c0_2 = arith.constant 0 : index
    %5 = vector.load %arg7[%c0_1, %c0_2] : memref<160x64xf32, #tpu.memory_space<vmem>>, vector<160x64xf32>
    tpu.vector_store %arg7[%c0_1, %c0_2], %4 {strides = array<i32>} : memref<160x64xf32, #tpu.memory_space<vmem>>, vector<160x64xf32>,
    %c0_i32 = arith.constant 0 : i32
    %6 = arith.addi %1, %c0_i32 : i32
    %c0_3 = arith.constant 0 : index
    %7 = arith.index_cast %6 : i32 to index
    %c0_4 = arith.constant 0 : index
    %8 = vector.load %arg3[%c0_3, %7, %c0_4] : memref<1x208x64xbf16, #tpu.memory_space<vmem>>, vector<1x168x64xbf16>
    %9 = vector.shape_cast %8 : vector<1x168x64xbf16> to vector<168x64xbf16>
    %c0_5 = arith.constant 0 : index
    %c0_6 = arith.constant 0 : index
    %10 = vector.load %arg7[%c0_5, %c0_6] : memref<160x64xf32, #tpu.memory_space<vmem>>, vector<160x64xf32>
    %11 = vector.extract_strided_slice %9 {offsets = [0, 0], sizes = [160, 64], strides = [1, 1]} : vector<168x64xbf16> to vector<160x64xbf16>
    %c0_7 = arith.constant 0 : index
    %c0_8 = arith.constant 0 : index
    %c0_9 = arith.constant 0 : index
    %12 = vector.load %arg4[%c0_7, %c0_8, %c0_9] : memref<9x64x64xbf16, #tpu.memory_space<vmem>>, vector<1x64x64xbf16>
    %13 = vector.shape_cast %12 : vector<1x64x64xbf16> to vector<64x64xbf16>
    %cst = arith.constant dense<0.000000e+00> : vector<160x64xf32>
    %14 = tpu.matmul %11, %13, %cst {dimension_numbers = #tpu.dot_dimension_numbers<[1], [0], [0], [1], [0, 0, 1, 1], [], []>} : vector<160x64xbf16>, vector<64x64xbf16>, vector<160x64xf32> -> vector<160x64xf32>
    %15 = arith.addf %10, %14 : vector<160x64xf32>
    %c0_10 = arith.constant 0 : index
    %c0_11 = arith.constant 0 : index
    %16 = vector.load %arg7[%c0_10, %c0_11] : memref<160x64xf32, #tpu.memory_space<vmem>>, vector<160x64xf32>
    tpu.vector_store %arg7[%c0_10, %c0_11], %15 {strides = array<i32>} : memref<160x64xf32, #tpu.memory_space<vmem>>, vector<160x64xf32>,
    %c0_12 = arith.constant 0 : index
    %c0_13 = arith.constant 0 : index
    %17 = vector.load %arg7[%c0_12, %c0_13] : memref<160x64xf32, #tpu.memory_space<vmem>>, vector<160x64xf32>
    %18 = vector.extract_strided_slice %9 {offsets = [1, 0], sizes = [160, 64], strides = [1, 1]} : vector<168x64xbf16> to vector<160x64xbf16>
    %c1 = arith.constant 1 : index
    %c0_14 = arith.constant 0 : index
    %c0_15 = arith.constant 0 : index
    %19 = vector.load %arg4[%c1, %c0_14, %c0_15] : memref<9x64x64xbf16, #tpu.memory_space<vmem>>, vector<1x64x64xbf16>
    %20 = vector.shape_cast %19 : vector<1x64x64xbf16> to vector<64x64xbf16>
    %cst_16 = arith.constant dense<0.000000e+00> : vector<160x64xf32>
    %21 = tpu.matmul %18, %20, %cst_16 {dimension_numbers = #tpu.dot_dimension_numbers<[1], [0], [0], [1], [0, 0, 1, 1], [], []>} : vector<160x64xbf16>, vector<64x64xbf16>, vector<160x64xf32> -> vector<160x64xf32>
    %22 = arith.addf %17, %21 : vector<160x64xf32>
    %c0_17 = arith.constant 0 : index
    %c0_18 = arith.constant 0 : index
    %23 = vector.load %arg7[%c0_17, %c0_18] : memref<160x64xf32, #tpu.memory_space<vmem>>, vector<160x64xf32>
    tpu.vector_store %arg7[%c0_17, %c0_18], %22 {strides = array<i32>} : memref<160x64xf32, #tpu.memory_space<vmem>>, vector<160x64xf32>,
    %c0_19 = arith.constant 0 : index
    %c0_20 = arith.constant 0 : index
    %24 = vector.load %arg7[%c0_19, %c0_20] : memref<160x64xf32, #tpu.memory_space<vmem>>, vector<160x64xf32>
    %25 = vector.extract_strided_slice %9 {offsets = [2, 0], sizes = [160, 64], strides = [1, 1]} : vector<168x64xbf16> to vector<160x64xbf16>
    %c2 = arith.constant 2 : index
    %c0_21 = arith.constant 0 : index
    %c0_22 = arith.constant 0 : index
    %26 = vector.load %arg4[%c2, %c0_21, %c0_22] : memref<9x64x64xbf16, #tpu.memory_space<vmem>>, vector<1x64x64xbf16>
    %27 = vector.shape_cast %26 : vector<1x64x64xbf16> to vector<64x64xbf16>
    %cst_23 = arith.constant dense<0.000000e+00> : vector<160x64xf32>
    %28 = tpu.matmul %25, %27, %cst_23 {dimension_numbers = #tpu.dot_dimension_numbers<[1], [0], [0], [1], [0, 0, 1, 1], [], []>} : vector<160x64xbf16>, vector<64x64xbf16>, vector<160x64xf32> -> vector<160x64xf32>
    %29 = arith.addf %24, %28 : vector<160x64xf32>
    %c0_24 = arith.constant 0 : index
    %c0_25 = arith.constant 0 : index
    %30 = vector.load %arg7[%c0_24, %c0_25] : memref<160x64xf32, #tpu.memory_space<vmem>>, vector<160x64xf32>
    tpu.vector_store %arg7[%c0_24, %c0_25], %29 {strides = array<i32>} : memref<160x64xf32, #tpu.memory_space<vmem>>, vector<160x64xf32>,
    %c16_i32 = arith.constant 16 : i32
    %31 = arith.addi %1, %c16_i32 : i32
    %c0_26 = arith.constant 0 : index
    %32 = arith.index_cast %31 : i32 to index
    %c0_27 = arith.constant 0 : index
    %33 = vector.load %arg3[%c0_26, %32, %c0_27] : memref<1x208x64xbf16, #tpu.memory_space<vmem>>, vector<1x168x64xbf16>
    %34 = vector.shape_cast %33 : vector<1x168x64xbf16> to vector<168x64xbf16>
    %c0_28 = arith.constant 0 : index
    %c0_29 = arith.constant 0 : index
    %35 = vector.load %arg7[%c0_28, %c0_29] : memref<160x64xf32, #tpu.memory_space<vmem>>, vector<160x64xf32>
    %36 = vector.extract_strided_slice %34 {offsets = [0, 0], sizes = [160, 64], strides = [1, 1]} : vector<168x64xbf16> to vector<160x64xbf16>
    %c3 = arith.constant 3 : index
    %c0_30 = arith.constant 0 : index
    %c0_31 = arith.constant 0 : index
    %37 = vector.load %arg4[%c3, %c0_30, %c0_31] : memref<9x64x64xbf16, #tpu.memory_space<vmem>>, vector<1x64x64xbf16>
    %38 = vector.shape_cast %37 : vector<1x64x64xbf16> to vector<64x64xbf16>
    %cst_32 = arith.constant dense<0.000000e+00> : vector<160x64xf32>
    %39 = tpu.matmul %36, %38, %cst_32 {dimension_numbers = #tpu.dot_dimension_numbers<[1], [0], [0], [1], [0, 0, 1, 1], [], []>} : vector<160x64xbf16>, vector<64x64xbf16>, vector<160x64xf32> -> vector<160x64xf32>
    %40 = arith.addf %35, %39 : vector<160x64xf32>
    %c0_33 = arith.constant 0 : index
    %c0_34 = arith.constant 0 : index
    %41 = vector.load %arg7[%c0_33, %c0_34] : memref<160x64xf32, #tpu.memory_space<vmem>>, vector<160x64xf32>
    tpu.vector_store %arg7[%c0_33, %c0_34], %40 {strides = array<i32>} : memref<160x64xf32, #tpu.memory_space<vmem>>, vector<160x64xf32>,
    %c0_35 = arith.constant 0 : index
    %c0_36 = arith.constant 0 : index
    %42 = vector.load %arg7[%c0_35, %c0_36] : memref<160x64xf32, #tpu.memory_space<vmem>>, vector<160x64xf32>
    %43 = vector.extract_strided_slice %34 {offsets = [1, 0], sizes = [160, 64], strides = [1, 1]} : vector<168x64xbf16> to vector<160x64xbf16>
    %c4 = arith.constant 4 : index
    %c0_37 = arith.constant 0 : index
    %c0_38 = arith.constant 0 : index
    %44 = vector.load %arg4[%c4, %c0_37, %c0_38] : memref<9x64x64xbf16, #tpu.memory_space<vmem>>, vector<1x64x64xbf16>
    %45 = vector.shape_cast %44 : vector<1x64x64xbf16> to vector<64x64xbf16>
    %cst_39 = arith.constant dense<0.000000e+00> : vector<160x64xf32>
    %46 = tpu.matmul %43, %45, %cst_39 {dimension_numbers = #tpu.dot_dimension_numbers<[1], [0], [0], [1], [0, 0, 1, 1], [], []>} : vector<160x64xbf16>, vector<64x64xbf16>, vector<160x64xf32> -> vector<160x64xf32>
    %47 = arith.addf %42, %46 : vector<160x64xf32>
    %c0_40 = arith.constant 0 : index
    %c0_41 = arith.constant 0 : index
    %48 = vector.load %arg7[%c0_40, %c0_41] : memref<160x64xf32, #tpu.memory_space<vmem>>, vector<160x64xf32>
    tpu.vector_store %arg7[%c0_40, %c0_41], %47 {strides = array<i32>} : memref<160x64xf32, #tpu.memory_space<vmem>>, vector<160x64xf32>,
    %c0_42 = arith.constant 0 : index
    %c0_43 = arith.constant 0 : index
    %49 = vector.load %arg7[%c0_42, %c0_43] : memref<160x64xf32, #tpu.memory_space<vmem>>, vector<160x64xf32>
    %50 = vector.extract_strided_slice %34 {offsets = [2, 0], sizes = [160, 64], strides = [1, 1]} : vector<168x64xbf16> to vector<160x64xbf16>
    %c5 = arith.constant 5 : index
    %c0_44 = arith.constant 0 : index
    %c0_45 = arith.constant 0 : index
    %51 = vector.load %arg4[%c5, %c0_44, %c0_45] : memref<9x64x64xbf16, #tpu.memory_space<vmem>>, vector<1x64x64xbf16>
    %52 = vector.shape_cast %51 : vector<1x64x64xbf16> to vector<64x64xbf16>
    %cst_46 = arith.constant dense<0.000000e+00> : vector<160x64xf32>
    %53 = tpu.matmul %50, %52, %cst_46 {dimension_numbers = #tpu.dot_dimension_numbers<[1], [0], [0], [1], [0, 0, 1, 1], [], []>} : vector<160x64xbf16>, vector<64x64xbf16>, vector<160x64xf32> -> vector<160x64xf32>
    %54 = arith.addf %49, %53 : vector<160x64xf32>
    %c0_47 = arith.constant 0 : index
    %c0_48 = arith.constant 0 : index
    %55 = vector.load %arg7[%c0_47, %c0_48] : memref<160x64xf32, #tpu.memory_space<vmem>>, vector<160x64xf32>
    tpu.vector_store %arg7[%c0_47, %c0_48], %54 {strides = array<i32>} : memref<160x64xf32, #tpu.memory_space<vmem>>, vector<160x64xf32>,
    %c32_i32 = arith.constant 32 : i32
    %56 = arith.addi %1, %c32_i32 : i32
    %c0_49 = arith.constant 0 : index
    %57 = arith.index_cast %56 : i32 to index
    %c0_50 = arith.constant 0 : index
    %58 = vector.load %arg3[%c0_49, %57, %c0_50] : memref<1x208x64xbf16, #tpu.memory_space<vmem>>, vector<1x168x64xbf16>
    %59 = vector.shape_cast %58 : vector<1x168x64xbf16> to vector<168x64xbf16>
    %c0_51 = arith.constant 0 : index
    %c0_52 = arith.constant 0 : index
    %60 = vector.load %arg7[%c0_51, %c0_52] : memref<160x64xf32, #tpu.memory_space<vmem>>, vector<160x64xf32>
    %61 = vector.extract_strided_slice %59 {offsets = [0, 0], sizes = [160, 64], strides = [1, 1]} : vector<168x64xbf16> to vector<160x64xbf16>
    %c6 = arith.constant 6 : index
    %c0_53 = arith.constant 0 : index
    %c0_54 = arith.constant 0 : index
    %62 = vector.load %arg4[%c6, %c0_53, %c0_54] : memref<9x64x64xbf16, #tpu.memory_space<vmem>>, vector<1x64x64xbf16>
    %63 = vector.shape_cast %62 : vector<1x64x64xbf16> to vector<64x64xbf16>
    %cst_55 = arith.constant dense<0.000000e+00> : vector<160x64xf32>
    %64 = tpu.matmul %61, %63, %cst_55 {dimension_numbers = #tpu.dot_dimension_numbers<[1], [0], [0], [1], [0, 0, 1, 1], [], []>} : vector<160x64xbf16>, vector<64x64xbf16>, vector<160x64xf32> -> vector<160x64xf32>
    %65 = arith.addf %60, %64 : vector<160x64xf32>
    %c0_56 = arith.constant 0 : index
    %c0_57 = arith.constant 0 : index
    %66 = vector.load %arg7[%c0_56, %c0_57] : memref<160x64xf32, #tpu.memory_space<vmem>>, vector<160x64xf32>
    tpu.vector_store %arg7[%c0_56, %c0_57], %65 {strides = array<i32>} : memref<160x64xf32, #tpu.memory_space<vmem>>, vector<160x64xf32>,
    %c0_58 = arith.constant 0 : index
    %c0_59 = arith.constant 0 : index
    %67 = vector.load %arg7[%c0_58, %c0_59] : memref<160x64xf32, #tpu.memory_space<vmem>>, vector<160x64xf32>
    %68 = vector.extract_strided_slice %59 {offsets = [1, 0], sizes = [160, 64], strides = [1, 1]} : vector<168x64xbf16> to vector<160x64xbf16>
    %c7 = arith.constant 7 : index
    %c0_60 = arith.constant 0 : index
    %c0_61 = arith.constant 0 : index
    %69 = vector.load %arg4[%c7, %c0_60, %c0_61] : memref<9x64x64xbf16, #tpu.memory_space<vmem>>, vector<1x64x64xbf16>
    %70 = vector.shape_cast %69 : vector<1x64x64xbf16> to vector<64x64xbf16>
    %cst_62 = arith.constant dense<0.000000e+00> : vector<160x64xf32>
    %71 = tpu.matmul %68, %70, %cst_62 {dimension_numbers = #tpu.dot_dimension_numbers<[1], [0], [0], [1], [0, 0, 1, 1], [], []>} : vector<160x64xbf16>, vector<64x64xbf16>, vector<160x64xf32> -> vector<160x64xf32>
    %72 = arith.addf %67, %71 : vector<160x64xf32>
    %c0_63 = arith.constant 0 : index
    %c0_64 = arith.constant 0 : index
    %73 = vector.load %arg7[%c0_63, %c0_64] : memref<160x64xf32, #tpu.memory_space<vmem>>, vector<160x64xf32>
    tpu.vector_store %arg7[%c0_63, %c0_64], %72 {strides = array<i32>} : memref<160x64xf32, #tpu.memory_space<vmem>>, vector<160x64xf32>,
    %c0_65 = arith.constant 0 : index
    %c0_66 = arith.constant 0 : index
    %74 = vector.load %arg7[%c0_65, %c0_66] : memref<160x64xf32, #tpu.memory_space<vmem>>, vector<160x64xf32>
    %75 = vector.extract_strided_slice %59 {offsets = [2, 0], sizes = [160, 64], strides = [1, 1]} : vector<168x64xbf16> to vector<160x64xbf16>
    %c8 = arith.constant 8 : index
    %c0_67 = arith.constant 0 : index
    %c0_68 = arith.constant 0 : index
    %76 = vector.load %arg4[%c8, %c0_67, %c0_68] : memref<9x64x64xbf16, #tpu.memory_space<vmem>>, vector<1x64x64xbf16>
    %77 = vector.shape_cast %76 : vector<1x64x64xbf16> to vector<64x64xbf16>
    %cst_69 = arith.constant dense<0.000000e+00> : vector<160x64xf32>
    %78 = tpu.matmul %75, %77, %cst_69 {dimension_numbers = #tpu.dot_dimension_numbers<[1], [0], [0], [1], [0, 0, 1, 1], [], []>} : vector<160x64xbf16>, vector<64x64xbf16>, vector<160x64xf32> -> vector<160x64xf32>
    %79 = arith.addf %74, %78 : vector<160x64xf32>
    %c0_70 = arith.constant 0 : index
    %c0_71 = arith.constant 0 : index
    %80 = vector.load %arg7[%c0_70, %c0_71] : memref<160x64xf32, #tpu.memory_space<vmem>>, vector<160x64xf32>
    tpu.vector_store %arg7[%c0_70, %c0_71], %79 {strides = array<i32>} : memref<160x64xf32, #tpu.memory_space<vmem>>, vector<160x64xf32>,
    %c0_72 = arith.constant 0 : index
    %c0_73 = arith.constant 0 : index
    %81 = vector.load %arg7[%c0_72, %c0_73] : memref<160x64xf32, #tpu.memory_space<vmem>>, vector<160x64xf32>
    %cst_74 = arith.constant 0.000000e+00 : f32
    %82 = vector.broadcast %cst_74 : f32 to vector<160x64xf32>
    %83 = arith.maximumf %81, %82 : vector<160x64xf32>
    %84 = arith.truncf %83 : vector<160x64xf32> to vector<160x64xbf16>
    %c0_75 = arith.constant 0 : index
    %c0_76 = arith.constant 0 : index
    %c0_77 = arith.constant 0 : index
    %85 = vector.load %arg6[%c0_75, %c0_76, %c0_77] : memref<1x160x64xbf16, #tpu.memory_space<vmem>>, vector<1x160x64xbf16>
    %86 = vector.shape_cast %85 : vector<1x160x64xbf16> to vector<160x64xbf16>
    %87 = vector.shape_cast %84 : vector<160x64xbf16> to vector<1x160x64xbf16>
    tpu.vector_store %arg6[%c0_75, %c0_76, %c0_77], %87 {strides = array<i32>} : memref<1x160x64xbf16, #tpu.memory_space<vmem>>, vector<1x160x64xbf16>,
    return
  }
  func.func @transform_0(%arg0: i32, %arg1: i32, %arg2: i32) -> (i32, i32, i32) {
    %c0_i32 = arith.constant 0 : i32
    %c0_i32_0 = arith.constant 0 : i32
    %c0_i32_1 = arith.constant 0 : i32
    return %arg0, %c0_i32, %c0_i32_0 : i32, i32, i32
  }
  func.func @transform_1(%arg0: i32, %arg1: i32, %arg2: i32) -> (i32, i32, i32) {
    %c0_i32 = arith.constant 0 : i32
    %c0_i32_0 = arith.constant 0 : i32
    %c0_i32_1 = arith.constant 0 : i32
    return %c0_i32, %c0_i32_0, %arg2 : i32, i32, i32
  }
  func.func @transform_2(%arg0: i32, %arg1: i32, %arg2: i32) -> (i32, i32) {
    %c0_i32 = arith.constant 0 : i32
    %c0_i32_0 = arith.constant 0 : i32
    return %c0_i32, %arg2 : i32, i32
  }
  func.func @transform_3(%arg0: i32, %arg1: i32, %arg2: i32) -> (i32, i32, i32) {
    %c0_i32 = arith.constant 0 : i32
    return %arg0, %arg1, %arg2 : i32, i32, i32
  }
}

</mosaic_0001>

<llo_original>
// kernel: tpu_custom_call.1
$region0: #{tpu_custom_call.1}
  #allocation0 [shape = 'u32[]', space=smem, size = 0x4, offset = 0x4, fixed_abs, tag = 'smem constant byte address 0x4 - core index']
  #allocation1 [shape = 'u32[144,128]{1,0:T(1,128)}', space=vmem, size = 0x12000, scoped, tag = 'internal scratch']
  #allocation2 [shape = 'f32[160,64]{1,0:T(8,128)}', space=vmem, size = 0x14000, scoped, tag = 'scratch operand']
  %s0 = inlined_call_operand.vmem [shape: bf16[2,208,64], index: 0, kind: input, shape index: {}]
  %s1 = inlined_call_operand.vmem [shape: bf16[9,64,64], index: 1, kind: input, shape index: {}]
  %s2 = inlined_call_operand.vmem [shape: f32[1,64], index: 2, kind: input, shape index: {}]
  %s3 = inlined_call_operand.vmem [shape: bf16[2,160,64], index: 3, kind: output, shape index: {}]
  %s4 = sld [smem:[#allocation0]]
  $region45: #{tpu_custom_call.1} parent=0
    _
  %s6 = ssub.s32 1, %s4
  %s7 = scalar_select 0, %s6, %s4
  loop: start=0, step=1, limit=4
  $region2: #{tpu_custom_call.1} parent=0 // loop_pre_header
    _
  $region3: #{tpu_custom_call.1} parent=0 // loop_header
    %s9 = sphi 0, %s13
    %p10 = scmp.ge.s32.totalorder %s9, 4
    %s16 = sphi 0, %s35
    %s17 = sphi 0, %s31
    %s18 = sphi 0, %s27
    %s19 = sphi 0, %s16
    %s20 = sphi 0, %s17
    %s21 = sphi 0, %s18
    %s22 = sphi 0, %s19
    %s23 = sphi 0, %s20
    %s24 = sphi 0, %s21
    %s38 = sphi 0, %s40
    %s41 = sphi 0, %s38
    %s42 = sphi 0, %s41
    %s58 = sphi 0, %s42
    %s64 = sphi 0, %s66
    %s67 = sphi 0, %s64
    %s68 = sphi 0, %s67
    %s84 = sphi 0, %s68
    %s90 = sphi 0, %s92
    %s93 = sphi 0, %s90
    %s94 = sphi 0, %s93
    %s110 = sphi 0, %s94
    %s120 = sphi 0, %s122
    %s123 = sphi 0, %s120
    %s124 = sphi 0, %s123
    %s140 = sphi 0, %s124
  $region4: #{tpu_custom_call.1} parent=0 // loop_header_branch
    %12 = sbr.rel (%p10) target = $region8
  $region5: #{tpu_custom_call.1} parent=0 // loop_body
    %s14 = ssub.s32 %s9, 1
    %s15 = ssub.s32 %s9, 2
    %s25 = sadd.s32 1, %s18
    %p26 = scmp.ge.s32.totalorder %s25, 1
    %s27 = scalar_select %p26, 0, %s25
    %s28 = sadd.s32 1, %s17
    %s29 = scalar_select %p26, %s28, %s17
    %p30 = scmp.ge.s32.totalorder %s29, 1
    %s31 = scalar_select %p30, 0, %s29
    %s32 = sadd.s32 1, %s16
    %s33 = scalar_select %p30, %s32, %s16
    %p34 = scmp.ge.s32.totalorder %s33, 2
    %s35 = scalar_select %p34, 0, %s33
    %s36 = ssub.s32 %s16, %s35
    %p37 = scmp.eq.s32.totalorder %s36, 0
    %s39 = sadd.s32 %s38, 1
    %s40 = scalar_select %p37, %s38, %s39
    %p43 = pneg %p37
    %p44 = scmp.eq.s32.totalorder %s9, 1
    %p45 = por %p43, %p44
    %p46 = scmp.ne.s32.totalorder %s38, %s41
    %p47 = scmp.eq.s32.totalorder %s9, 0
    %p48 = por %p46, %p47
    %p49 = scmp.ne.s32.totalorder %s38, %s41
    %p50 = scmp.eq.s32.totalorder %s14, 1
    %p51 = por %p49, %p50
    %p52 = scmp.ne.s32.totalorder %s41, %s42
    %p53 = scmp.eq.s32.totalorder %s14, 0
    %p54 = por %p52, %p53
    %p55 = scmp.ne.s32.totalorder %s41, %s42
    %p56 = scmp.eq.s32.totalorder %s15, 1
    %p57 = por %p55, %p56
    %p59 = scmp.ne.s32.totalorder %s42, %s58
    %p60 = scmp.eq.s32.totalorder %s15, 0
    %p61 = por %p59, %p60
    %s62 = ssub.s32 %s18, %s27
    %p63 = scmp.eq.s32.totalorder %s62, 0
    %s65 = sadd.s32 %s64, 1
    %s66 = scalar_select %p63, %s64, %s65
    %p69 = pneg %p63
    %p70 = scmp.eq.s32.totalorder %s9, 1
    %p71 = por %p69, %p70
    %p72 = scmp.ne.s32.totalorder %s64, %s67
    %p73 = scmp.eq.s32.totalorder %s9, 0
    %p74 = por %p72, %p73
    %p75 = scmp.ne.s32.totalorder %s64, %s67
    %p76 = scmp.eq.s32.totalorder %s14, 1
    %p77 = por %p75, %p76
    %p78 = scmp.ne.s32.totalorder %s67, %s68
    %p79 = scmp.eq.s32.totalorder %s14, 0
    %p80 = por %p78, %p79
    %p81 = scmp.ne.s32.totalorder %s67, %s68
    %p82 = scmp.eq.s32.totalorder %s15, 1
    %p83 = por %p81, %p82
    %p85 = scmp.ne.s32.totalorder %s68, %s84
    %p86 = scmp.eq.s32.totalorder %s15, 0
    %p87 = por %p85, %p86
    %s88 = ssub.s32 %s18, %s27
    %p89 = scmp.eq.s32.totalorder %s88, 0
    %s91 = sadd.s32 %s90, 1
    %s92 = scalar_select %p89, %s90, %s91
    %p95 = pneg %p89
    %p96 = scmp.eq.s32.totalorder %s9, 1
    %p97 = por %p95, %p96
    %p98 = scmp.ne.s32.totalorder %s90, %s93
    %p99 = scmp.eq.s32.totalorder %s9, 0
    %p100 = por %p98, %p99
    %p101 = scmp.ne.s32.totalorder %s90, %s93
    %p102 = scmp.eq.s32.totalorder %s14, 1
    %p103 = por %p101, %p102
    %p104 = scmp.ne.s32.totalorder %s93, %s94
    %p105 = scmp.eq.s32.totalorder %s14, 0
    %p106 = por %p104, %p105
    %p107 = scmp.ne.s32.totalorder %s93, %s94
    %p108 = scmp.eq.s32.totalorder %s15, 1
    %p109 = por %p107, %p108
    %p111 = scmp.ne.s32.totalorder %s94, %s110
    %p112 = scmp.eq.s32.totalorder %s15, 0
    %p113 = por %p111, %p112
    %s114 = ssub.s32 %s16, %s35
    %s115 = ssub.s32 %s17, %s31
    %s116 = sor.u32 %s114, %s115
    %s117 = ssub.s32 %s18, %s27
    %s118 = sor.u32 %s116, %s117
    %p119 = scmp.eq.s32.totalorder %s118, 0
    %s121 = sadd.s32 %s120, 1
    %s122 = scalar_select %p119, %s120, %s121
    %p125 = pneg %p119
    %p126 = scmp.eq.s32.totalorder %s9, 1
    %p127 = por %p125, %p126
    %p128 = scmp.ne.s32.totalorder %s120, %s123
    %p129 = scmp.eq.s32.totalorder %s9, 0
    %p130 = por %p128, %p129
    %p131 = scmp.ne.s32.totalorder %s120, %s123
    %p132 = scmp.eq.s32.totalorder %s14, 1
    %p133 = por %p131, %p132
    %p134 = scmp.ne.s32.totalorder %s123, %s124
    %p135 = scmp.eq.s32.totalorder %s14, 0
    %p136 = por %p134, %p135
    %p137 = scmp.ne.s32.totalorder %s123, %s124
    %p138 = scmp.eq.s32.totalorder %s15, 1
    %p139 = por %p137, %p138
    %p141 = scmp.ne.s32.totalorder %s124, %s140
    %p142 = scmp.eq.s32.totalorder %s15, 0
    %p143 = por %p141, %p142
    %p144 = scmp.le.s32.totalorder 1, %s9
    %p145 = scmp.lt.s32.totalorder %s9, 3
    %p146 = pnand %p144, %p145
    %p147 = pneg %p146
    // Predicated region
    $region9: #{tpu_custom_call.1} parent=5 // pred_check
      _
    $region10: #{tpu_custom_call.1} parent=5 // pred_check_branch
      %149 = sbr.rel (%p146) target = $region12
    $region11: #{tpu_custom_call.1} parent=5 // pred_region
      %s150 = ssub.s32 %s9, 1
      // Predicated region
      $region13: #{tpu_custom_call.1} parent=11 // pred_check
        %p151 = pneg %p80
      $region14: #{tpu_custom_call.1} parent=11 // pred_check_branch
        %153 = sbr.rel (%p151) target = $region16
      $region15: #{tpu_custom_call.1} parent=11 // pred_region
        %p154 = scmp.lt.s32.totalorder %s21, 0
        %s155 = scalar_select %p154, %s21, 0
        %s156 = smul.addr %s155, 4
        %s157 = scalar_lea.vmem %s1, %s156
      $region16: #{tpu_custom_call.1} parent=11 // pred_fallthru
        _
      // Predicated region
      $region17: #{tpu_custom_call.1} parent=11 // pred_check
        %p158 = pneg %p106
      $region18: #{tpu_custom_call.1} parent=11 // pred_check_branch
        %160 = sbr.rel (%p158) target = $region20
      $region19: #{tpu_custom_call.1} parent=11 // pred_region
        %p161 = scmp.lt.s32.totalorder %s21, 0
        %s162 = scalar_select %p161, %s21, 0
        %s163 = scalar_lea.vmem %s2, %s162
      $region20: #{tpu_custom_call.1} parent=11 // pred_fallthru
        _
    $region12: #{tpu_custom_call.1} parent=5 // pred_fallthru
      _
    %p164 = scmp.lt.s32.totalorder %s9, 2
    // Predicated region
    $region21: #{tpu_custom_call.1} parent=5 // pred_check
      %p165 = pneg %p164
    $region22: #{tpu_custom_call.1} parent=5 // pred_check_branch
      %167 = sbr.rel (%p165) target = $region24
    $region23: #{tpu_custom_call.1} parent=5 // pred_region
      // Predicated region
      $region25: #{tpu_custom_call.1} parent=23 // pred_check
        %p168 = pneg %p48
      $region26: #{tpu_custom_call.1} parent=23 // pred_check_branch
        %170 = sbr.rel (%p168) target = $region28
      $region27: #{tpu_custom_call.1} parent=23 // pred_region
        %p171 = scmp.lt.s32.totalorder %s16, 1
        %s172 = scalar_select %p171, %s16, 1
        %s173 = smul.addr %s172, 26
        %s174 = smul.addr %s173, 4
        %s175 = scalar_lea.vmem %s0, %s174
      $region28: #{tpu_custom_call.1} parent=23 // pred_fallthru
        _
    $region24: #{tpu_custom_call.1} parent=5 // pred_fallthru
      _
    %p176 = scmp.le.s32.totalorder 1, %s9
    %p177 = scmp.lt.s32.totalorder %s9, 3
    %p178 = pnand %p176, %p177
    %p179 = pneg %p178
    // Predicated region
    $region29: #{tpu_custom_call.1} parent=5 // pred_check
      _
    $region30: #{tpu_custom_call.1} parent=5 // pred_check_branch
      %181 = sbr.rel (%p178) target = $region32
    $region31: #{tpu_custom_call.1} parent=5 // pred_region
      %s182 = ssub.s32 %s9, 1
      %p183 = scmp.lt.s32.totalorder %s19, 1
      %s184 = scalar_select %p183, %s19, 1
      %s185 = smul.addr %s184, 26
      %s186 = smul.addr %s185, 4
      %s187 = scalar_lea.vmem %s0, %s186
      %p188 = pneg %p54
      %p189 = pneg %p51
      %p190 = scmp.lt.s32.totalorder %s21, 0
      %s191 = scalar_select %p190, %s21, 0
      %s192 = smul.addr %s191, 4
      %s193 = scalar_lea.vmem %s1, %s192
      %p194 = pneg %p80
      %p195 = pneg %p77
      %p196 = scmp.lt.s32.totalorder %s21, 0
      %s197 = scalar_select %p196, %s21, 0
      %s198 = scalar_lea.vmem %s2, %s197
      %p199 = pneg %p106
      %p200 = pneg %p103
      %p201 = pneg %p136
      %p202 = pneg %p133
      %s203 = smul.u32 20, %s20
      %p204 = scmp.lt.s32.totalorder %s19, 1
      %s205 = scalar_select %p204, %s19, 1
      %p206 = scmp.lt.s32.totalorder %s203, 19
      %s207 = scalar_select %p206, %s203, 19
      %p208 = scmp.lt.s32.totalorder %s21, 0
      %s209 = scalar_select %p208, %s21, 0
      %s210 = sadd.s32 %s209, %s207
      %s211 = smul.addr %s205, 20
      %s212 = sadd.s32 %s210, %s211
      %s213 = smul.addr %s212, 4
      %s214 = scalar_lea.vmem %s3, %s213
      %p215 = scmp.lt.s32.totalorder %s19, 1
      %s216 = scalar_select %p215, %s19, 1
      %s217 = smul.addr %s216, 26
      %s218 = smul.addr %s217, 4
      %s219 = scalar_lea.vmem %s0, %s218
      %p220 = scmp.lt.s32.totalorder %s21, 0
      %s221 = scalar_select %p220, %s21, 0
      %s222 = smul.addr %s221, 4
      %s223 = scalar_lea.vmem %s1, %s222
      %p224 = scmp.lt.s32.totalorder %s21, 0
      %s225 = scalar_select %p224, %s21, 0
      %s226 = scalar_lea.vmem %s2, %s225
      %s227 = smul.u32 20, %s20
      %p228 = scmp.lt.s32.totalorder %s19, 1
      %s229 = scalar_select %p228, %s19, 1
      %p230 = scmp.lt.s32.totalorder %s227, 19
      %s231 = scalar_select %p230, %s227, 19
      %p232 = scmp.lt.s32.totalorder %s21, 0
      %s233 = scalar_select %p232, %s21, 0
      %s234 = sadd.s32 %s233, %s231
      %s235 = smul.addr %s229, 20
      %s236 = sadd.s32 %s234, %s235
      %s237 = smul.addr %s236, 4
      %s238 = scalar_lea.vmem %s3, %s237
      %s239 = smul.u32 20, %s20
      %s241 = smul.u32 %s20, 160
      %v242 = vld [vmem:[%s226] sm:$0x1]
      %v244 = vlaneseq
      %v245 = vshrl.u32 %v244, 7
      %v246 = vsub.s32 0, %v245
      %v247 = vrot.slane %v242, %v246
      %vm249 = vcmask 523264
      %250 = vst.msk [vmem:[#allocation2] sm:$0xff] %vm249, %v247
      %251 = vst.msk [vmem:[#allocation2 + $0x8] sm:$0xff] %vm249, %v247
      %252 = vst.msk [vmem:[#allocation2 + $0x10] sm:$0xff] %vm249, %v247
      %253 = vst.msk [vmem:[#allocation2 + $0x18] sm:$0xff] %vm249, %v247
      %254 = vst.msk [vmem:[#allocation2 + $0x20] sm:$0xff] %vm249, %v247
      %255 = vst.msk [vmem:[#allocation2 + $0x28] sm:$0xff] %vm249, %v247
      %256 = vst.msk [vmem:[#allocation2 + $0x30] sm:$0xff] %vm249, %v247
      %257 = vst.msk [vmem:[#allocation2 + $0x38] sm:$0xff] %vm249, %v247
      %258 = vst.msk [vmem:[#allocation2 + $0x40] sm:$0xff] %vm249, %v247
      %259 = vst.msk [vmem:[#allocation2 + $0x48] sm:$0xff] %vm249, %v247
      %260 = vst.msk [vmem:[#allocation2 + $0x50] sm:$0xff] %vm249, %v247
      %261 = vst.msk [vmem:[#allocation2 + $0x58] sm:$0xff] %vm249, %v247
      %262 = vst.msk [vmem:[#allocation2 + $0x60] sm:$0xff] %vm249, %v247
      %263 = vst.msk [vmem:[#allocation2 + $0x68] sm:$0xff] %vm249, %v247
      %264 = vst.msk [vmem:[#allocation2 + $0x70] sm:$0xff] %vm249, %v247
      %265 = vst.msk [vmem:[#allocation2 + $0x78] sm:$0xff] %vm249, %v247
      %266 = vst.msk [vmem:[#allocation2 + $0x80] sm:$0xff] %vm249, %v247
      %267 = vst.msk [vmem:[#allocation2 + $0x88] sm:$0xff] %vm249, %v247
      %268 = vst.msk [vmem:[#allocation2 + $0x90] sm:$0xff] %vm249, %v247
      %269 = vst.msk [vmem:[#allocation2 + $0x98] sm:$0xff] %vm249, %v247
      %s270 = sshra.s32 %s241, 3
      %s271 = sand.u32 %s241, 7
      %s272 = smul.addr %s270, 4
      %s273 = scalar_lea.vmem %s219, %s272
      %v274 = vld [vmem:[%s273] sm:$0xf]
      %v275 = vld [vmem:[%s273 + $0x4] sm:$0xf]
      %v276 = vld [vmem:[%s273 + $0x8] sm:$0xf]
      %v277 = vld [vmem:[%s273 + $0xc] sm:$0xf]
      %v278 = vld [vmem:[%s273 + $0x10] sm:$0xf]
      %v279 = vld [vmem:[%s273 + $0x14] sm:$0xf]
      %v280 = vld [vmem:[%s273 + $0x18] sm:$0xf]
      %v281 = vld [vmem:[%s273 + $0x1c] sm:$0xf]
      %v282 = vld [vmem:[%s273 + $0x20] sm:$0xf]
      %v283 = vld [vmem:[%s273 + $0x24] sm:$0xf]
      %v284 = vld [vmem:[%s273 + $0x28] sm:$0xf]
      %v285 = vld [vmem:[%s273 + $0x2c] sm:$0xf]
      %v286 = vld [vmem:[%s273 + $0x30] sm:$0xf]
      %v287 = vld [vmem:[%s273 + $0x34] sm:$0xf]
      %v288 = vld [vmem:[%s273 + $0x38] sm:$0xf]
      %v289 = vld [vmem:[%s273 + $0x3c] sm:$0xf]
      %v290 = vld [vmem:[%s273 + $0x40] sm:$0xf]
      %v291 = vld [vmem:[%s273 + $0x44] sm:$0xf]
      %v292 = vld [vmem:[%s273 + $0x48] sm:$0xf]
      %v293 = vld [vmem:[%s273 + $0x4c] sm:$0xf]
      %v294 = vld [vmem:[%s273 + $0x50] sm:$0xf]
      %v295 = vld [vmem:[#allocation2] sm:$0xff]
      %v296 = vld [vmem:[#allocation2 + $0x8] sm:$0xff]
      %v297 = vld [vmem:[#allocation2 + $0x10] sm:$0xff]
      %v298 = vld [vmem:[#allocation2 + $0x18] sm:$0xff]
      %v299 = vld [vmem:[#allocation2 + $0x20] sm:$0xff]
      %v300 = vld [vmem:[#allocation2 + $0x28] sm:$0xff]
      %v301 = vld [vmem:[#allocation2 + $0x30] sm:$0xff]
      %v302 = vld [vmem:[#allocation2 + $0x38] sm:$0xff]
      %v303 = vld [vmem:[#allocation2 + $0x40] sm:$0xff]
      %v304 = vld [vmem:[#allocation2 + $0x48] sm:$0xff]
      %v305 = vld [vmem:[#allocation2 + $0x50] sm:$0xff]
      %v306 = vld [vmem:[#allocation2 + $0x58] sm:$0xff]
      %v307 = vld [vmem:[#allocation2 + $0x60] sm:$0xff]
      %v308 = vld [vmem:[#allocation2 + $0x68] sm:$0xff]
      %v309 = vld [vmem:[#allocation2 + $0x70] sm:$0xff]
      %v310 = vld [vmem:[#allocation2 + $0x78] sm:$0xff]
      %v311 = vld [vmem:[#allocation2 + $0x80] sm:$0xff]
      %v312 = vld [vmem:[#allocation2 + $0x88] sm:$0xff]
      %v313 = vld [vmem:[#allocation2 + $0x90] sm:$0xff]
      %v314 = vld [vmem:[#allocation2 + $0x98] sm:$0xff]
      %v315 = vld [vmem:[%s223] sm:$0xf]
      %v316 = vld [vmem:[%s223 + $0x4] sm:$0xf]
      %v317 = vld [vmem:[%s223 + $0x8] sm:$0xf]
      %v318 = vld [vmem:[%s223 + $0xc] sm:$0xf]
      %v319 = vld [vmem:[%s223 + $0x10] sm:$0xf]
      %v320 = vld [vmem:[%s223 + $0x14] sm:$0xf]
      %v321 = vld [vmem:[%s223 + $0x18] sm:$0xf]
      %v322 = vld [vmem:[%s223 + $0x1c] sm:$0xf]
      %v343 = vunpack.c.l.b16 %v274
      %v344 = vunpack.c.l.b16 %v275
      %v345 = vunpack.c.l.b16 %v276
      %v346 = vunpack.c.l.b16 %v277
      %v347 = vunpack.c.l.b16 %v278
      %v348 = vunpack.c.l.b16 %v279
      %v349 = vunpack.c.l.b16 %v280
      %v350 = vunpack.c.l.b16 %v281
      %v351 = vunpack.c.l.b16 %v282
      %v352 = vunpack.c.l.b16 %v283
      %v353 = vunpack.c.l.b16 %v284
      %v354 = vunpack.c.l.b16 %v285
      %v355 = vunpack.c.l.b16 %v286
      %v356 = vunpack.c.l.b16 %v287
      %v357 = vunpack.c.l.b16 %v288
      %v358 = vunpack.c.l.b16 %v289
      %v359 = vunpack.c.l.b16 %v290
      %v360 = vunpack.c.l.b16 %v291
      %v361 = vunpack.c.l.b16 %v292
      %v362 = vunpack.c.l.b16 %v293
      %v363 = vpack.c.b16 %v344, %v343
      %v364 = vpack.c.b16 %v346, %v345
      %v365 = vpack.c.b16 %v348, %v347
      %v366 = vpack.c.b16 %v350, %v349
      %v367 = vpack.c.b16 %v352, %v351
      %v368 = vpack.c.b16 %v354, %v353
      %v369 = vpack.c.b16 %v356, %v355
      %v370 = vpack.c.b16 %v358, %v357
      %v371 = vpack.c.b16 %v360, %v359
      %v372 = vpack.c.b16 %v362, %v361
      %v381 = vunpack.c.l.b16 %v315
      %v382 = vunpack.c.l.b16 %v316
      %v383 = vunpack.c.l.b16 %v317
      %v384 = vunpack.c.l.b16 %v318
      %v385 = vunpack.c.l.b16 %v319
      %v386 = vunpack.c.l.b16 %v320
      %v387 = vunpack.c.l.b16 %v321
      %v388 = vunpack.c.l.b16 %v322
      %v389 = vpack.c.b16 %v382, %v381
      %v390 = vpack.c.b16 %v384, %v383
      %v391 = vpack.c.b16 %v386, %v385
      %v392 = vpack.c.b16 %v388, %v387
      %v398 = vsel %vm249, %v363, 0
      %v401 = vsel %vm249, %v364, 0
      %v404 = vsel %vm249, %v365, 0
      %v407 = vsel %vm249, %v366, 0
      %v410 = vsel %vm249, %v367, 0
      %v413 = vsel %vm249, %v368, 0
      %v416 = vsel %vm249, %v369, 0
      %v419 = vsel %vm249, %v370, 0
      %v422 = vsel %vm249, %v371, 0
      %v425 = vsel %vm249, %v372, 0
      %427 = vmatprep.subr.bf16.mxu0 0
      %428 = vmatpush1.bf16.msra.mxu0 %v389
      %429 = vmatprep.subr.bf16.mxu0 0
      %430 = vmatpush1.bf16.msra.mxu0 %v390
      %431 = vmatprep.subr.bf16.mxu0 0
      %432 = vmatpush1.bf16.msra.mxu0 %v391
      %433 = vmatprep.subr.bf16.mxu0 0
      %434 = vmatpush1.bf16.msra.mxu0 %v392
      %435 = vmatprep.subr.bf16.mxu0 0
      %436 = vmatpush1.bf16.msra.mxu0 0
      %437 = vmatprep.subr.bf16.mxu0 0
      %438 = vmatpush1.bf16.msra.mxu0 0
      %439 = vmatprep.subr.bf16.mxu0 0
      %440 = vmatpush1.bf16.msra.mxu0 0
      %441 = vmatprep.subr.bf16.mxu0 0
      %442 = vmatpush1.bf16.msra.mxu0 0
      %443 = vmatprep.subr.bf16.mxu0 0
      %444 = vmatpush1.bf16.msra.mxu0 0
      %445 = vmatprep.subr.bf16.mxu0 0
      %446 = vmatpush1.bf16.msra.mxu0 0
      %447 = vmatprep.subr.bf16.mxu0 0
      %448 = vmatpush1.bf16.msra.mxu0 0
      %449 = vmatprep.subr.bf16.mxu0 0
      %450 = vmatpush1.bf16.msra.mxu0 0
      %451 = vmatprep.subr.bf16.mxu0 0
      %452 = vmatpush1.bf16.msra.mxu0 0
      %453 = vmatprep.subr.bf16.mxu0 0
      %454 = vmatpush1.bf16.msra.mxu0 0
      %455 = vmatprep.subr.bf16.mxu0 0
      %456 = vmatpush1.bf16.msra.mxu0 0
      %457 = vmatprep.subr.bf16.mxu0 0
      %458 = vmatpush1.bf16.msra.mxu0 0
      %459 = vmatprep.mubr.bf16.mxu0 0
      %460 = vmatmul.mubr.bf16.gmra.mrb[0].mxu0 %v398
      %v461 = vpop.f32.mrb[0].mxu0
      %v462 = vadd.f32 0.0, %v461
      %v463 = vpop.f32.mrb[0].mxu0
      %v464 = vpop.f32.mrb[0].mxu0
      %v465 = vadd.f32 0.0, %v464
      %v466 = vpop.f32.mrb[0].mxu0
      %467 = vmatprep.mubr.bf16.mxu0 0
      %468 = vmatmul.mubr.bf16.gmra.mrb[0].mxu0 %v401
      %v469 = vpop.f32.mrb[0].mxu0
      %v470 = vadd.f32 0.0, %v469
      %v471 = vpop.f32.mrb[0].mxu0
      %v472 = vpop.f32.mrb[0].mxu0
      %v473 = vadd.f32 0.0, %v472
      %v474 = vpop.f32.mrb[0].mxu0
      %475 = vmatprep.mubr.bf16.mxu0 0
      %476 = vmatmul.mubr.bf16.gmra.mrb[0].mxu0 %v404
      %v477 = vpop.f32.mrb[0].mxu0
      %v478 = vadd.f32 0.0, %v477
      %v479 = vpop.f32.mrb[0].mxu0
      %v480 = vpop.f32.mrb[0].mxu0
      %v481 = vadd.f32 0.0, %v480
      %v482 = vpop.f32.mrb[0].mxu0
      %483 = vmatprep.mubr.bf16.mxu0 0
      %484 = vmatmul.mubr.bf16.gmra.mrb[0].mxu0 %v407
      %v485 = vpop.f32.mrb[0].mxu0
      %v486 = vadd.f32 0.0, %v485
      %v487 = vpop.f32.mrb[0].mxu0
      %v488 = vpop.f32.mrb[0].mxu0
      %v489 = vadd.f32 0.0, %v488
      %v490 = vpop.f32.mrb[0].mxu0
      %491 = vmatprep.mubr.bf16.mxu0 0
      %492 = vmatmul.mubr.bf16.gmra.mrb[0].mxu0 %v410
      %v493 = vpop.f32.mrb[0].mxu0
      %v494 = vadd.f32 0.0, %v493
      %v495 = vpop.f32.mrb[0].mxu0
      %v496 = vpop.f32.mrb[0].mxu0
      %v497 = vadd.f32 0.0, %v496
      %v498 = vpop.f32.mrb[0].mxu0
      %499 = vmatprep.mubr.bf16.mxu0 0
      %500 = vmatmul.mubr.bf16.gmra.mrb[0].mxu0 %v413
      %v501 = vpop.f32.mrb[0].mxu0
      %v502 = vadd.f32 0.0, %v501
      %v503 = vpop.f32.mrb[0].mxu0
      %v504 = vpop.f32.mrb[0].mxu0
      %v505 = vadd.f32 0.0, %v504
      %v506 = vpop.f32.mrb[0].mxu0
      %507 = vmatprep.mubr.bf16.mxu0 0
      %508 = vmatmul.mubr.bf16.gmra.mrb[0].mxu0 %v416
      %v509 = vpop.f32.mrb[0].mxu0
      %v510 = vadd.f32 0.0, %v509
      %v511 = vpop.f32.mrb[0].mxu0
      %v512 = vpop.f32.mrb[0].mxu0
      %v513 = vadd.f32 0.0, %v512
      %v514 = vpop.f32.mrb[0].mxu0
      %515 = vmatprep.mubr.bf16.mxu0 0
      %516 = vmatmul.mubr.bf16.gmra.mrb[0].mxu0 %v419
      %v517 = vpop.f32.mrb[0].mxu0
      %v518 = vadd.f32 0.0, %v517
      %v519 = vpop.f32.mrb[0].mxu0
      %v520 = vpop.f32.mrb[0].mxu0
      %v521 = vadd.f32 0.0, %v520
      %v522 = vpop.f32.mrb[0].mxu0
      %523 = vmatprep.mubr.bf16.mxu0 0
      %524 = vmatmul.mubr.bf16.gmra.mrb[0].mxu0 %v422
      %v525 = vpop.f32.mrb[0].mxu0
      %v526 = vadd.f32 0.0, %v525
      %v527 = vpop.f32.mrb[0].mxu0
      %v528 = vpop.f32.mrb[0].mxu0
      %v529 = vadd.f32 0.0, %v528
      %v530 = vpop.f32.mrb[0].mxu0
      %531 = vmatprep.mubr.bf16.mxu0 0
      %532 = vmatmul.mubr.bf16.gmra.mrb[0].mxu0 %v425
      %v533 = vpop.f32.mrb[0].mxu0
      %v534 = vadd.f32 0.0, %v533
      %v535 = vpop.f32.mrb[0].mxu0
      %v536 = vpop.f32.mrb[0].mxu0
      %v537 = vadd.f32 0.0, %v536
      %v538 = vpop.f32.mrb[0].mxu0
      %539 = vdwg.mxu0
      %v540 = vadd.f32 %v295, %v462
      %v541 = vadd.f32 %v296, %v465
      %v542 = vadd.f32 %v297, %v470
      %v543 = vadd.f32 %v298, %v473
      %v544 = vadd.f32 %v299, %v478
      %v545 = vadd.f32 %v300, %v481
      %v546 = vadd.f32 %v301, %v486
      %v547 = vadd.f32 %v302, %v489
      %v548 = vadd.f32 %v303, %v494
      %v549 = vadd.f32 %v304, %v497
      %v550 = vadd.f32 %v305, %v502
      %v551 = vadd.f32 %v306, %v505
      %v552 = vadd.f32 %v307, %v510
      %v553 = vadd.f32 %v308, %v513
      %v554 = vadd.f32 %v309, %v518
      %v555 = vadd.f32 %v310, %v521
      %v556 = vadd.f32 %v311, %v526
      %v557 = vadd.f32 %v312, %v529
      %v558 = vadd.f32 %v313, %v534
      %v559 = vadd.f32 %v314, %v537
      %560 = vst.msk [vmem:[#allocation2] sm:$0xff] %vm249, %v540
      %561 = vst.msk [vmem:[#allocation2 + $0x8] sm:$0xff] %vm249, %v541
      %562 = vst.msk [vmem:[#allocation2 + $0x10] sm:$0xff] %vm249, %v542
      %563 = vst.msk [vmem:[#allocation2 + $0x18] sm:$0xff] %vm249, %v543
      %564 = vst.msk [vmem:[#allocation2 + $0x20] sm:$0xff] %vm249, %v544
      %565 = vst.msk [vmem:[#allocation2 + $0x28] sm:$0xff] %vm249, %v545
      %566 = vst.msk [vmem:[#allocation2 + $0x30] sm:$0xff] %vm249, %v546
      %567 = vst.msk [vmem:[#allocation2 + $0x38] sm:$0xff] %vm249, %v547
      %568 = vst.msk [vmem:[#allocation2 + $0x40] sm:$0xff] %vm249, %v548
      %569 = vst.msk [vmem:[#allocation2 + $0x48] sm:$0xff] %vm249, %v549
      %570 = vst.msk [vmem:[#allocation2 + $0x50] sm:$0xff] %vm249, %v550
      %571 = vst.msk [vmem:[#allocation2 + $0x58] sm:$0xff] %vm249, %v551
      %572 = vst.msk [vmem:[#allocation2 + $0x60] sm:$0xff] %vm249, %v552
      %573 = vst.msk [vmem:[#allocation2 + $0x68] sm:$0xff] %vm249, %v553
      %574 = vst.msk [vmem:[#allocation2 + $0x70] sm:$0xff] %vm249, %v554
      %575 = vst.msk [vmem:[#allocation2 + $0x78] sm:$0xff] %vm249, %v555
      %576 = vst.msk [vmem:[#allocation2 + $0x80] sm:$0xff] %vm249, %v556
      %577 = vst.msk [vmem:[#allocation2 + $0x88] sm:$0xff] %vm249, %v557
      %578 = vst.msk [vmem:[#allocation2 + $0x90] sm:$0xff] %vm249, %v558
      %579 = vst.msk [vmem:[#allocation2 + $0x98] sm:$0xff] %vm249, %v559
      %v580 = vld [vmem:[#allocation2] sm:$0xff]
      %v581 = vld [vmem:[#allocation2 + $0x8] sm:$0xff]
      %v582 = vld [vmem:[#allocation2 + $0x10] sm:$0xff]
      %v583 = vld [vmem:[#allocation2 + $0x18] sm:$0xff]
      %v584 = vld [vmem:[#allocation2 + $0x20] sm:$0xff]
      %v585 = vld [vmem:[#allocation2 + $0x28] sm:$0xff]
      %v586 = vld [vmem:[#allocation2 + $0x30] sm:$0xff]
      %v587 = vld [vmem:[#allocation2 + $0x38] sm:$0xff]
      %v588 = vld [vmem:[#allocation2 + $0x40] sm:$0xff]
      %v589 = vld [vmem:[#allocation2 + $0x48] sm:$0xff]
      %v590 = vld [vmem:[#allocation2 + $0x50] sm:$0xff]
      %v591 = vld [vmem:[#allocation2 + $0x58] sm:$0xff]
      %v592 = vld [vmem:[#allocation2 + $0x60] sm:$0xff]
      %v593 = vld [vmem:[#allocation2 + $0x68] sm:$0xff]
      %v594 = vld [vmem:[#allocation2 + $0x70] sm:$0xff]
      %v595 = vld [vmem:[#allocation2 + $0x78] sm:$0xff]
      %v596 = vld [vmem:[#allocation2 + $0x80] sm:$0xff]
      %v597 = vld [vmem:[#allocation2 + $0x88] sm:$0xff]
      %v598 = vld [vmem:[#allocation2 + $0x90] sm:$0xff]
      %v599 = vld [vmem:[#allocation2 + $0x98] sm:$0xff]
      %s600 = scalar_lea.vmem %s223, 32
      %v601 = vld [vmem:[%s600] sm:$0xf]
      %v602 = vld [vmem:[%s600 + $0x4] sm:$0xf]
      %v603 = vld [vmem:[%s600 + $0x8] sm:$0xf]
      %v604 = vld [vmem:[%s600 + $0xc] sm:$0xf]
      %v605 = vld [vmem:[%s600 + $0x10] sm:$0xf]
      %v606 = vld [vmem:[%s600 + $0x14] sm:$0xf]
      %v607 = vld [vmem:[%s600 + $0x18] sm:$0xf]
      %v608 = vld [vmem:[%s600 + $0x1c] sm:$0xf]
      %v610 = vunpack.c.l.b16 %v294
      %v611 = vpack.c.b16 %v610, %v610
      %vm612 = vsmask.f32 7424
      %v613 = vshrl.u32 %v363, 16
      %v615 = vshll.u32 %v363, 16
      %v617 = vrot.slane %v615, 1
      %v618 = vor.u32 %v613, %v617
      %v619 = vshll.u32 %v364, 16
      %v621 = vrot.slane %v619, 1
      %v622 = vsel %vm612, %v618, %v621
      %v623 = vshrl.u32 %v364, 16
      %v625 = vor.u32 %v623, %v621
      %v626 = vshll.u32 %v365, 16
      %v628 = vrot.slane %v626, 1
      %v629 = vsel %vm612, %v625, %v628
      %v630 = vshrl.u32 %v365, 16
      %v632 = vor.u32 %v630, %v628
      %v633 = vshll.u32 %v366, 16
      %v635 = vrot.slane %v633, 1
      %v636 = vsel %vm612, %v632, %v635
      %v637 = vshrl.u32 %v366, 16
      %v639 = vor.u32 %v637, %v635
      %v640 = vshll.u32 %v367, 16
      %v642 = vrot.slane %v640, 1
      %v643 = vsel %vm612, %v639, %v642
      %v644 = vshrl.u32 %v367, 16
      %v646 = vor.u32 %v644, %v642
      %v647 = vshll.u32 %v368, 16
      %v649 = vrot.slane %v647, 1
      %v650 = vsel %vm612, %v646, %v649
      %v651 = vshrl.u32 %v368, 16
      %v653 = vor.u32 %v651, %v649
      %v654 = vshll.u32 %v369, 16
      %v656 = vrot.slane %v654, 1
      %v657 = vsel %vm612, %v653, %v656
      %v658 = vshrl.u32 %v369, 16
      %v660 = vor.u32 %v658, %v656
      %v661 = vshll.u32 %v370, 16
      %v663 = vrot.slane %v661, 1
      %v664 = vsel %vm612, %v660, %v663
      %v665 = vshrl.u32 %v370, 16
      %v667 = vor.u32 %v665, %v663
      %v668 = vshll.u32 %v371, 16
      %v670 = vrot.slane %v668, 1
      %v671 = vsel %vm612, %v667, %v670
      %v672 = vshrl.u32 %v371, 16
      %v674 = vor.u32 %v672, %v670
      %v675 = vshll.u32 %v372, 16
      %v677 = vrot.slane %v675, 1
      %v678 = vsel %vm612, %v674, %v677
      %v679 = vshrl.u32 %v372, 16
      %v681 = vor.u32 %v679, %v677
      %v683 = vshll.u32 %v611, 16
      %v685 = vrot.slane %v683, 1
      %v686 = vsel %vm612, %v681, %v685
      %v695 = vunpack.c.l.b16 %v601
      %v696 = vunpack.c.l.b16 %v602
      %v697 = vunpack.c.l.b16 %v603
      %v698 = vunpack.c.l.b16 %v604
      %v699 = vunpack.c.l.b16 %v605
      %v700 = vunpack.c.l.b16 %v606
      %v701 = vunpack.c.l.b16 %v607
      %v702 = vunpack.c.l.b16 %v608
      %v703 = vpack.c.b16 %v696, %v695
      %v704 = vpack.c.b16 %v698, %v697
      %v705 = vpack.c.b16 %v700, %v699
      %v706 = vpack.c.b16 %v702, %v701
      %v712 = vsel %vm249, %v622, 0
      %v715 = vsel %vm249, %v629, 0
      %v718 = vsel %vm249, %v636, 0
      %v721 = vsel %vm249, %v643, 0
      %v724 = vsel %vm249, %v650, 0
      %v727 = vsel %vm249, %v657, 0
      %v730 = vsel %vm249, %v664, 0
      %v733 = vsel %vm249, %v671, 0
      %v736 = vsel %vm249, %v678, 0
      %v739 = vsel %vm249, %v686, 0
      %741 = vmatprep.subr.bf16.mxu0 0
      %742 = vmatpush1.bf16.msra.mxu0 %v703
      %743 = vmatprep.subr.bf16.mxu0 0
      %744 = vmatpush1.bf16.msra.mxu0 %v704
      %745 = vmatprep.subr.bf16.mxu0 0
      %746 = vmatpush1.bf16.msra.mxu0 %v705
      %747 = vmatprep.subr.bf16.mxu0 0
      %748 = vmatpush1.bf16.msra.mxu0 %v706
      %749 = vmatprep.subr.bf16.mxu0 0
      %750 = vmatpush1.bf16.msra.mxu0 0
      %751 = vmatprep.subr.bf16.mxu0 0
      %752 = vmatpush1.bf16.msra.mxu0 0
      %753 = vmatprep.subr.bf16.mxu0 0
      %754 = vmatpush1.bf16.msra.mxu0 0
      %755 = vmatprep.subr.bf16.mxu0 0
      %756 = vmatpush1.bf16.msra.mxu0 0
      %757 = vmatprep.subr.bf16.mxu0 0
      %758 = vmatpush1.bf16.msra.mxu0 0
      %759 = vmatprep.subr.bf16.mxu0 0
      %760 = vmatpush1.bf16.msra.mxu0 0
      %761 = vmatprep.subr.bf16.mxu0 0
      %762 = vmatpush1.bf16.msra.mxu0 0
      %763 = vmatprep.subr.bf16.mxu0 0
      %764 = vmatpush1.bf16.msra.mxu0 0
      %765 = vmatprep.subr.bf16.mxu0 0
      %766 = vmatpush1.bf16.msra.mxu0 0
      %767 = vmatprep.subr.bf16.mxu0 0
      %768 = vmatpush1.bf16.msra.mxu0 0
      %769 = vmatprep.subr.bf16.mxu0 0
      %770 = vmatpush1.bf16.msra.mxu0 0
      %771 = vmatprep.subr.bf16.mxu0 0
      %772 = vmatpush1.bf16.msra.mxu0 0
      %773 = vmatprep.mubr.bf16.mxu0 0
      %774 = vmatmul.mubr.bf16.gmra.mrb[0].mxu0 %v712
      %v775 = vpop.f32.mrb[0].mxu0
      %v776 = vadd.f32 0.0, %v775
      %v777 = vpop.f32.mrb[0].mxu0
      %v778 = vpop.f32.mrb[0].mxu0
      %v779 = vadd.f32 0.0, %v778
      %v780 = vpop.f32.mrb[0].mxu0
      %781 = vmatprep.mubr.bf16.mxu0 0
      %782 = vmatmul.mubr.bf16.gmra.mrb[0].mxu0 %v715
      %v783 = vpop.f32.mrb[0].mxu0
      %v784 = vadd.f32 0.0, %v783
      %v785 = vpop.f32.mrb[0].mxu0
      %v786 = vpop.f32.mrb[0].mxu0
      %v787 = vadd.f32 0.0, %v786
      %v788 = vpop.f32.mrb[0].mxu0
      %789 = vmatprep.mubr.bf16.mxu0 0
      %790 = vmatmul.mubr.bf16.gmra.mrb[0].mxu0 %v718
      %v791 = vpop.f32.mrb[0].mxu0
      %v792 = vadd.f32 0.0, %v791
      %v793 = vpop.f32.mrb[0].mxu0
      %v794 = vpop.f32.mrb[0].mxu0
      %v795 = vadd.f32 0.0, %v794
      %v796 = vpop.f32.mrb[0].mxu0
      %797 = vmatprep.mubr.bf16.mxu0 0
      %798 = vmatmul.mubr.bf16.gmra.mrb[0].mxu0 %v721
      %v799 = vpop.f32.mrb[0].mxu0
      %v800 = vadd.f32 0.0, %v799
      %v801 = vpop.f32.mrb[0].mxu0
      %v802 = vpop.f32.mrb[0].mxu0
      %v803 = vadd.f32 0.0, %v802
      %v804 = vpop.f32.mrb[0].mxu0
      %805 = vmatprep.mubr.bf16.mxu0 0
      %806 = vmatmul.mubr.bf16.gmra.mrb[0].mxu0 %v724
      %v807 = vpop.f32.mrb[0].mxu0
      %v808 = vadd.f32 0.0, %v807
      %v809 = vpop.f32.mrb[0].mxu0
      %v810 = vpop.f32.mrb[0].mxu0
      %v811 = vadd.f32 0.0, %v810
      %v812 = vpop.f32.mrb[0].mxu0
      %813 = vmatprep.mubr.bf16.mxu0 0
      %814 = vmatmul.mubr.bf16.gmra.mrb[0].mxu0 %v727
      %v815 = vpop.f32.mrb[0].mxu0
      %v816 = vadd.f32 0.0, %v815
      %v817 = vpop.f32.mrb[0].mxu0
      %v818 = vpop.f32.mrb[0].mxu0
      %v819 = vadd.f32 0.0, %v818
      %v820 = vpop.f32.mrb[0].mxu0
      %821 = vmatprep.mubr.bf16.mxu0 0
      %822 = vmatmul.mubr.bf16.gmra.mrb[0].mxu0 %v730
      %v823 = vpop.f32.mrb[0].mxu0
      %v824 = vadd.f32 0.0, %v823
      %v825 = vpop.f32.mrb[0].mxu0
      %v826 = vpop.f32.mrb[0].mxu0
      %v827 = vadd.f32 0.0, %v826
      %v828 = vpop.f32.mrb[0].mxu0
      %829 = vmatprep.mubr.bf16.mxu0 0
      %830 = vmatmul.mubr.bf16.gmra.mrb[0].mxu0 %v733
      %v831 = vpop.f32.mrb[0].mxu0
      %v832 = vadd.f32 0.0, %v831
      %v833 = vpop.f32.mrb[0].mxu0
      %v834 = vpop.f32.mrb[0].mxu0
      %v835 = vadd.f32 0.0, %v834
      %v836 = vpop.f32.mrb[0].mxu0
      %837 = vmatprep.mubr.bf16.mxu0 0
      %838 = vmatmul.mubr.bf16.gmra.mrb[0].mxu0 %v736
      %v839 = vpop.f32.mrb[0].mxu0
      %v840 = vadd.f32 0.0, %v839
      %v841 = vpop.f32.mrb[0].mxu0
      %v842 = vpop.f32.mrb[0].mxu0
      %v843 = vadd.f32 0.0, %v842
      %v844 = vpop.f32.mrb[0].mxu0
      %845 = vmatprep.mubr.bf16.mxu0 0
      %846 = vmatmul.mubr.bf16.gmra.mrb[0].mxu0 %v739
      %v847 = vpop.f32.mrb[0].mxu0
      %v848 = vadd.f32 0.0, %v847
      %v849 = vpop.f32.mrb[0].mxu0
      %v850 = vpop.f32.mrb[0].mxu0
      %v851 = vadd.f32 0.0, %v850
      %v852 = vpop.f32.mrb[0].mxu0
      %853 = vdwg.mxu0
      %v854 = vadd.f32 %v580, %v776
      %v855 = vadd.f32 %v581, %v779
      %v856 = vadd.f32 %v582, %v784
      %v857 = vadd.f32 %v583, %v787
      %v858 = vadd.f32 %v584, %v792
      %v859 = vadd.f32 %v585, %v795
      %v860 = vadd.f32 %v586, %v800
      %v861 = vadd.f32 %v587, %v803
      %v862 = vadd.f32 %v588, %v808
      %v863 = vadd.f32 %v589, %v811
      %v864 = vadd.f32 %v590, %v816
      %v865 = vadd.f32 %v591, %v819
      %v866 = vadd.f32 %v592, %v824
      %v867 = vadd.f32 %v593, %v827
      %v868 = vadd.f32 %v594, %v832
      %v869 = vadd.f32 %v595, %v835
      %v870 = vadd.f32 %v596, %v840
      %v871 = vadd.f32 %v597, %v843
      %v872 = vadd.f32 %v598, %v848
      %v873 = vadd.f32 %v599, %v851
      %874 = vst.msk [vmem:[#allocation2] sm:$0xff] %vm249, %v854
      %875 = vst.msk [vmem:[#allocation2 + $0x8] sm:$0xff] %vm249, %v855
      %876 = vst.msk [vmem:[#allocation2 + $0x10] sm:$0xff] %vm249, %v856
      %877 = vst.msk [vmem:[#allocation2 + $0x18] sm:$0xff] %vm249, %v857
      %878 = vst.msk [vmem:[#allocation2 + $0x20] sm:$0xff] %vm249, %v858
      %879 = vst.msk [vmem:[#allocation2 + $0x28] sm:$0xff] %vm249, %v859
      %880 = vst.msk [vmem:[#allocation2 + $0x30] sm:$0xff] %vm249, %v860
      %881 = vst.msk [vmem:[#allocation2 + $0x38] sm:$0xff] %vm249, %v861
      %882 = vst.msk [vmem:[#allocation2 + $0x40] sm:$0xff] %vm249, %v862
      %883 = vst.msk [vmem:[#allocation2 + $0x48] sm:$0xff] %vm249, %v863
      %884 = vst.msk [vmem:[#allocation2 + $0x50] sm:$0xff] %vm249, %v864
      %885 = vst.msk [vmem:[#allocation2 + $0x58] sm:$0xff] %vm249, %v865
      %886 = vst.msk [vmem:[#allocation2 + $0x60] sm:$0xff] %vm249, %v866
      %887 = vst.msk [vmem:[#allocation2 + $0x68] sm:$0xff] %vm249, %v867
      %888 = vst.msk [vmem:[#allocation2 + $0x70] sm:$0xff] %vm249, %v868
      %889 = vst.msk [vmem:[#allocation2 + $0x78] sm:$0xff] %vm249, %v869
      %890 = vst.msk [vmem:[#allocation2 + $0x80] sm:$0xff] %vm249, %v870
      %891 = vst.msk [vmem:[#allocation2 + $0x88] sm:$0xff] %vm249, %v871
      %892 = vst.msk [vmem:[#allocation2 + $0x90] sm:$0xff] %vm249, %v872
      %893 = vst.msk [vmem:[#allocation2 + $0x98] sm:$0xff] %vm249, %v873
      %v894 = vld [vmem:[#allocation2] sm:$0xff]
      %v895 = vld [vmem:[#allocation2 + $0x8] sm:$0xff]
      %v896 = vld [vmem:[#allocation2 + $0x10] sm:$0xff]
      %v897 = vld [vmem:[#allocation2 + $0x18] sm:$0xff]
      %v898 = vld [vmem:[#allocation2 + $0x20] sm:$0xff]
      %v899 = vld [vmem:[#allocation2 + $0x28] sm:$0xff]
      %v900 = vld [vmem:[#allocation2 + $0x30] sm:$0xff]
      %v901 = vld [vmem:[#allocation2 + $0x38] sm:$0xff]
      %v902 = vld [vmem:[#allocation2 + $0x40] sm:$0xff]
      %v903 = vld [vmem:[#allocation2 + $0x48] sm:$0xff]
      %v904 = vld [vmem:[#allocation2 + $0x50] sm:$0xff]
      %v905 = vld [vmem:[#allocation2 + $0x58] sm:$0xff]
      %v906 = vld [vmem:[#allocation2 + $0x60] sm:$0xff]
      %v907 = vld [vmem:[#allocation2 + $0x68] sm:$0xff]
      %v908 = vld [vmem:[#allocation2 + $0x70] sm:$0xff]
      %v909 = vld [vmem:[#allocation2 + $0x78] sm:$0xff]
      %v910 = vld [vmem:[#allocation2 + $0x80] sm:$0xff]
      %v911 = vld [vmem:[#allocation2 + $0x88] sm:$0xff]
      %v912 = vld [vmem:[#allocation2 + $0x90] sm:$0xff]
      %v913 = vld [vmem:[#allocation2 + $0x98] sm:$0xff]
      %s914 = scalar_lea.vmem %s223, 64
      %v915 = vld [vmem:[%s914] sm:$0xf]
      %v916 = vld [vmem:[%s914 + $0x4] sm:$0xf]
      %v917 = vld [vmem:[%s914 + $0x8] sm:$0xf]
      %v918 = vld [vmem:[%s914 + $0xc] sm:$0xf]
      %v919 = vld [vmem:[%s914 + $0x10] sm:$0xf]
      %v920 = vld [vmem:[%s914 + $0x14] sm:$0xf]
      %v921 = vld [vmem:[%s914 + $0x18] sm:$0xf]
      %v922 = vld [vmem:[%s914 + $0x1c] sm:$0xf]
      %vm923 = vcmask 1046528
      %v924 = vrot.slane %v363, 1
      %v925 = vrot.slane %v364, 1
      %v926 = vsel %vm923, %v924, %v925
      %v927 = vrot.slane %v365, 1
      %v928 = vsel %vm923, %v925, %v927
      %v929 = vrot.slane %v366, 1
      %v930 = vsel %vm923, %v927, %v929
      %v931 = vrot.slane %v367, 1
      %v932 = vsel %vm923, %v929, %v931
      %v933 = vrot.slane %v368, 1
      %v934 = vsel %vm923, %v931, %v933
      %v935 = vrot.slane %v369, 1
      %v936 = vsel %vm923, %v933, %v935
      %v937 = vrot.slane %v370, 1
      %v938 = vsel %vm923, %v935, %v937
      %v939 = vrot.slane %v371, 1
      %v940 = vsel %vm923, %v937, %v939
      %v941 = vrot.slane %v372, 1
      %v942 = vsel %vm923, %v939, %v941
      %v943 = vrot.slane %v611, 1
      %v944 = vsel %vm923, %v941, %v943
      %v953 = vunpack.c.l.b16 %v915
      %v954 = vunpack.c.l.b16 %v916
      %v955 = vunpack.c.l.b16 %v917
      %v956 = vunpack.c.l.b16 %v918
      %v957 = vunpack.c.l.b16 %v919
      %v958 = vunpack.c.l.b16 %v920
      %v959 = vunpack.c.l.b16 %v921
      %v960 = vunpack.c.l.b16 %v922
      %v961 = vpack.c.b16 %v954, %v953
      %v962 = vpack.c.b16 %v956, %v955
      %v963 = vpack.c.b16 %v958, %v957
      %v964 = vpack.c.b16 %v960, %v959
      %v970 = vsel %vm249, %v926, 0
      %v973 = vsel %vm249, %v928, 0
      %v976 = vsel %vm249, %v930, 0
      %v979 = vsel %vm249, %v932, 0
      %v982 = vsel %vm249, %v934, 0
      %v985 = vsel %vm249, %v936, 0
      %v988 = vsel %vm249, %v938, 0
      %v991 = vsel %vm249, %v940, 0
      %v994 = vsel %vm249, %v942, 0
      %v997 = vsel %vm249, %v944, 0
      %999 = vmatprep.subr.bf16.mxu0 0
      %1000 = vmatpush1.bf16.msra.mxu0 %v961
      %1001 = vmatprep.subr.bf16.mxu0 0
      %1002 = vmatpush1.bf16.msra.mxu0 %v962
      %1003 = vmatprep.subr.bf16.mxu0 0
      %1004 = vmatpush1.bf16.msra.mxu0 %v963
      %1005 = vmatprep.subr.bf16.mxu0 0
      %1006 = vmatpush1.bf16.msra.mxu0 %v964
      %1007 = vmatprep.subr.bf16.mxu0 0
      %1008 = vmatpush1.bf16.msra.mxu0 0
      %1009 = vmatprep.subr.bf16.mxu0 0
      %1010 = vmatpush1.bf16.msra.mxu0 0
      %1011 = vmatprep.subr.bf16.mxu0 0
      %1012 = vmatpush1.bf16.msra.mxu0 0
      %1013 = vmatprep.subr.bf16.mxu0 0
      %1014 = vmatpush1.bf16.msra.mxu0 0
      %1015 = vmatprep.subr.bf16.mxu0 0
      %1016 = vmatpush1.bf16.msra.mxu0 0
      %1017 = vmatprep.subr.bf16.mxu0 0
      %1018 = vmatpush1.bf16.msra.mxu0 0
      %1019 = vmatprep.subr.bf16.mxu0 0
      %1020 = vmatpush1.bf16.msra.mxu0 0
      %1021 = vmatprep.subr.bf16.mxu0 0
      %1022 = vmatpush1.bf16.msra.mxu0 0
      %1023 = vmatprep.subr.bf16.mxu0 0
      %1024 = vmatpush1.bf16.msra.mxu0 0
      %1025 = vmatprep.subr.bf16.mxu0 0
      %1026 = vmatpush1.bf16.msra.mxu0 0
      %1027 = vmatprep.subr.bf16.mxu0 0
      %1028 = vmatpush1.bf16.msra.mxu0 0
      %1029 = vmatprep.subr.bf16.mxu0 0
      %1030 = vmatpush1.bf16.msra.mxu0 0
      %1031 = vmatprep.mubr.bf16.mxu0 0
      %1032 = vmatmul.mubr.bf16.gmra.mrb[0].mxu0 %v970
      %v1033 = vpop.f32.mrb[0].mxu0
      %v1034 = vadd.f32 0.0, %v1033
      %v1035 = vpop.f32.mrb[0].mxu0
      %v1036 = vpop.f32.mrb[0].mxu0
      %v1037 = vadd.f32 0.0, %v1036
      %v1038 = vpop.f32.mrb[0].mxu0
      %1039 = vmatprep.mubr.bf16.mxu0 0
      %1040 = vmatmul.mubr.bf16.gmra.mrb[0].mxu0 %v973
      %v1041 = vpop.f32.mrb[0].mxu0
      %v1042 = vadd.f32 0.0, %v1041
      %v1043 = vpop.f32.mrb[0].mxu0
      %v1044 = vpop.f32.mrb[0].mxu0
      %v1045 = vadd.f32 0.0, %v1044
      %v1046 = vpop.f32.mrb[0].mxu0
      %1047 = vmatprep.mubr.bf16.mxu0 0
      %1048 = vmatmul.mubr.bf16.gmra.mrb[0].mxu0 %v976
      %v1049 = vpop.f32.mrb[0].mxu0
      %v1050 = vadd.f32 0.0, %v1049
      %v1051 = vpop.f32.mrb[0].mxu0
      %v1052 = vpop.f32.mrb[0].mxu0
      %v1053 = vadd.f32 0.0, %v1052
      %v1054 = vpop.f32.mrb[0].mxu0
      %1055 = vmatprep.mubr.bf16.mxu0 0
      %1056 = vmatmul.mubr.bf16.gmra.mrb[0].mxu0 %v979
      %v1057 = vpop.f32.mrb[0].mxu0
      %v1058 = vadd.f32 0.0, %v1057
      %v1059 = vpop.f32.mrb[0].mxu0
      %v1060 = vpop.f32.mrb[0].mxu0
      %v1061 = vadd.f32 0.0, %v1060
      %v1062 = vpop.f32.mrb[0].mxu0
      %1063 = vmatprep.mubr.bf16.mxu0 0
      %1064 = vmatmul.mubr.bf16.gmra.mrb[0].mxu0 %v982
      %v1065 = vpop.f32.mrb[0].mxu0
      %v1066 = vadd.f32 0.0, %v1065
      %v1067 = vpop.f32.mrb[0].mxu0
      %v1068 = vpop.f32.mrb[0].mxu0
      %v1069 = vadd.f32 0.0, %v1068
      %v1070 = vpop.f32.mrb[0].mxu0
      %1071 = vmatprep.mubr.bf16.mxu0 0
      %1072 = vmatmul.mubr.bf16.gmra.mrb[0].mxu0 %v985
      %v1073 = vpop.f32.mrb[0].mxu0
      %v1074 = vadd.f32 0.0, %v1073
      %v1075 = vpop.f32.mrb[0].mxu0
      %v1076 = vpop.f32.mrb[0].mxu0
      %v1077 = vadd.f32 0.0, %v1076
      %v1078 = vpop.f32.mrb[0].mxu0
      %1079 = vmatprep.mubr.bf16.mxu0 0
      %1080 = vmatmul.mubr.bf16.gmra.mrb[0].mxu0 %v988
      %v1081 = vpop.f32.mrb[0].mxu0
      %v1082 = vadd.f32 0.0, %v1081
      %v1083 = vpop.f32.mrb[0].mxu0
      %v1084 = vpop.f32.mrb[0].mxu0
      %v1085 = vadd.f32 0.0, %v1084
      %v1086 = vpop.f32.mrb[0].mxu0
      %1087 = vmatprep.mubr.bf16.mxu0 0
      %1088 = vmatmul.mubr.bf16.gmra.mrb[0].mxu0 %v991
      %v1089 = vpop.f32.mrb[0].mxu0
      %v1090 = vadd.f32 0.0, %v1089
      %v1091 = vpop.f32.mrb[0].mxu0
      %v1092 = vpop.f32.mrb[0].mxu0
      %v1093 = vadd.f32 0.0, %v1092
      %v1094 = vpop.f32.mrb[0].mxu0
      %1095 = vmatprep.mubr.bf16.mxu0 0
      %1096 = vmatmul.mubr.bf16.gmra.mrb[0].mxu0 %v994
      %v1097 = vpop.f32.mrb[0].mxu0
      %v1098 = vadd.f32 0.0, %v1097
      %v1099 = vpop.f32.mrb[0].mxu0
      %v1100 = vpop.f32.mrb[0].mxu0
      %v1101 = vadd.f32 0.0, %v1100
      %v1102 = vpop.f32.mrb[0].mxu0
      %1103 = vmatprep.mubr.bf16.mxu0 0
      %1104 = vmatmul.mubr.bf16.gmra.mrb[0].mxu0 %v997
      %v1105 = vpop.f32.mrb[0].mxu0
      %v1106 = vadd.f32 0.0, %v1105
      %v1107 = vpop.f32.mrb[0].mxu0
      %v1108 = vpop.f32.mrb[0].mxu0
      %v1109 = vadd.f32 0.0, %v1108
      %v1110 = vpop.f32.mrb[0].mxu0
      %1111 = vdwg.mxu0
      %v1112 = vadd.f32 %v894, %v1034
      %v1113 = vadd.f32 %v895, %v1037
      %v1114 = vadd.f32 %v896, %v1042
      %v1115 = vadd.f32 %v897, %v1045
      %v1116 = vadd.f32 %v898, %v1050
      %v1117 = vadd.f32 %v899, %v1053
      %v1118 = vadd.f32 %v900, %v1058
      %v1119 = vadd.f32 %v901, %v1061
      %v1120 = vadd.f32 %v902, %v1066
      %v1121 = vadd.f32 %v903, %v1069
      %v1122 = vadd.f32 %v904, %v1074
      %v1123 = vadd.f32 %v905, %v1077
      %v1124 = vadd.f32 %v906, %v1082
      %v1125 = vadd.f32 %v907, %v1085
      %v1126 = vadd.f32 %v908, %v1090
      %v1127 = vadd.f32 %v909, %v1093
      %v1128 = vadd.f32 %v910, %v1098
      %v1129 = vadd.f32 %v911, %v1101
      %v1130 = vadd.f32 %v912, %v1106
      %v1131 = vadd.f32 %v913, %v1109
      %1132 = vst.msk [vmem:[#allocation2] sm:$0xff] %vm249, %v1112
      %1133 = vst.msk [vmem:[#allocation2 + $0x8] sm:$0xff] %vm249, %v1113
      %1134 = vst.msk [vmem:[#allocation2 + $0x10] sm:$0xff] %vm249, %v1114
      %1135 = vst.msk [vmem:[#allocation2 + $0x18] sm:$0xff] %vm249, %v1115
      %1136 = vst.msk [vmem:[#allocation2 + $0x20] sm:$0xff] %vm249, %v1116
      %1137 = vst.msk [vmem:[#allocation2 + $0x28] sm:$0xff] %vm249, %v1117
      %1138 = vst.msk [vmem:[#allocation2 + $0x30] sm:$0xff] %vm249, %v1118
      %1139 = vst.msk [vmem:[#allocation2 + $0x38] sm:$0xff] %vm249, %v1119
      %1140 = vst.msk [vmem:[#allocation2 + $0x40] sm:$0xff] %vm249, %v1120
      %1141 = vst.msk [vmem:[#allocation2 + $0x48] sm:$0xff] %vm249, %v1121
      %1142 = vst.msk [vmem:[#allocation2 + $0x50] sm:$0xff] %vm249, %v1122
      %1143 = vst.msk [vmem:[#allocation2 + $0x58] sm:$0xff] %vm249, %v1123
      %1144 = vst.msk [vmem:[#allocation2 + $0x60] sm:$0xff] %vm249, %v1124
      %1145 = vst.msk [vmem:[#allocation2 + $0x68] sm:$0xff] %vm249, %v1125
      %1146 = vst.msk [vmem:[#allocation2 + $0x70] sm:$0xff] %vm249, %v1126
      %1147 = vst.msk [vmem:[#allocation2 + $0x78] sm:$0xff] %vm249, %v1127
      %1148 = vst.msk [vmem:[#allocation2 + $0x80] sm:$0xff] %vm249, %v1128
      %1149 = vst.msk [vmem:[#allocation2 + $0x88] sm:$0xff] %vm249, %v1129
      %1150 = vst.msk [vmem:[#allocation2 + $0x90] sm:$0xff] %vm249, %v1130
      %1151 = vst.msk [vmem:[#allocation2 + $0x98] sm:$0xff] %vm249, %v1131
      %s1152 = sadd.s32 %s241, 16
      %s1153 = sshra.s32 %s1152, 3
      %s1154 = sand.u32 %s1152, 7
      %s1155 = smul.addr %s1153, 4
      %s1156 = scalar_lea.vmem %s219, %s1155
      %v1157 = vld [vmem:[%s1156] sm:$0xf]
      %v1158 = vld [vmem:[%s1156 + $0x4] sm:$0xf]
      %v1159 = vld [vmem:[%s1156 + $0x8] sm:$0xf]
      %v1160 = vld [vmem:[%s1156 + $0xc] sm:$0xf]
      %v1161 = vld [vmem:[%s1156 + $0x10] sm:$0xf]
      %v1162 = vld [vmem:[%s1156 + $0x14] sm:$0xf]
      %v1163 = vld [vmem:[%s1156 + $0x18] sm:$0xf]
      %v1164 = vld [vmem:[%s1156 + $0x1c] sm:$0xf]
      %v1165 = vld [vmem:[%s1156 + $0x20] sm:$0xf]
      %v1166 = vld [vmem:[%s1156 + $0x24] sm:$0xf]
      %v1167 = vld [vmem:[%s1156 + $0x28] sm:$0xf]
      %v1168 = vld [vmem:[%s1156 + $0x2c] sm:$0xf]
      %v1169 = vld [vmem:[%s1156 + $0x30] sm:$0xf]
      %v1170 = vld [vmem:[%s1156 + $0x34] sm:$0xf]
      %v1171 = vld [vmem:[%s1156 + $0x38] sm:$0xf]
      %v1172 = vld [vmem:[%s1156 + $0x3c] sm:$0xf]
      %v1173 = vld [vmem:[%s1156 + $0x40] sm:$0xf]
      %v1174 = vld [vmem:[%s1156 + $0x44] sm:$0xf]
      %v1175 = vld [vmem:[%s1156 + $0x48] sm:$0xf]
      %v1176 = vld [vmem:[%s1156 + $0x4c] sm:$0xf]
      %v1177 = vld [vmem:[%s1156 + $0x50] sm:$0xf]
      %v1178 = vld [vmem:[#allocation2] sm:$0xff]
      %v1179 = vld [vmem:[#allocation2 + $0x8] sm:$0xff]
      %v1180 = vld [vmem:[#allocation2 + $0x10] sm:$0xff]
      %v1181 = vld [vmem:[#allocation2 + $0x18] sm:$0xff]
      %v1182 = vld [vmem:[#allocation2 + $0x20] sm:$0xff]
      %v1183 = vld [vmem:[#allocation2 + $0x28] sm:$0xff]
      %v1184 = vld [vmem:[#allocation2 + $0x30] sm:$0xff]
      %v1185 = vld [vmem:[#allocation2 + $0x38] sm:$0xff]
      %v1186 = vld [vmem:[#allocation2 + $0x40] sm:$0xff]
      %v1187 = vld [vmem:[#allocation2 + $0x48] sm:$0xff]
      %v1188 = vld [vmem:[#allocation2 + $0x50] sm:$0xff]
      %v1189 = vld [vmem:[#allocation2 + $0x58] sm:$0xff]
      %v1190 = vld [vmem:[#allocation2 + $0x60] sm:$0xff]
      %v1191 = vld [vmem:[#allocation2 + $0x68] sm:$0xff]
      %v1192 = vld [vmem:[#allocation2 + $0x70] sm:$0xff]
      %v1193 = vld [vmem:[#allocation2 + $0x78] sm:$0xff]
      %v1194 = vld [vmem:[#allocation2 + $0x80] sm:$0xff]
      %v1195 = vld [vmem:[#allocation2 + $0x88] sm:$0xff]
      %v1196 = vld [vmem:[#allocation2 + $0x90] sm:$0xff]
      %v1197 = vld [vmem:[#allocation2 + $0x98] sm:$0xff]
      %s1198 = scalar_lea.vmem %s223, 96
      %v1199 = vld [vmem:[%s1198] sm:$0xf]
      %v1200 = vld [vmem:[%s1198 + $0x4] sm:$0xf]
      %v1201 = vld [vmem:[%s1198 + $0x8] sm:$0xf]
      %v1202 = vld [vmem:[%s1198 + $0xc] sm:$0xf]
      %v1203 = vld [vmem:[%s1198 + $0x10] sm:$0xf]
      %v1204 = vld [vmem:[%s1198 + $0x14] sm:$0xf]
      %v1205 = vld [vmem:[%s1198 + $0x18] sm:$0xf]
      %v1206 = vld [vmem:[%s1198 + $0x1c] sm:$0xf]
      %v1227 = vunpack.c.l.b16 %v1157
      %v1228 = vunpack.c.l.b16 %v1158
      %v1229 = vunpack.c.l.b16 %v1159
      %v1230 = vunpack.c.l.b16 %v1160
      %v1231 = vunpack.c.l.b16 %v1161
      %v1232 = vunpack.c.l.b16 %v1162
      %v1233 = vunpack.c.l.b16 %v1163
      %v1234 = vunpack.c.l.b16 %v1164
      %v1235 = vunpack.c.l.b16 %v1165
      %v1236 = vunpack.c.l.b16 %v1166
      %v1237 = vunpack.c.l.b16 %v1167
      %v1238 = vunpack.c.l.b16 %v1168
      %v1239 = vunpack.c.l.b16 %v1169
      %v1240 = vunpack.c.l.b16 %v1170
      %v1241 = vunpack.c.l.b16 %v1171
      %v1242 = vunpack.c.l.b16 %v1172
      %v1243 = vunpack.c.l.b16 %v1173
      %v1244 = vunpack.c.l.b16 %v1174
      %v1245 = vunpack.c.l.b16 %v1175
      %v1246 = vunpack.c.l.b16 %v1176
      %v1247 = vpack.c.b16 %v1228, %v1227
      %v1248 = vpack.c.b16 %v1230, %v1229
      %v1249 = vpack.c.b16 %v1232, %v1231
      %v1250 = vpack.c.b16 %v1234, %v1233
      %v1251 = vpack.c.b16 %v1236, %v1235
      %v1252 = vpack.c.b16 %v1238, %v1237
      %v1253 = vpack.c.b16 %v1240, %v1239
      %v1254 = vpack.c.b16 %v1242, %v1241
      %v1255 = vpack.c.b16 %v1244, %v1243
      %v1256 = vpack.c.b16 %v1246, %v1245
      %v1265 = vunpack.c.l.b16 %v1199
      %v1266 = vunpack.c.l.b16 %v1200
      %v1267 = vunpack.c.l.b16 %v1201
      %v1268 = vunpack.c.l.b16 %v1202
      %v1269 = vunpack.c.l.b16 %v1203
      %v1270 = vunpack.c.l.b16 %v1204
      %v1271 = vunpack.c.l.b16 %v1205
      %v1272 = vunpack.c.l.b16 %v1206
      %v1273 = vpack.c.b16 %v1266, %v1265
      %v1274 = vpack.c.b16 %v1268, %v1267
      %v1275 = vpack.c.b16 %v1270, %v1269
      %v1276 = vpack.c.b16 %v1272, %v1271
      %v1282 = vsel %vm249, %v1247, 0
      %v1285 = vsel %vm249, %v1248, 0
      %v1288 = vsel %vm249, %v1249, 0
      %v1291 = vsel %vm249, %v1250, 0
      %v1294 = vsel %vm249, %v1251, 0
      %v1297 = vsel %vm249, %v1252, 0
      %v1300 = vsel %vm249, %v1253, 0
      %v1303 = vsel %vm249, %v1254, 0
      %v1306 = vsel %vm249, %v1255, 0
      %v1309 = vsel %vm249, %v1256, 0
      %1311 = vmatprep.subr.bf16.mxu0 0
      %1312 = vmatpush1.bf16.msra.mxu0 %v1273
      %1313 = vmatprep.subr.bf16.mxu0 0
      %1314 = vmatpush1.bf16.msra.mxu0 %v1274
      %1315 = vmatprep.subr.bf16.mxu0 0
      %1316 = vmatpush1.bf16.msra.mxu0 %v1275
      %1317 = vmatprep.subr.bf16.mxu0 0
      %1318 = vmatpush1.bf16.msra.mxu0 %v1276
      %1319 = vmatprep.subr.bf16.mxu0 0
      %1320 = vmatpush1.bf16.msra.mxu0 0
      %1321 = vmatprep.subr.bf16.mxu0 0
      %1322 = vmatpush1.bf16.msra.mxu0 0
      %1323 = vmatprep.subr.bf16.mxu0 0
      %1324 = vmatpush1.bf16.msra.mxu0 0
      %1325 = vmatprep.subr.bf16.mxu0 0
      %1326 = vmatpush1.bf16.msra.mxu0 0
      %1327 = vmatprep.subr.bf16.mxu0 0
      %1328 = vmatpush1.bf16.msra.mxu0 0
      %1329 = vmatprep.subr.bf16.mxu0 0
      %1330 = vmatpush1.bf16.msra.mxu0 0
      %1331 = vmatprep.subr.bf16.mxu0 0
      %1332 = vmatpush1.bf16.msra.mxu0 0
      %1333 = vmatprep.subr.bf16.mxu0 0
      %1334 = vmatpush1.bf16.msra.mxu0 0
      %1335 = vmatprep.subr.bf16.mxu0 0
      %1336 = vmatpush1.bf16.msra.mxu0 0
      %1337 = vmatprep.subr.bf16.mxu0 0
      %1338 = vmatpush1.bf16.msra.mxu0 0
      %1339 = vmatprep.subr.bf16.mxu0 0
      %1340 = vmatpush1.bf16.msra.mxu0 0
      %1341 = vmatprep.subr.bf16.mxu0 0
      %1342 = vmatpush1.bf16.msra.mxu0 0
      %1343 = vmatprep.mubr.bf16.mxu0 0
      %1344 = vmatmul.mubr.bf16.gmra.mrb[0].mxu0 %v1282
      %v1345 = vpop.f32.mrb[0].mxu0
      %v1346 = vadd.f32 0.0, %v1345
      %v1347 = vpop.f32.mrb[0].mxu0
      %v1348 = vpop.f32.mrb[0].mxu0
      %v1349 = vadd.f32 0.0, %v1348
      %v1350 = vpop.f32.mrb[0].mxu0
      %1351 = vmatprep.mubr.bf16.mxu0 0
      %1352 = vmatmul.mubr.bf16.gmra.mrb[0].mxu0 %v1285
      %v1353 = vpop.f32.mrb[0].mxu0
      %v1354 = vadd.f32 0.0, %v1353
      %v1355 = vpop.f32.mrb[0].mxu0
      %v1356 = vpop.f32.mrb[0].mxu0
      %v1357 = vadd.f32 0.0, %v1356
      %v1358 = vpop.f32.mrb[0].mxu0
      %1359 = vmatprep.mubr.bf16.mxu0 0
      %1360 = vmatmul.mubr.bf16.gmra.mrb[0].mxu0 %v1288
      %v1361 = vpop.f32.mrb[0].mxu0
      %v1362 = vadd.f32 0.0, %v1361
      %v1363 = vpop.f32.mrb[0].mxu0
      %v1364 = vpop.f32.mrb[0].mxu0
      %v1365 = vadd.f32 0.0, %v1364
      %v1366 = vpop.f32.mrb[0].mxu0
      %1367 = vmatprep.mubr.bf16.mxu0 0
      %1368 = vmatmul.mubr.bf16.gmra.mrb[0].mxu0 %v1291
      %v1369 = vpop.f32.mrb[0].mxu0
      %v1370 = vadd.f32 0.0, %v1369
      %v1371 = vpop.f32.mrb[0].mxu0
      %v1372 = vpop.f32.mrb[0].mxu0
      %v1373 = vadd.f32 0.0, %v1372
      %v1374 = vpop.f32.mrb[0].mxu0
      %1375 = vmatprep.mubr.bf16.mxu0 0
      %1376 = vmatmul.mubr.bf16.gmra.mrb[0].mxu0 %v1294
      %v1377 = vpop.f32.mrb[0].mxu0
      %v1378 = vadd.f32 0.0, %v1377
      %v1379 = vpop.f32.mrb[0].mxu0
      %v1380 = vpop.f32.mrb[0].mxu0
      %v1381 = vadd.f32 0.0, %v1380
      %v1382 = vpop.f32.mrb[0].mxu0
      %1383 = vmatprep.mubr.bf16.mxu0 0
      %1384 = vmatmul.mubr.bf16.gmra.mrb[0].mxu0 %v1297
      %v1385 = vpop.f32.mrb[0].mxu0
      %v1386 = vadd.f32 0.0, %v1385
      %v1387 = vpop.f32.mrb[0].mxu0
      %v1388 = vpop.f32.mrb[0].mxu0
      %v1389 = vadd.f32 0.0, %v1388
      %v1390 = vpop.f32.mrb[0].mxu0
      %1391 = vmatprep.mubr.bf16.mxu0 0
      %1392 = vmatmul.mubr.bf16.gmra.mrb[0].mxu0 %v1300
      %v1393 = vpop.f32.mrb[0].mxu0
      %v1394 = vadd.f32 0.0, %v1393
      %v1395 = vpop.f32.mrb[0].mxu0
      %v1396 = vpop.f32.mrb[0].mxu0
      %v1397 = vadd.f32 0.0, %v1396
      %v1398 = vpop.f32.mrb[0].mxu0
      %1399 = vmatprep.mubr.bf16.mxu0 0
      %1400 = vmatmul.mubr.bf16.gmra.mrb[0].mxu0 %v1303
      %v1401 = vpop.f32.mrb[0].mxu0
      %v1402 = vadd.f32 0.0, %v1401
      %v1403 = vpop.f32.mrb[0].mxu0
      %v1404 = vpop.f32.mrb[0].mxu0
      %v1405 = vadd.f32 0.0, %v1404
      %v1406 = vpop.f32.mrb[0].mxu0
      %1407 = vmatprep.mubr.bf16.mxu0 0
      %1408 = vmatmul.mubr.bf16.gmra.mrb[0].mxu0 %v1306
      %v1409 = vpop.f32.mrb[0].mxu0
      %v1410 = vadd.f32 0.0, %v1409
      %v1411 = vpop.f32.mrb[0].mxu0
      %v1412 = vpop.f32.mrb[0].mxu0
      %v1413 = vadd.f32 0.0, %v1412
      %v1414 = vpop.f32.mrb[0].mxu0
      %1415 = vmatprep.mubr.bf16.mxu0 0
      %1416 = vmatmul.mubr.bf16.gmra.mrb[0].mxu0 %v1309
      %v1417 = vpop.f32.mrb[0].mxu0
      %v1418 = vadd.f32 0.0, %v1417
      %v1419 = vpop.f32.mrb[0].mxu0
      %v1420 = vpop.f32.mrb[0].mxu0
      %v1421 = vadd.f32 0.0, %v1420
      %v1422 = vpop.f32.mrb[0].mxu0
      %1423 = vdwg.mxu0
      %v1424 = vadd.f32 %v1178, %v1346
      %v1425 = vadd.f32 %v1179, %v1349
      %v1426 = vadd.f32 %v1180, %v1354
      %v1427 = vadd.f32 %v1181, %v1357
      %v1428 = vadd.f32 %v1182, %v1362
      %v1429 = vadd.f32 %v1183, %v1365
      %v1430 = vadd.f32 %v1184, %v1370
      %v1431 = vadd.f32 %v1185, %v1373
      %v1432 = vadd.f32 %v1186, %v1378
      %v1433 = vadd.f32 %v1187, %v1381
      %v1434 = vadd.f32 %v1188, %v1386
      %v1435 = vadd.f32 %v1189, %v1389
      %v1436 = vadd.f32 %v1190, %v1394
      %v1437 = vadd.f32 %v1191, %v1397
      %v1438 = vadd.f32 %v1192, %v1402
      %v1439 = vadd.f32 %v1193, %v1405
      %v1440 = vadd.f32 %v1194, %v1410
      %v1441 = vadd.f32 %v1195, %v1413
      %v1442 = vadd.f32 %v1196, %v1418
      %v1443 = vadd.f32 %v1197, %v1421
      %1444 = vst.msk [vmem:[#allocation2] sm:$0xff] %vm249, %v1424
      %1445 = vst.msk [vmem:[#allocation2 + $0x8] sm:$0xff] %vm249, %v1425
      %1446 = vst.msk [vmem:[#allocation2 + $0x10] sm:$0xff] %vm249, %v1426
      %1447 = vst.msk [vmem:[#allocation2 + $0x18] sm:$0xff] %vm249, %v1427
      %1448 = vst.msk [vmem:[#allocation2 + $0x20] sm:$0xff] %vm249, %v1428
      %1449 = vst.msk [vmem:[#allocation2 + $0x28] sm:$0xff] %vm249, %v1429
      %1450 = vst.msk [vmem:[#allocation2 + $0x30] sm:$0xff] %vm249, %v1430
      %1451 = vst.msk [vmem:[#allocation2 + $0x38] sm:$0xff] %vm249, %v1431
      %1452 = vst.msk [vmem:[#allocation2 + $0x40] sm:$0xff] %vm249, %v1432
      %1453 = vst.msk [vmem:[#allocation2 + $0x48] sm:$0xff] %vm249, %v1433
      %1454 = vst.msk [vmem:[#allocation2 + $0x50] sm:$0xff] %vm249, %v1434
      %1455 = vst.msk [vmem:[#allocation2 + $0x58] sm:$0xff] %vm249, %v1435
      %1456 = vst.msk [vmem:[#allocation2 + $0x60] sm:$0xff] %vm249, %v1436
      %1457 = vst.msk [vmem:[#allocation2 + $0x68] sm:$0xff] %vm249, %v1437
      %1458 = vst.msk [vmem:[#allocation2 + $0x70] sm:$0xff] %vm249, %v1438
      %1459 = vst.msk [vmem:[#allocation2 + $0x78] sm:$0xff] %vm249, %v1439
      %1460 = vst.msk [vmem:[#allocation2 + $0x80] sm:$0xff] %vm249, %v1440
      %1461 = vst.msk [vmem:[#allocation2 + $0x88] sm:$0xff] %vm249, %v1441
      %1462 = vst.msk [vmem:[#allocation2 + $0x90] sm:$0xff] %vm249, %v1442
      %1463 = vst.msk [vmem:[#allocation2 + $0x98] sm:$0xff] %vm249, %v1443
      %v1464 = vld [vmem:[#allocation2] sm:$0xff]
      %v1465 = vld [vmem:[#allocation2 + $0x8] sm:$0xff]
      %v1466 = vld [vmem:[#allocation2 + $0x10] sm:$0xff]
      %v1467 = vld [vmem:[#allocation2 + $0x18] sm:$0xff]
      %v1468 = vld [vmem:[#allocation2 + $0x20] sm:$0xff]
      %v1469 = vld [vmem:[#allocation2 + $0x28] sm:$0xff]
      %v1470 = vld [vmem:[#allocation2 + $0x30] sm:$0xff]
      %v1471 = vld [vmem:[#allocation2 + $0x38] sm:$0xff]
      %v1472 = vld [vmem:[#allocation2 + $0x40] sm:$0xff]
      %v1473 = vld [vmem:[#allocation2 + $0x48] sm:$0xff]
      %v1474 = vld [vmem:[#allocation2 + $0x50] sm:$0xff]
      %v1475 = vld [vmem:[#allocation2 + $0x58] sm:$0xff]
      %v1476 = vld [vmem:[#allocation2 + $0x60] sm:$0xff]
      %v1477 = vld [vmem:[#allocation2 + $0x68] sm:$0xff]
      %v1478 = vld [vmem:[#allocation2 + $0x70] sm:$0xff]
      %v1479 = vld [vmem:[#allocation2 + $0x78] sm:$0xff]
      %v1480 = vld [vmem:[#allocation2 + $0x80] sm:$0xff]
      %v1481 = vld [vmem:[#allocation2 + $0x88] sm:$0xff]
      %v1482 = vld [vmem:[#allocation2 + $0x90] sm:$0xff]
      %v1483 = vld [vmem:[#allocation2 + $0x98] sm:$0xff]
      %s1484 = scalar_lea.vmem %s223, 128
      %v1485 = vld [vmem:[%s1484] sm:$0xf]
      %v1486 = vld [vmem:[%s1484 + $0x4] sm:$0xf]
      %v1487 = vld [vmem:[%s1484 + $0x8] sm:$0xf]
      %v1488 = vld [vmem:[%s1484 + $0xc] sm:$0xf]
      %v1489 = vld [vmem:[%s1484 + $0x10] sm:$0xf]
      %v1490 = vld [vmem:[%s1484 + $0x14] sm:$0xf]
      %v1491 = vld [vmem:[%s1484 + $0x18] sm:$0xf]
      %v1492 = vld [vmem:[%s1484 + $0x1c] sm:$0xf]
      %v1494 = vunpack.c.l.b16 %v1177
      %v1495 = vpack.c.b16 %v1494, %v1494
      %v1496 = vshrl.u32 %v1247, 16
      %v1498 = vshll.u32 %v1247, 16
      %v1500 = vrot.slane %v1498, 1
      %v1501 = vor.u32 %v1496, %v1500
      %v1502 = vshll.u32 %v1248, 16
      %v1504 = vrot.slane %v1502, 1
      %v1505 = vsel %vm612, %v1501, %v1504
      %v1506 = vshrl.u32 %v1248, 16
      %v1508 = vor.u32 %v1506, %v1504
      %v1509 = vshll.u32 %v1249, 16
      %v1511 = vrot.slane %v1509, 1
      %v1512 = vsel %vm612, %v1508, %v1511
      %v1513 = vshrl.u32 %v1249, 16
      %v1515 = vor.u32 %v1513, %v1511
      %v1516 = vshll.u32 %v1250, 16
      %v1518 = vrot.slane %v1516, 1
      %v1519 = vsel %vm612, %v1515, %v1518
      %v1520 = vshrl.u32 %v1250, 16
      %v1522 = vor.u32 %v1520, %v1518
      %v1523 = vshll.u32 %v1251, 16
      %v1525 = vrot.slane %v1523, 1
      %v1526 = vsel %vm612, %v1522, %v1525
      %v1527 = vshrl.u32 %v1251, 16
      %v1529 = vor.u32 %v1527, %v1525
      %v1530 = vshll.u32 %v1252, 16
      %v1532 = vrot.slane %v1530, 1
      %v1533 = vsel %vm612, %v1529, %v1532
      %v1534 = vshrl.u32 %v1252, 16
      %v1536 = vor.u32 %v1534, %v1532
      %v1537 = vshll.u32 %v1253, 16
      %v1539 = vrot.slane %v1537, 1
      %v1540 = vsel %vm612, %v1536, %v1539
      %v1541 = vshrl.u32 %v1253, 16
      %v1543 = vor.u32 %v1541, %v1539
      %v1544 = vshll.u32 %v1254, 16
      %v1546 = vrot.slane %v1544, 1
      %v1547 = vsel %vm612, %v1543, %v1546
      %v1548 = vshrl.u32 %v1254, 16
      %v1550 = vor.u32 %v1548, %v1546
      %v1551 = vshll.u32 %v1255, 16
      %v1553 = vrot.slane %v1551, 1
      %v1554 = vsel %vm612, %v1550, %v1553
      %v1555 = vshrl.u32 %v1255, 16
      %v1557 = vor.u32 %v1555, %v1553
      %v1558 = vshll.u32 %v1256, 16
      %v1560 = vrot.slane %v1558, 1
      %v1561 = vsel %vm612, %v1557, %v1560
      %v1562 = vshrl.u32 %v1256, 16
      %v1564 = vor.u32 %v1562, %v1560
      %v1566 = vshll.u32 %v1495, 16
      %v1568 = vrot.slane %v1566, 1
      %v1569 = vsel %vm612, %v1564, %v1568
      %v1578 = vunpack.c.l.b16 %v1485
      %v1579 = vunpack.c.l.b16 %v1486
      %v1580 = vunpack.c.l.b16 %v1487
      %v1581 = vunpack.c.l.b16 %v1488
      %v1582 = vunpack.c.l.b16 %v1489
      %v1583 = vunpack.c.l.b16 %v1490
      %v1584 = vunpack.c.l.b16 %v1491
      %v1585 = vunpack.c.l.b16 %v1492
      %v1586 = vpack.c.b16 %v1579, %v1578
      %v1587 = vpack.c.b16 %v1581, %v1580
      %v1588 = vpack.c.b16 %v1583, %v1582
      %v1589 = vpack.c.b16 %v1585, %v1584
      %v1595 = vsel %vm249, %v1505, 0
      %v1598 = vsel %vm249, %v1512, 0
      %v1601 = vsel %vm249, %v1519, 0
      %v1604 = vsel %vm249, %v1526, 0
      %v1607 = vsel %vm249, %v1533, 0
      %v1610 = vsel %vm249, %v1540, 0
      %v1613 = vsel %vm249, %v1547, 0
      %v1616 = vsel %vm249, %v1554, 0
      %v1619 = vsel %vm249, %v1561, 0
      %v1622 = vsel %vm249, %v1569, 0
      %1624 = vmatprep.subr.bf16.mxu0 0
      %1625 = vmatpush1.bf16.msra.mxu0 %v1586
      %1626 = vmatprep.subr.bf16.mxu0 0
      %1627 = vmatpush1.bf16.msra.mxu0 %v1587
      %1628 = vmatprep.subr.bf16.mxu0 0
      %1629 = vmatpush1.bf16.msra.mxu0 %v1588
      %1630 = vmatprep.subr.bf16.mxu0 0
      %1631 = vmatpush1.bf16.msra.mxu0 %v1589
      %1632 = vmatprep.subr.bf16.mxu0 0
      %1633 = vmatpush1.bf16.msra.mxu0 0
      %1634 = vmatprep.subr.bf16.mxu0 0
      %1635 = vmatpush1.bf16.msra.mxu0 0
      %1636 = vmatprep.subr.bf16.mxu0 0
      %1637 = vmatpush1.bf16.msra.mxu0 0
      %1638 = vmatprep.subr.bf16.mxu0 0
      %1639 = vmatpush1.bf16.msra.mxu0 0
      %1640 = vmatprep.subr.bf16.mxu0 0
      %1641 = vmatpush1.bf16.msra.mxu0 0
      %1642 = vmatprep.subr.bf16.mxu0 0
      %1643 = vmatpush1.bf16.msra.mxu0 0
      %1644 = vmatprep.subr.bf16.mxu0 0
      %1645 = vmatpush1.bf16.msra.mxu0 0
      %1646 = vmatprep.subr.bf16.mxu0 0
      %1647 = vmatpush1.bf16.msra.mxu0 0
      %1648 = vmatprep.subr.bf16.mxu0 0
      %1649 = vmatpush1.bf16.msra.mxu0 0
      %1650 = vmatprep.subr.bf16.mxu0 0
      %1651 = vmatpush1.bf16.msra.mxu0 0
      %1652 = vmatprep.subr.bf16.mxu0 0
      %1653 = vmatpush1.bf16.msra.mxu0 0
      %1654 = vmatprep.subr.bf16.mxu0 0
      %1655 = vmatpush1.bf16.msra.mxu0 0
      %1656 = vmatprep.mubr.bf16.mxu0 0
      %1657 = vmatmul.mubr.bf16.gmra.mrb[0].mxu0 %v1595
      %v1658 = vpop.f32.mrb[0].mxu0
      %v1659 = vadd.f32 0.0, %v1658
      %v1660 = vpop.f32.mrb[0].mxu0
      %v1661 = vpop.f32.mrb[0].mxu0
      %v1662 = vadd.f32 0.0, %v1661
      %v1663 = vpop.f32.mrb[0].mxu0
      %1664 = vmatprep.mubr.bf16.mxu0 0
      %1665 = vmatmul.mubr.bf16.gmra.mrb[0].mxu0 %v1598
      %v1666 = vpop.f32.mrb[0].mxu0
      %v1667 = vadd.f32 0.0, %v1666
      %v1668 = vpop.f32.mrb[0].mxu0
      %v1669 = vpop.f32.mrb[0].mxu0
      %v1670 = vadd.f32 0.0, %v1669
      %v1671 = vpop.f32.mrb[0].mxu0
      %1672 = vmatprep.mubr.bf16.mxu0 0
      %1673 = vmatmul.mubr.bf16.gmra.mrb[0].mxu0 %v1601
      %v1674 = vpop.f32.mrb[0].mxu0
      %v1675 = vadd.f32 0.0, %v1674
      %v1676 = vpop.f32.mrb[0].mxu0
      %v1677 = vpop.f32.mrb[0].mxu0
      %v1678 = vadd.f32 0.0, %v1677
      %v1679 = vpop.f32.mrb[0].mxu0
      %1680 = vmatprep.mubr.bf16.mxu0 0
      %1681 = vmatmul.mubr.bf16.gmra.mrb[0].mxu0 %v1604
      %v1682 = vpop.f32.mrb[0].mxu0
      %v1683 = vadd.f32 0.0, %v1682
      %v1684 = vpop.f32.mrb[0].mxu0
      %v1685 = vpop.f32.mrb[0].mxu0
      %v1686 = vadd.f32 0.0, %v1685
      %v1687 = vpop.f32.mrb[0].mxu0
      %1688 = vmatprep.mubr.bf16.mxu0 0
      %1689 = vmatmul.mubr.bf16.gmra.mrb[0].mxu0 %v1607
      %v1690 = vpop.f32.mrb[0].mxu0
      %v1691 = vadd.f32 0.0, %v1690
      %v1692 = vpop.f32.mrb[0].mxu0
      %v1693 = vpop.f32.mrb[0].mxu0
      %v1694 = vadd.f32 0.0, %v1693
      %v1695 = vpop.f32.mrb[0].mxu0
      %1696 = vmatprep.mubr.bf16.mxu0 0
      %1697 = vmatmul.mubr.bf16.gmra.mrb[0].mxu0 %v1610
      %v1698 = vpop.f32.mrb[0].mxu0
      %v1699 = vadd.f32 0.0, %v1698
      %v1700 = vpop.f32.mrb[0].mxu0
      %v1701 = vpop.f32.mrb[0].mxu0
      %v1702 = vadd.f32 0.0, %v1701
      %v1703 = vpop.f32.mrb[0].mxu0
      %1704 = vmatprep.mubr.bf16.mxu0 0
      %1705 = vmatmul.mubr.bf16.gmra.mrb[0].mxu0 %v1613
      %v1706 = vpop.f32.mrb[0].mxu0
      %v1707 = vadd.f32 0.0, %v1706
      %v1708 = vpop.f32.mrb[0].mxu0
      %v1709 = vpop.f32.mrb[0].mxu0
      %v1710 = vadd.f32 0.0, %v1709
      %v1711 = vpop.f32.mrb[0].mxu0
      %1712 = vmatprep.mubr.bf16.mxu0 0
      %1713 = vmatmul.mubr.bf16.gmra.mrb[0].mxu0 %v1616
      %v1714 = vpop.f32.mrb[0].mxu0
      %v1715 = vadd.f32 0.0, %v1714
      %v1716 = vpop.f32.mrb[0].mxu0
      %v1717 = vpop.f32.mrb[0].mxu0
      %v1718 = vadd.f32 0.0, %v1717
      %v1719 = vpop.f32.mrb[0].mxu0
      %1720 = vmatprep.mubr.bf16.mxu0 0
      %1721 = vmatmul.mubr.bf16.gmra.mrb[0].mxu0 %v1619
      %v1722 = vpop.f32.mrb[0].mxu0
      %v1723 = vadd.f32 0.0, %v1722
      %v1724 = vpop.f32.mrb[0].mxu0
      %v1725 = vpop.f32.mrb[0].mxu0
      %v1726 = vadd.f32 0.0, %v1725
      %v1727 = vpop.f32.mrb[0].mxu0
      %1728 = vmatprep.mubr.bf16.mxu0 0
      %1729 = vmatmul.mubr.bf16.gmra.mrb[0].mxu0 %v1622
      %v1730 = vpop.f32.mrb[0].mxu0
      %v1731 = vadd.f32 0.0, %v1730
      %v1732 = vpop.f32.mrb[0].mxu0
      %v1733 = vpop.f32.mrb[0].mxu0
      %v1734 = vadd.f32 0.0, %v1733
      %v1735 = vpop.f32.mrb[0].mxu0
      %1736 = vdwg.mxu0
      %v1737 = vadd.f32 %v1464, %v1659
      %v1738 = vadd.f32 %v1465, %v1662
      %v1739 = vadd.f32 %v1466, %v1667
      %v1740 = vadd.f32 %v1467, %v1670
      %v1741 = vadd.f32 %v1468, %v1675
      %v1742 = vadd.f32 %v1469, %v1678
      %v1743 = vadd.f32 %v1470, %v1683
      %v1744 = vadd.f32 %v1471, %v1686
      %v1745 = vadd.f32 %v1472, %v1691
      %v1746 = vadd.f32 %v1473, %v1694
      %v1747 = vadd.f32 %v1474, %v1699
      %v1748 = vadd.f32 %v1475, %v1702
      %v1749 = vadd.f32 %v1476, %v1707
      %v1750 = vadd.f32 %v1477, %v1710
      %v1751 = vadd.f32 %v1478, %v1715
      %v1752 = vadd.f32 %v1479, %v1718
      %v1753 = vadd.f32 %v1480, %v1723
      %v1754 = vadd.f32 %v1481, %v1726
      %v1755 = vadd.f32 %v1482, %v1731
      %v1756 = vadd.f32 %v1483, %v1734
      %1757 = vst.msk [vmem:[#allocation2] sm:$0xff] %vm249, %v1737
      %1758 = vst.msk [vmem:[#allocation2 + $0x8] sm:$0xff] %vm249, %v1738
      %1759 = vst.msk [vmem:[#allocation2 + $0x10] sm:$0xff] %vm249, %v1739
      %1760 = vst.msk [vmem:[#allocation2 + $0x18] sm:$0xff] %vm249, %v1740
      %1761 = vst.msk [vmem:[#allocation2 + $0x20] sm:$0xff] %vm249, %v1741
      %1762 = vst.msk [vmem:[#allocation2 + $0x28] sm:$0xff] %vm249, %v1742
      %1763 = vst.msk [vmem:[#allocation2 + $0x30] sm:$0xff] %vm249, %v1743
      %1764 = vst.msk [vmem:[#allocation2 + $0x38] sm:$0xff] %vm249, %v1744
      %1765 = vst.msk [vmem:[#allocation2 + $0x40] sm:$0xff] %vm249, %v1745
      %1766 = vst.msk [vmem:[#allocation2 + $0x48] sm:$0xff] %vm249, %v1746
      %1767 = vst.msk [vmem:[#allocation2 + $0x50] sm:$0xff] %vm249, %v1747
      %1768 = vst.msk [vmem:[#allocation2 + $0x58] sm:$0xff] %vm249, %v1748
      %1769 = vst.msk [vmem:[#allocation2 + $0x60] sm:$0xff] %vm249, %v1749
      %1770 = vst.msk [vmem:[#allocation2 + $0x68] sm:$0xff] %vm249, %v1750
      %1771 = vst.msk [vmem:[#allocation2 + $0x70] sm:$0xff] %vm249, %v1751
      %1772 = vst.msk [vmem:[#allocation2 + $0x78] sm:$0xff] %vm249, %v1752
      %1773 = vst.msk [vmem:[#allocation2 + $0x80] sm:$0xff] %vm249, %v1753
      %1774 = vst.msk [vmem:[#allocation2 + $0x88] sm:$0xff] %vm249, %v1754
      %1775 = vst.msk [vmem:[#allocation2 + $0x90] sm:$0xff] %vm249, %v1755
      %1776 = vst.msk [vmem:[#allocation2 + $0x98] sm:$0xff] %vm249, %v1756
      %v1777 = vld [vmem:[#allocation2] sm:$0xff]
      %v1778 = vld [vmem:[#allocation2 + $0x8] sm:$0xff]
      %v1779 = vld [vmem:[#allocation2 + $0x10] sm:$0xff]
      %v1780 = vld [vmem:[#allocation2 + $0x18] sm:$0xff]
      %v1781 = vld [vmem:[#allocation2 + $0x20] sm:$0xff]
      %v1782 = vld [vmem:[#allocation2 + $0x28] sm:$0xff]
      %v1783 = vld [vmem:[#allocation2 + $0x30] sm:$0xff]
      %v1784 = vld [vmem:[#allocation2 + $0x38] sm:$0xff]
      %v1785 = vld [vmem:[#allocation2 + $0x40] sm:$0xff]
      %v1786 = vld [vmem:[#allocation2 + $0x48] sm:$0xff]
      %v1787 = vld [vmem:[#allocation2 + $0x50] sm:$0xff]
      %v1788 = vld [vmem:[#allocation2 + $0x58] sm:$0xff]
      %v1789 = vld [vmem:[#allocation2 + $0x60] sm:$0xff]
      %v1790 = vld [vmem:[#allocation2 + $0x68] sm:$0xff]
      %v1791 = vld [vmem:[#allocation2 + $0x70] sm:$0xff]
      %v1792 = vld [vmem:[#allocation2 + $0x78] sm:$0xff]
      %v1793 = vld [vmem:[#allocation2 + $0x80] sm:$0xff]
      %v1794 = vld [vmem:[#allocation2 + $0x88] sm:$0xff]
      %v1795 = vld [vmem:[#allocation2 + $0x90] sm:$0xff]
      %v1796 = vld [vmem:[#allocation2 + $0x98] sm:$0xff]
      %s1797 = scalar_lea.vmem %s223, 160
      %v1798 = vld [vmem:[%s1797] sm:$0xf]
      %v1799 = vld [vmem:[%s1797 + $0x4] sm:$0xf]
      %v1800 = vld [vmem:[%s1797 + $0x8] sm:$0xf]
      %v1801 = vld [vmem:[%s1797 + $0xc] sm:$0xf]
      %v1802 = vld [vmem:[%s1797 + $0x10] sm:$0xf]
      %v1803 = vld [vmem:[%s1797 + $0x14] sm:$0xf]
      %v1804 = vld [vmem:[%s1797 + $0x18] sm:$0xf]
      %v1805 = vld [vmem:[%s1797 + $0x1c] sm:$0xf]
      %v1806 = vrot.slane %v1247, 1
      %v1807 = vrot.slane %v1248, 1
      %v1808 = vsel %vm923, %v1806, %v1807
      %v1809 = vrot.slane %v1249, 1
      %v1810 = vsel %vm923, %v1807, %v1809
      %v1811 = vrot.slane %v1250, 1
      %v1812 = vsel %vm923, %v1809, %v1811
      %v1813 = vrot.slane %v1251, 1
      %v1814 = vsel %vm923, %v1811, %v1813
      %v1815 = vrot.slane %v1252, 1
      %v1816 = vsel %vm923, %v1813, %v1815
      %v1817 = vrot.slane %v1253, 1
      %v1818 = vsel %vm923, %v1815, %v1817
      %v1819 = vrot.slane %v1254, 1
      %v1820 = vsel %vm923, %v1817, %v1819
      %v1821 = vrot.slane %v1255, 1
      %v1822 = vsel %vm923, %v1819, %v1821
      %v1823 = vrot.slane %v1256, 1
      %v1824 = vsel %vm923, %v1821, %v1823
      %v1825 = vrot.slane %v1495, 1
      %v1826 = vsel %vm923, %v1823, %v1825
      %v1835 = vunpack.c.l.b16 %v1798
      %v1836 = vunpack.c.l.b16 %v1799
      %v1837 = vunpack.c.l.b16 %v1800
      %v1838 = vunpack.c.l.b16 %v1801
      %v1839 = vunpack.c.l.b16 %v1802
      %v1840 = vunpack.c.l.b16 %v1803
      %v1841 = vunpack.c.l.b16 %v1804
      %v1842 = vunpack.c.l.b16 %v1805
      %v1843 = vpack.c.b16 %v1836, %v1835
      %v1844 = vpack.c.b16 %v1838, %v1837
      %v1845 = vpack.c.b16 %v1840, %v1839
      %v1846 = vpack.c.b16 %v1842, %v1841
      %v1852 = vsel %vm249, %v1808, 0
      %v1855 = vsel %vm249, %v1810, 0
      %v1858 = vsel %vm249, %v1812, 0
      %v1861 = vsel %vm249, %v1814, 0
      %v1864 = vsel %vm249, %v1816, 0
      %v1867 = vsel %vm249, %v1818, 0
      %v1870 = vsel %vm249, %v1820, 0
      %v1873 = vsel %vm249, %v1822, 0
      %v1876 = vsel %vm249, %v1824, 0
      %v1879 = vsel %vm249, %v1826, 0
      %1881 = vmatprep.subr.bf16.mxu0 0
      %1882 = vmatpush1.bf16.msra.mxu0 %v1843
      %1883 = vmatprep.subr.bf16.mxu0 0
      %1884 = vmatpush1.bf16.msra.mxu0 %v1844
      %1885 = vmatprep.subr.bf16.mxu0 0
      %1886 = vmatpush1.bf16.msra.mxu0 %v1845
      %1887 = vmatprep.subr.bf16.mxu0 0
      %1888 = vmatpush1.bf16.msra.mxu0 %v1846
      %1889 = vmatprep.subr.bf16.mxu0 0
      %1890 = vmatpush1.bf16.msra.mxu0 0
      %1891 = vmatprep.subr.bf16.mxu0 0
      %1892 = vmatpush1.bf16.msra.mxu0 0
      %1893 = vmatprep.subr.bf16.mxu0 0
      %1894 = vmatpush1.bf16.msra.mxu0 0
      %1895 = vmatprep.subr.bf16.mxu0 0
      %1896 = vmatpush1.bf16.msra.mxu0 0
      %1897 = vmatprep.subr.bf16.mxu0 0
      %1898 = vmatpush1.bf16.msra.mxu0 0
      %1899 = vmatprep.subr.bf16.mxu0 0
      %1900 = vmatpush1.bf16.msra.mxu0 0
      %1901 = vmatprep.subr.bf16.mxu0 0
      %1902 = vmatpush1.bf16.msra.mxu0 0
      %1903 = vmatprep.subr.bf16.mxu0 0
      %1904 = vmatpush1.bf16.msra.mxu0 0
      %1905 = vmatprep.subr.bf16.mxu0 0
      %1906 = vmatpush1.bf16.msra.mxu0 0
      %1907 = vmatprep.subr.bf16.mxu0 0
      %1908 = vmatpush1.bf16.msra.mxu0 0
      %1909 = vmatprep.subr.bf16.mxu0 0
      %1910 = vmatpush1.bf16.msra.mxu0 0
      %1911 = vmatprep.subr.bf16.mxu0 0
      %1912 = vmatpush1.bf16.msra.mxu0 0
      %1913 = vmatprep.mubr.bf16.mxu0 0
      %1914 = vmatmul.mubr.bf16.gmra.mrb[0].mxu0 %v1852
      %v1915 = vpop.f32.mrb[0].mxu0
      %v1916 = vadd.f32 0.0, %v1915
      %v1917 = vpop.f32.mrb[0].mxu0
      %v1918 = vpop.f32.mrb[0].mxu0
      %v1919 = vadd.f32 0.0, %v1918
      %v1920 = vpop.f32.mrb[0].mxu0
      %1921 = vmatprep.mubr.bf16.mxu0 0
      %1922 = vmatmul.mubr.bf16.gmra.mrb[0].mxu0 %v1855
      %v1923 = vpop.f32.mrb[0].mxu0
      %v1924 = vadd.f32 0.0, %v1923
      %v1925 = vpop.f32.mrb[0].mxu0
      %v1926 = vpop.f32.mrb[0].mxu0
      %v1927 = vadd.f32 0.0, %v1926
      %v1928 = vpop.f32.mrb[0].mxu0
      %1929 = vmatprep.mubr.bf16.mxu0 0
      %1930 = vmatmul.mubr.bf16.gmra.mrb[0].mxu0 %v1858
      %v1931 = vpop.f32.mrb[0].mxu0
      %v1932 = vadd.f32 0.0, %v1931
      %v1933 = vpop.f32.mrb[0].mxu0
      %v1934 = vpop.f32.mrb[0].mxu0
      %v1935 = vadd.f32 0.0, %v1934
      %v1936 = vpop.f32.mrb[0].mxu0
      %1937 = vmatprep.mubr.bf16.mxu0 0
      %1938 = vmatmul.mubr.bf16.gmra.mrb[0].mxu0 %v1861
      %v1939 = vpop.f32.mrb[0].mxu0
      %v1940 = vadd.f32 0.0, %v1939
      %v1941 = vpop.f32.mrb[0].mxu0
      %v1942 = vpop.f32.mrb[0].mxu0
      %v1943 = vadd.f32 0.0, %v1942
      %v1944 = vpop.f32.mrb[0].mxu0
      %1945 = vmatprep.mubr.bf16.mxu0 0
      %1946 = vmatmul.mubr.bf16.gmra.mrb[0].mxu0 %v1864
      %v1947 = vpop.f32.mrb[0].mxu0
      %v1948 = vadd.f32 0.0, %v1947
      %v1949 = vpop.f32.mrb[0].mxu0
      %v1950 = vpop.f32.mrb[0].mxu0
      %v1951 = vadd.f32 0.0, %v1950
      %v1952 = vpop.f32.mrb[0].mxu0
      %1953 = vmatprep.mubr.bf16.mxu0 0
      %1954 = vmatmul.mubr.bf16.gmra.mrb[0].mxu0 %v1867
      %v1955 = vpop.f32.mrb[0].mxu0
      %v1956 = vadd.f32 0.0, %v1955
      %v1957 = vpop.f32.mrb[0].mxu0
      %v1958 = vpop.f32.mrb[0].mxu0
      %v1959 = vadd.f32 0.0, %v1958
      %v1960 = vpop.f32.mrb[0].mxu0
      %1961 = vmatprep.mubr.bf16.mxu0 0
      %1962 = vmatmul.mubr.bf16.gmra.mrb[0].mxu0 %v1870
      %v1963 = vpop.f32.mrb[0].mxu0
      %v1964 = vadd.f32 0.0, %v1963
      %v1965 = vpop.f32.mrb[0].mxu0
      %v1966 = vpop.f32.mrb[0].mxu0
      %v1967 = vadd.f32 0.0, %v1966
      %v1968 = vpop.f32.mrb[0].mxu0
      %1969 = vmatprep.mubr.bf16.mxu0 0
      %1970 = vmatmul.mubr.bf16.gmra.mrb[0].mxu0 %v1873
      %v1971 = vpop.f32.mrb[0].mxu0
      %v1972 = vadd.f32 0.0, %v1971
      %v1973 = vpop.f32.mrb[0].mxu0
      %v1974 = vpop.f32.mrb[0].mxu0
      %v1975 = vadd.f32 0.0, %v1974
      %v1976 = vpop.f32.mrb[0].mxu0
      %1977 = vmatprep.mubr.bf16.mxu0 0
      %1978 = vmatmul.mubr.bf16.gmra.mrb[0].mxu0 %v1876
      %v1979 = vpop.f32.mrb[0].mxu0
      %v1980 = vadd.f32 0.0, %v1979
      %v1981 = vpop.f32.mrb[0].mxu0
      %v1982 = vpop.f32.mrb[0].mxu0
      %v1983 = vadd.f32 0.0, %v1982
      %v1984 = vpop.f32.mrb[0].mxu0
      %1985 = vmatprep.mubr.bf16.mxu0 0
      %1986 = vmatmul.mubr.bf16.gmra.mrb[0].mxu0 %v1879
      %v1987 = vpop.f32.mrb[0].mxu0
      %v1988 = vadd.f32 0.0, %v1987
      %v1989 = vpop.f32.mrb[0].mxu0
      %v1990 = vpop.f32.mrb[0].mxu0
      %v1991 = vadd.f32 0.0, %v1990
      %v1992 = vpop.f32.mrb[0].mxu0
      %1993 = vdwg.mxu0
      %v1994 = vadd.f32 %v1777, %v1916
      %v1995 = vadd.f32 %v1778, %v1919
      %v1996 = vadd.f32 %v1779, %v1924
      %v1997 = vadd.f32 %v1780, %v1927
      %v1998 = vadd.f32 %v1781, %v1932
      %v1999 = vadd.f32 %v1782, %v1935
      %v2000 = vadd.f32 %v1783, %v1940
      %v2001 = vadd.f32 %v1784, %v1943
      %v2002 = vadd.f32 %v1785, %v1948
      %v2003 = vadd.f32 %v1786, %v1951
      %v2004 = vadd.f32 %v1787, %v1956
      %v2005 = vadd.f32 %v1788, %v1959
      %v2006 = vadd.f32 %v1789, %v1964
      %v2007 = vadd.f32 %v1790, %v1967
      %v2008 = vadd.f32 %v1791, %v1972
      %v2009 = vadd.f32 %v1792, %v1975
      %v2010 = vadd.f32 %v1793, %v1980
      %v2011 = vadd.f32 %v1794, %v1983
      %v2012 = vadd.f32 %v1795, %v1988
      %v2013 = vadd.f32 %v1796, %v1991
      %2014 = vst.msk [vmem:[#allocation2] sm:$0xff] %vm249, %v1994
      %2015 = vst.msk [vmem:[#allocation2 + $0x8] sm:$0xff] %vm249, %v1995
      %2016 = vst.msk [vmem:[#allocation2 + $0x10] sm:$0xff] %vm249, %v1996
      %2017 = vst.msk [vmem:[#allocation2 + $0x18] sm:$0xff] %vm249, %v1997
      %2018 = vst.msk [vmem:[#allocation2 + $0x20] sm:$0xff] %vm249, %v1998
      %2019 = vst.msk [vmem:[#allocation2 + $0x28] sm:$0xff] %vm249, %v1999
      %2020 = vst.msk [vmem:[#allocation2 + $0x30] sm:$0xff] %vm249, %v2000
      %2021 = vst.msk [vmem:[#allocation2 + $0x38] sm:$0xff] %vm249, %v2001
      %2022 = vst.msk [vmem:[#allocation2 + $0x40] sm:$0xff] %vm249, %v2002
      %2023 = vst.msk [vmem:[#allocation2 + $0x48] sm:$0xff] %vm249, %v2003
      %2024 = vst.msk [vmem:[#allocation2 + $0x50] sm:$0xff] %vm249, %v2004
      %2025 = vst.msk [vmem:[#allocation2 + $0x58] sm:$0xff] %vm249, %v2005
      %2026 = vst.msk [vmem:[#allocation2 + $0x60] sm:$0xff] %vm249, %v2006
      %2027 = vst.msk [vmem:[#allocation2 + $0x68] sm:$0xff] %vm249, %v2007
      %2028 = vst.msk [vmem:[#allocation2 + $0x70] sm:$0xff] %vm249, %v2008
      %2029 = vst.msk [vmem:[#allocation2 + $0x78] sm:$0xff] %vm249, %v2009
      %2030 = vst.msk [vmem:[#allocation2 + $0x80] sm:$0xff] %vm249, %v2010
      %2031 = vst.msk [vmem:[#allocation2 + $0x88] sm:$0xff] %vm249, %v2011
      %2032 = vst.msk [vmem:[#allocation2 + $0x90] sm:$0xff] %vm249, %v2012
      %2033 = vst.msk [vmem:[#allocation2 + $0x98] sm:$0xff] %vm249, %v2013
      %s2034 = sadd.s32 %s241, 32
      %s2035 = sshra.s32 %s2034, 3
      %s2036 = sand.u32 %s2034, 7
      %s2037 = smul.addr %s2035, 4
      %s2038 = scalar_lea.vmem %s219, %s2037
      %v2039 = vld [vmem:[%s2038] sm:$0xf]
      %v2040 = vld [vmem:[%s2038 + $0x4] sm:$0xf]
      %v2041 = vld [vmem:[%s2038 + $0x8] sm:$0xf]
      %v2042 = vld [vmem:[%s2038 + $0xc] sm:$0xf]
      %v2043 = vld [vmem:[%s2038 + $0x10] sm:$0xf]
      %v2044 = vld [vmem:[%s2038 + $0x14] sm:$0xf]
      %v2045 = vld [vmem:[%s2038 + $0x18] sm:$0xf]
      %v2046 = vld [vmem:[%s2038 + $0x1c] sm:$0xf]
      %v2047 = vld [vmem:[%s2038 + $0x20] sm:$0xf]
      %v2048 = vld [vmem:[%s2038 + $0x24] sm:$0xf]
      %v2049 = vld [vmem:[%s2038 + $0x28] sm:$0xf]
      %v2050 = vld [vmem:[%s2038 + $0x2c] sm:$0xf]
      %v2051 = vld [vmem:[%s2038 + $0x30] sm:$0xf]
      %v2052 = vld [vmem:[%s2038 + $0x34] sm:$0xf]
      %v2053 = vld [vmem:[%s2038 + $0x38] sm:$0xf]
      %v2054 = vld [vmem:[%s2038 + $0x3c] sm:$0xf]
      %v2055 = vld [vmem:[%s2038 + $0x40] sm:$0xf]
      %v2056 = vld [vmem:[%s2038 + $0x44] sm:$0xf]
      %v2057 = vld [vmem:[%s2038 + $0x48] sm:$0xf]
      %v2058 = vld [vmem:[%s2038 + $0x4c] sm:$0xf]
      %v2059 = vld [vmem:[%s2038 + $0x50] sm:$0xf]
      %v2060 = vld [vmem:[#allocation2] sm:$0xff]
      %v2061 = vld [vmem:[#allocation2 + $0x8] sm:$0xff]
      %v2062 = vld [vmem:[#allocation2 + $0x10] sm:$0xff]
      %v2063 = vld [vmem:[#allocation2 + $0x18] sm:$0xff]
      %v2064 = vld [vmem:[#allocation2 + $0x20] sm:$0xff]
      %v2065 = vld [vmem:[#allocation2 + $0x28] sm:$0xff]
      %v2066 = vld [vmem:[#allocation2 + $0x30] sm:$0xff]
      %v2067 = vld [vmem:[#allocation2 + $0x38] sm:$0xff]
      %v2068 = vld [vmem:[#allocation2 + $0x40] sm:$0xff]
      %v2069 = vld [vmem:[#allocation2 + $0x48] sm:$0xff]
      %v2070 = vld [vmem:[#allocation2 + $0x50] sm:$0xff]
      %v2071 = vld [vmem:[#allocation2 + $0x58] sm:$0xff]
      %v2072 = vld [vmem:[#allocation2 + $0x60] sm:$0xff]
      %v2073 = vld [vmem:[#allocation2 + $0x68] sm:$0xff]
      %v2074 = vld [vmem:[#allocation2 + $0x70] sm:$0xff]
      %v2075 = vld [vmem:[#allocation2 + $0x78] sm:$0xff]
      %v2076 = vld [vmem:[#allocation2 + $0x80] sm:$0xff]
      %v2077 = vld [vmem:[#allocation2 + $0x88] sm:$0xff]
      %v2078 = vld [vmem:[#allocation2 + $0x90] sm:$0xff]
      %v2079 = vld [vmem:[#allocation2 + $0x98] sm:$0xff]
      %s2080 = scalar_lea.vmem %s223, 192
      %v2081 = vld [vmem:[%s2080] sm:$0xf]
      %v2082 = vld [vmem:[%s2080 + $0x4] sm:$0xf]
      %v2083 = vld [vmem:[%s2080 + $0x8] sm:$0xf]
      %v2084 = vld [vmem:[%s2080 + $0xc] sm:$0xf]
      %v2085 = vld [vmem:[%s2080 + $0x10] sm:$0xf]
      %v2086 = vld [vmem:[%s2080 + $0x14] sm:$0xf]
      %v2087 = vld [vmem:[%s2080 + $0x18] sm:$0xf]
      %v2088 = vld [vmem:[%s2080 + $0x1c] sm:$0xf]
      %v2109 = vunpack.c.l.b16 %v2039
      %v2110 = vunpack.c.l.b16 %v2040
      %v2111 = vunpack.c.l.b16 %v2041
      %v2112 = vunpack.c.l.b16 %v2042
      %v2113 = vunpack.c.l.b16 %v2043
      %v2114 = vunpack.c.l.b16 %v2044
      %v2115 = vunpack.c.l.b16 %v2045
      %v2116 = vunpack.c.l.b16 %v2046
      %v2117 = vunpack.c.l.b16 %v2047
      %v2118 = vunpack.c.l.b16 %v2048
      %v2119 = vunpack.c.l.b16 %v2049
      %v2120 = vunpack.c.l.b16 %v2050
      %v2121 = vunpack.c.l.b16 %v2051
      %v2122 = vunpack.c.l.b16 %v2052
      %v2123 = vunpack.c.l.b16 %v2053
      %v2124 = vunpack.c.l.b16 %v2054
      %v2125 = vunpack.c.l.b16 %v2055
      %v2126 = vunpack.c.l.b16 %v2056
      %v2127 = vunpack.c.l.b16 %v2057
      %v2128 = vunpack.c.l.b16 %v2058
      %v2129 = vpack.c.b16 %v2110, %v2109
      %v2130 = vpack.c.b16 %v2112, %v2111
      %v2131 = vpack.c.b16 %v2114, %v2113
      %v2132 = vpack.c.b16 %v2116, %v2115
      %v2133 = vpack.c.b16 %v2118, %v2117
      %v2134 = vpack.c.b16 %v2120, %v2119
      %v2135 = vpack.c.b16 %v2122, %v2121
      %v2136 = vpack.c.b16 %v2124, %v2123
      %v2137 = vpack.c.b16 %v2126, %v2125
      %v2138 = vpack.c.b16 %v2128, %v2127
      %v2147 = vunpack.c.l.b16 %v2081
      %v2148 = vunpack.c.l.b16 %v2082
      %v2149 = vunpack.c.l.b16 %v2083
      %v2150 = vunpack.c.l.b16 %v2084
      %v2151 = vunpack.c.l.b16 %v2085
      %v2152 = vunpack.c.l.b16 %v2086
      %v2153 = vunpack.c.l.b16 %v2087
      %v2154 = vunpack.c.l.b16 %v2088
      %v2155 = vpack.c.b16 %v2148, %v2147
      %v2156 = vpack.c.b16 %v2150, %v2149
      %v2157 = vpack.c.b16 %v2152, %v2151
      %v2158 = vpack.c.b16 %v2154, %v2153
      %v2164 = vsel %vm249, %v2129, 0
      %v2167 = vsel %vm249, %v2130, 0
      %v2170 = vsel %vm249, %v2131, 0
      %v2173 = vsel %vm249, %v2132, 0
      %v2176 = vsel %vm249, %v2133, 0
      %v2179 = vsel %vm249, %v2134, 0
      %v2182 = vsel %vm249, %v2135, 0
      %v2185 = vsel %vm249, %v2136, 0
      %v2188 = vsel %vm249, %v2137, 0
      %v2191 = vsel %vm249, %v2138, 0
      %2193 = vmatprep.subr.bf16.mxu0 0
      %2194 = vmatpush1.bf16.msra.mxu0 %v2155
      %2195 = vmatprep.subr.bf16.mxu0 0
      %2196 = vmatpush1.bf16.msra.mxu0 %v2156
      %2197 = vmatprep.subr.bf16.mxu0 0
      %2198 = vmatpush1.bf16.msra.mxu0 %v2157
      %2199 = vmatprep.subr.bf16.mxu0 0
      %2200 = vmatpush1.bf16.msra.mxu0 %v2158
      %2201 = vmatprep.subr.bf16.mxu0 0
      %2202 = vmatpush1.bf16.msra.mxu0 0
      %2203 = vmatprep.subr.bf16.mxu0 0
      %2204 = vmatpush1.bf16.msra.mxu0 0
      %2205 = vmatprep.subr.bf16.mxu0 0
      %2206 = vmatpush1.bf16.msra.mxu0 0
      %2207 = vmatprep.subr.bf16.mxu0 0
      %2208 = vmatpush1.bf16.msra.mxu0 0
      %2209 = vmatprep.subr.bf16.mxu0 0
      %2210 = vmatpush1.bf16.msra.mxu0 0
      %2211 = vmatprep.subr.bf16.mxu0 0
      %2212 = vmatpush1.bf16.msra.mxu0 0
      %2213 = vmatprep.subr.bf16.mxu0 0
      %2214 = vmatpush1.bf16.msra.mxu0 0
      %2215 = vmatprep.subr.bf16.mxu0 0
      %2216 = vmatpush1.bf16.msra.mxu0 0
      %2217 = vmatprep.subr.bf16.mxu0 0
      %2218 = vmatpush1.bf16.msra.mxu0 0
      %2219 = vmatprep.subr.bf16.mxu0 0
      %2220 = vmatpush1.bf16.msra.mxu0 0
      %2221 = vmatprep.subr.bf16.mxu0 0
      %2222 = vmatpush1.bf16.msra.mxu0 0
      %2223 = vmatprep.subr.bf16.mxu0 0
      %2224 = vmatpush1.bf16.msra.mxu0 0
      %2225 = vmatprep.mubr.bf16.mxu0 0
      %2226 = vmatmul.mubr.bf16.gmra.mrb[0].mxu0 %v2164
      %v2227 = vpop.f32.mrb[0].mxu0
      %v2228 = vadd.f32 0.0, %v2227
      %v2229 = vpop.f32.mrb[0].mxu0
      %v2230 = vpop.f32.mrb[0].mxu0
      %v2231 = vadd.f32 0.0, %v2230
      %v2232 = vpop.f32.mrb[0].mxu0
      %2233 = vmatprep.mubr.bf16.mxu0 0
      %2234 = vmatmul.mubr.bf16.gmra.mrb[0].mxu0 %v2167
      %v2235 = vpop.f32.mrb[0].mxu0
      %v2236 = vadd.f32 0.0, %v2235
      %v2237 = vpop.f32.mrb[0].mxu0
      %v2238 = vpop.f32.mrb[0].mxu0
      %v2239 = vadd.f32 0.0, %v2238
      %v2240 = vpop.f32.mrb[0].mxu0
      %2241 = vmatprep.mubr.bf16.mxu0 0
      %2242 = vmatmul.mubr.bf16.gmra.mrb[0].mxu0 %v2170
      %v2243 = vpop.f32.mrb[0].mxu0
      %v2244 = vadd.f32 0.0, %v2243
      %v2245 = vpop.f32.mrb[0].mxu0
      %v2246 = vpop.f32.mrb[0].mxu0
      %v2247 = vadd.f32 0.0, %v2246
      %v2248 = vpop.f32.mrb[0].mxu0
      %2249 = vmatprep.mubr.bf16.mxu0 0
      %2250 = vmatmul.mubr.bf16.gmra.mrb[0].mxu0 %v2173
      %v2251 = vpop.f32.mrb[0].mxu0
      %v2252 = vadd.f32 0.0, %v2251
      %v2253 = vpop.f32.mrb[0].mxu0
      %v2254 = vpop.f32.mrb[0].mxu0
      %v2255 = vadd.f32 0.0, %v2254
      %v2256 = vpop.f32.mrb[0].mxu0
      %2257 = vmatprep.mubr.bf16.mxu0 0
      %2258 = vmatmul.mubr.bf16.gmra.mrb[0].mxu0 %v2176
      %v2259 = vpop.f32.mrb[0].mxu0
      %v2260 = vadd.f32 0.0, %v2259
      %v2261 = vpop.f32.mrb[0].mxu0
      %v2262 = vpop.f32.mrb[0].mxu0
      %v2263 = vadd.f32 0.0, %v2262
      %v2264 = vpop.f32.mrb[0].mxu0
      %2265 = vmatprep.mubr.bf16.mxu0 0
      %2266 = vmatmul.mubr.bf16.gmra.mrb[0].mxu0 %v2179
      %v2267 = vpop.f32.mrb[0].mxu0
      %v2268 = vadd.f32 0.0, %v2267
      %v2269 = vpop.f32.mrb[0].mxu0
      %v2270 = vpop.f32.mrb[0].mxu0
      %v2271 = vadd.f32 0.0, %v2270
      %v2272 = vpop.f32.mrb[0].mxu0
      %2273 = vmatprep.mubr.bf16.mxu0 0
      %2274 = vmatmul.mubr.bf16.gmra.mrb[0].mxu0 %v2182
      %v2275 = vpop.f32.mrb[0].mxu0
      %v2276 = vadd.f32 0.0, %v2275
      %v2277 = vpop.f32.mrb[0].mxu0
      %v2278 = vpop.f32.mrb[0].mxu0
      %v2279 = vadd.f32 0.0, %v2278
      %v2280 = vpop.f32.mrb[0].mxu0
      %2281 = vmatprep.mubr.bf16.mxu0 0
      %2282 = vmatmul.mubr.bf16.gmra.mrb[0].mxu0 %v2185
      %v2283 = vpop.f32.mrb[0].mxu0
      %v2284 = vadd.f32 0.0, %v2283
      %v2285 = vpop.f32.mrb[0].mxu0
      %v2286 = vpop.f32.mrb[0].mxu0
      %v2287 = vadd.f32 0.0, %v2286
      %v2288 = vpop.f32.mrb[0].mxu0
      %2289 = vmatprep.mubr.bf16.mxu0 0
      %2290 = vmatmul.mubr.bf16.gmra.mrb[0].mxu0 %v2188
      %v2291 = vpop.f32.mrb[0].mxu0
      %v2292 = vadd.f32 0.0, %v2291
      %v2293 = vpop.f32.mrb[0].mxu0
      %v2294 = vpop.f32.mrb[0].mxu0
      %v2295 = vadd.f32 0.0, %v2294
      %v2296 = vpop.f32.mrb[0].mxu0
      %2297 = vmatprep.mubr.bf16.mxu0 0
      %2298 = vmatmul.mubr.bf16.gmra.mrb[0].mxu0 %v2191
      %v2299 = vpop.f32.mrb[0].mxu0
      %v2300 = vadd.f32 0.0, %v2299
      %v2301 = vpop.f32.mrb[0].mxu0
      %v2302 = vpop.f32.mrb[0].mxu0
      %v2303 = vadd.f32 0.0, %v2302
      %v2304 = vpop.f32.mrb[0].mxu0
      %2305 = vdwg.mxu0
      %v2306 = vadd.f32 %v2060, %v2228
      %v2307 = vadd.f32 %v2061, %v2231
      %v2308 = vadd.f32 %v2062, %v2236
      %v2309 = vadd.f32 %v2063, %v2239
      %v2310 = vadd.f32 %v2064, %v2244
      %v2311 = vadd.f32 %v2065, %v2247
      %v2312 = vadd.f32 %v2066, %v2252
      %v2313 = vadd.f32 %v2067, %v2255
      %v2314 = vadd.f32 %v2068, %v2260
      %v2315 = vadd.f32 %v2069, %v2263
      %v2316 = vadd.f32 %v2070, %v2268
      %v2317 = vadd.f32 %v2071, %v2271
      %v2318 = vadd.f32 %v2072, %v2276
      %v2319 = vadd.f32 %v2073, %v2279
      %v2320 = vadd.f32 %v2074, %v2284
      %v2321 = vadd.f32 %v2075, %v2287
      %v2322 = vadd.f32 %v2076, %v2292
      %v2323 = vadd.f32 %v2077, %v2295
      %v2324 = vadd.f32 %v2078, %v2300
      %v2325 = vadd.f32 %v2079, %v2303
      %2326 = vst.msk [vmem:[#allocation2] sm:$0xff] %vm249, %v2306
      %2327 = vst.msk [vmem:[#allocation2 + $0x8] sm:$0xff] %vm249, %v2307
      %2328 = vst.msk [vmem:[#allocation2 + $0x10] sm:$0xff] %vm249, %v2308
      %2329 = vst.msk [vmem:[#allocation2 + $0x18] sm:$0xff] %vm249, %v2309
      %2330 = vst.msk [vmem:[#allocation2 + $0x20] sm:$0xff] %vm249, %v2310
      %2331 = vst.msk [vmem:[#allocation2 + $0x28] sm:$0xff] %vm249, %v2311
      %2332 = vst.msk [vmem:[#allocation2 + $0x30] sm:$0xff] %vm249, %v2312
      %2333 = vst.msk [vmem:[#allocation2 + $0x38] sm:$0xff] %vm249, %v2313
      %2334 = vst.msk [vmem:[#allocation2 + $0x40] sm:$0xff] %vm249, %v2314
      %2335 = vst.msk [vmem:[#allocation2 + $0x48] sm:$0xff] %vm249, %v2315
      %2336 = vst.msk [vmem:[#allocation2 + $0x50] sm:$0xff] %vm249, %v2316
      %2337 = vst.msk [vmem:[#allocation2 + $0x58] sm:$0xff] %vm249, %v2317
      %2338 = vst.msk [vmem:[#allocation2 + $0x60] sm:$0xff] %vm249, %v2318
      %2339 = vst.msk [vmem:[#allocation2 + $0x68] sm:$0xff] %vm249, %v2319
      %2340 = vst.msk [vmem:[#allocation2 + $0x70] sm:$0xff] %vm249, %v2320
      %2341 = vst.msk [vmem:[#allocation2 + $0x78] sm:$0xff] %vm249, %v2321
      %2342 = vst.msk [vmem:[#allocation2 + $0x80] sm:$0xff] %vm249, %v2322
      %2343 = vst.msk [vmem:[#allocation2 + $0x88] sm:$0xff] %vm249, %v2323
      %2344 = vst.msk [vmem:[#allocation2 + $0x90] sm:$0xff] %vm249, %v2324
      %2345 = vst.msk [vmem:[#allocation2 + $0x98] sm:$0xff] %vm249, %v2325
      %v2346 = vld [vmem:[#allocation2] sm:$0xff]
      %v2347 = vld [vmem:[#allocation2 + $0x8] sm:$0xff]
      %v2348 = vld [vmem:[#allocation2 + $0x10] sm:$0xff]
      %v2349 = vld [vmem:[#allocation2 + $0x18] sm:$0xff]
      %v2350 = vld [vmem:[#allocation2 + $0x20] sm:$0xff]
      %v2351 = vld [vmem:[#allocation2 + $0x28] sm:$0xff]
      %v2352 = vld [vmem:[#allocation2 + $0x30] sm:$0xff]
      %v2353 = vld [vmem:[#allocation2 + $0x38] sm:$0xff]
      %v2354 = vld [vmem:[#allocation2 + $0x40] sm:$0xff]
      %v2355 = vld [vmem:[#allocation2 + $0x48] sm:$0xff]
      %v2356 = vld [vmem:[#allocation2 + $0x50] sm:$0xff]
      %v2357 = vld [vmem:[#allocation2 + $0x58] sm:$0xff]
      %v2358 = vld [vmem:[#allocation2 + $0x60] sm:$0xff]
      %v2359 = vld [vmem:[#allocation2 + $0x68] sm:$0xff]
      %v2360 = vld [vmem:[#allocation2 + $0x70] sm:$0xff]
      %v2361 = vld [vmem:[#allocation2 + $0x78] sm:$0xff]
      %v2362 = vld [vmem:[#allocation2 + $0x80] sm:$0xff]
      %v2363 = vld [vmem:[#allocation2 + $0x88] sm:$0xff]
      %v2364 = vld [vmem:[#allocation2 + $0x90] sm:$0xff]
      %v2365 = vld [vmem:[#allocation2 + $0x98] sm:$0xff]
      %s2366 = scalar_lea.vmem %s223, 224
      %v2367 = vld [vmem:[%s2366] sm:$0xf]
      %v2368 = vld [vmem:[%s2366 + $0x4] sm:$0xf]
      %v2369 = vld [vmem:[%s2366 + $0x8] sm:$0xf]
      %v2370 = vld [vmem:[%s2366 + $0xc] sm:$0xf]
      %v2371 = vld [vmem:[%s2366 + $0x10] sm:$0xf]
      %v2372 = vld [vmem:[%s2366 + $0x14] sm:$0xf]
      %v2373 = vld [vmem:[%s2366 + $0x18] sm:$0xf]
      %v2374 = vld [vmem:[%s2366 + $0x1c] sm:$0xf]
      %v2376 = vunpack.c.l.b16 %v2059
      %v2377 = vpack.c.b16 %v2376, %v2376
      %v2378 = vshrl.u32 %v2129, 16
      %v2380 = vshll.u32 %v2129, 16
      %v2382 = vrot.slane %v2380, 1
      %v2383 = vor.u32 %v2378, %v2382
      %v2384 = vshll.u32 %v2130, 16
      %v2386 = vrot.slane %v2384, 1
      %v2387 = vsel %vm612, %v2383, %v2386
      %v2388 = vshrl.u32 %v2130, 16
      %v2390 = vor.u32 %v2388, %v2386
      %v2391 = vshll.u32 %v2131, 16
      %v2393 = vrot.slane %v2391, 1
      %v2394 = vsel %vm612, %v2390, %v2393
      %v2395 = vshrl.u32 %v2131, 16
      %v2397 = vor.u32 %v2395, %v2393
      %v2398 = vshll.u32 %v2132, 16
      %v2400 = vrot.slane %v2398, 1
      %v2401 = vsel %vm612, %v2397, %v2400
      %v2402 = vshrl.u32 %v2132, 16
      %v2404 = vor.u32 %v2402, %v2400
      %v2405 = vshll.u32 %v2133, 16
      %v2407 = vrot.slane %v2405, 1
      %v2408 = vsel %vm612, %v2404, %v2407
      %v2409 = vshrl.u32 %v2133, 16
      %v2411 = vor.u32 %v2409, %v2407
      %v2412 = vshll.u32 %v2134, 16
      %v2414 = vrot.slane %v2412, 1
      %v2415 = vsel %vm612, %v2411, %v2414
      %v2416 = vshrl.u32 %v2134, 16
      %v2418 = vor.u32 %v2416, %v2414
      %v2419 = vshll.u32 %v2135, 16
      %v2421 = vrot.slane %v2419, 1
      %v2422 = vsel %vm612, %v2418, %v2421
      %v2423 = vshrl.u32 %v2135, 16
      %v2425 = vor.u32 %v2423, %v2421
      %v2426 = vshll.u32 %v2136, 16
      %v2428 = vrot.slane %v2426, 1
      %v2429 = vsel %vm612, %v2425, %v2428
      %v2430 = vshrl.u32 %v2136, 16
      %v2432 = vor.u32 %v2430, %v2428
      %v2433 = vshll.u32 %v2137, 16
      %v2435 = vrot.slane %v2433, 1
      %v2436 = vsel %vm612, %v2432, %v2435
      %v2437 = vshrl.u32 %v2137, 16
      %v2439 = vor.u32 %v2437, %v2435
      %v2440 = vshll.u32 %v2138, 16
      %v2442 = vrot.slane %v2440, 1
      %v2443 = vsel %vm612, %v2439, %v2442
      %v2444 = vshrl.u32 %v2138, 16
      %v2446 = vor.u32 %v2444, %v2442
      %v2448 = vshll.u32 %v2377, 16
      %v2450 = vrot.slane %v2448, 1
      %v2451 = vsel %vm612, %v2446, %v2450
      %v2460 = vunpack.c.l.b16 %v2367
      %v2461 = vunpack.c.l.b16 %v2368
      %v2462 = vunpack.c.l.b16 %v2369
      %v2463 = vunpack.c.l.b16 %v2370
      %v2464 = vunpack.c.l.b16 %v2371
      %v2465 = vunpack.c.l.b16 %v2372
      %v2466 = vunpack.c.l.b16 %v2373
      %v2467 = vunpack.c.l.b16 %v2374
      %v2468 = vpack.c.b16 %v2461, %v2460
      %v2469 = vpack.c.b16 %v2463, %v2462
      %v2470 = vpack.c.b16 %v2465, %v2464
      %v2471 = vpack.c.b16 %v2467, %v2466
      %v2477 = vsel %vm249, %v2387, 0
      %v2480 = vsel %vm249, %v2394, 0
      %v2483 = vsel %vm249, %v2401, 0
      %v2486 = vsel %vm249, %v2408, 0
      %v2489 = vsel %vm249, %v2415, 0
      %v2492 = vsel %vm249, %v2422, 0
      %v2495 = vsel %vm249, %v2429, 0
      %v2498 = vsel %vm249, %v2436, 0
      %v2501 = vsel %vm249, %v2443, 0
      %v2504 = vsel %vm249, %v2451, 0
      %2506 = vmatprep.subr.bf16.mxu0 0
      %2507 = vmatpush1.bf16.msra.mxu0 %v2468
      %2508 = vmatprep.subr.bf16.mxu0 0
      %2509 = vmatpush1.bf16.msra.mxu0 %v2469
      %2510 = vmatprep.subr.bf16.mxu0 0
      %2511 = vmatpush1.bf16.msra.mxu0 %v2470
      %2512 = vmatprep.subr.bf16.mxu0 0
      %2513 = vmatpush1.bf16.msra.mxu0 %v2471
      %2514 = vmatprep.subr.bf16.mxu0 0
      %2515 = vmatpush1.bf16.msra.mxu0 0
      %2516 = vmatprep.subr.bf16.mxu0 0
      %2517 = vmatpush1.bf16.msra.mxu0 0
      %2518 = vmatprep.subr.bf16.mxu0 0
      %2519 = vmatpush1.bf16.msra.mxu0 0
      %2520 = vmatprep.subr.bf16.mxu0 0
      %2521 = vmatpush1.bf16.msra.mxu0 0
      %2522 = vmatprep.subr.bf16.mxu0 0
      %2523 = vmatpush1.bf16.msra.mxu0 0
      %2524 = vmatprep.subr.bf16.mxu0 0
      %2525 = vmatpush1.bf16.msra.mxu0 0
      %2526 = vmatprep.subr.bf16.mxu0 0
      %2527 = vmatpush1.bf16.msra.mxu0 0
      %2528 = vmatprep.subr.bf16.mxu0 0
      %2529 = vmatpush1.bf16.msra.mxu0 0
      %2530 = vmatprep.subr.bf16.mxu0 0
      %2531 = vmatpush1.bf16.msra.mxu0 0
      %2532 = vmatprep.subr.bf16.mxu0 0
      %2533 = vmatpush1.bf16.msra.mxu0 0
      %2534 = vmatprep.subr.bf16.mxu0 0
      %2535 = vmatpush1.bf16.msra.mxu0 0
      %2536 = vmatprep.subr.bf16.mxu0 0
      %2537 = vmatpush1.bf16.msra.mxu0 0
      %2538 = vmatprep.mubr.bf16.mxu0 0
      %2539 = vmatmul.mubr.bf16.gmra.mrb[0].mxu0 %v2477
      %v2540 = vpop.f32.mrb[0].mxu0
      %v2541 = vadd.f32 0.0, %v2540
      %v2542 = vpop.f32.mrb[0].mxu0
      %v2543 = vpop.f32.mrb[0].mxu0
      %v2544 = vadd.f32 0.0, %v2543
      %v2545 = vpop.f32.mrb[0].mxu0
      %2546 = vmatprep.mubr.bf16.mxu0 0
      %2547 = vmatmul.mubr.bf16.gmra.mrb[0].mxu0 %v2480
      %v2548 = vpop.f32.mrb[0].mxu0
      %v2549 = vadd.f32 0.0, %v2548
      %v2550 = vpop.f32.mrb[0].mxu0
      %v2551 = vpop.f32.mrb[0].mxu0
      %v2552 = vadd.f32 0.0, %v2551
      %v2553 = vpop.f32.mrb[0].mxu0
      %2554 = vmatprep.mubr.bf16.mxu0 0
      %2555 = vmatmul.mubr.bf16.gmra.mrb[0].mxu0 %v2483
      %v2556 = vpop.f32.mrb[0].mxu0
      %v2557 = vadd.f32 0.0, %v2556
      %v2558 = vpop.f32.mrb[0].mxu0
      %v2559 = vpop.f32.mrb[0].mxu0
      %v2560 = vadd.f32 0.0, %v2559
      %v2561 = vpop.f32.mrb[0].mxu0
      %2562 = vmatprep.mubr.bf16.mxu0 0
      %2563 = vmatmul.mubr.bf16.gmra.mrb[0].mxu0 %v2486
      %v2564 = vpop.f32.mrb[0].mxu0
      %v2565 = vadd.f32 0.0, %v2564
      %v2566 = vpop.f32.mrb[0].mxu0
      %v2567 = vpop.f32.mrb[0].mxu0
      %v2568 = vadd.f32 0.0, %v2567
      %v2569 = vpop.f32.mrb[0].mxu0
      %2570 = vmatprep.mubr.bf16.mxu0 0
      %2571 = vmatmul.mubr.bf16.gmra.mrb[0].mxu0 %v2489
      %v2572 = vpop.f32.mrb[0].mxu0
      %v2573 = vadd.f32 0.0, %v2572
      %v2574 = vpop.f32.mrb[0].mxu0
      %v2575 = vpop.f32.mrb[0].mxu0
      %v2576 = vadd.f32 0.0, %v2575
      %v2577 = vpop.f32.mrb[0].mxu0
      %2578 = vmatprep.mubr.bf16.mxu0 0
      %2579 = vmatmul.mubr.bf16.gmra.mrb[0].mxu0 %v2492
      %v2580 = vpop.f32.mrb[0].mxu0
      %v2581 = vadd.f32 0.0, %v2580
      %v2582 = vpop.f32.mrb[0].mxu0
      %v2583 = vpop.f32.mrb[0].mxu0
      %v2584 = vadd.f32 0.0, %v2583
      %v2585 = vpop.f32.mrb[0].mxu0
      %2586 = vmatprep.mubr.bf16.mxu0 0
      %2587 = vmatmul.mubr.bf16.gmra.mrb[0].mxu0 %v2495
      %v2588 = vpop.f32.mrb[0].mxu0
      %v2589 = vadd.f32 0.0, %v2588
      %v2590 = vpop.f32.mrb[0].mxu0
      %v2591 = vpop.f32.mrb[0].mxu0
      %v2592 = vadd.f32 0.0, %v2591
      %v2593 = vpop.f32.mrb[0].mxu0
      %2594 = vmatprep.mubr.bf16.mxu0 0
      %2595 = vmatmul.mubr.bf16.gmra.mrb[0].mxu0 %v2498
      %v2596 = vpop.f32.mrb[0].mxu0
      %v2597 = vadd.f32 0.0, %v2596
      %v2598 = vpop.f32.mrb[0].mxu0
      %v2599 = vpop.f32.mrb[0].mxu0
      %v2600 = vadd.f32 0.0, %v2599
      %v2601 = vpop.f32.mrb[0].mxu0
      %2602 = vmatprep.mubr.bf16.mxu0 0
      %2603 = vmatmul.mubr.bf16.gmra.mrb[0].mxu0 %v2501
      %v2604 = vpop.f32.mrb[0].mxu0
      %v2605 = vadd.f32 0.0, %v2604
      %v2606 = vpop.f32.mrb[0].mxu0
      %v2607 = vpop.f32.mrb[0].mxu0
      %v2608 = vadd.f32 0.0, %v2607
      %v2609 = vpop.f32.mrb[0].mxu0
      %2610 = vmatprep.mubr.bf16.mxu0 0
      %2611 = vmatmul.mubr.bf16.gmra.mrb[0].mxu0 %v2504
      %v2612 = vpop.f32.mrb[0].mxu0
      %v2613 = vadd.f32 0.0, %v2612
      %v2614 = vpop.f32.mrb[0].mxu0
      %v2615 = vpop.f32.mrb[0].mxu0
      %v2616 = vadd.f32 0.0, %v2615
      %v2617 = vpop.f32.mrb[0].mxu0
      %2618 = vdwg.mxu0
      %v2619 = vadd.f32 %v2346, %v2541
      %v2620 = vadd.f32 %v2347, %v2544
      %v2621 = vadd.f32 %v2348, %v2549
      %v2622 = vadd.f32 %v2349, %v2552
      %v2623 = vadd.f32 %v2350, %v2557
      %v2624 = vadd.f32 %v2351, %v2560
      %v2625 = vadd.f32 %v2352, %v2565
      %v2626 = vadd.f32 %v2353, %v2568
      %v2627 = vadd.f32 %v2354, %v2573
      %v2628 = vadd.f32 %v2355, %v2576
      %v2629 = vadd.f32 %v2356, %v2581
      %v2630 = vadd.f32 %v2357, %v2584
      %v2631 = vadd.f32 %v2358, %v2589
      %v2632 = vadd.f32 %v2359, %v2592
      %v2633 = vadd.f32 %v2360, %v2597
      %v2634 = vadd.f32 %v2361, %v2600
      %v2635 = vadd.f32 %v2362, %v2605
      %v2636 = vadd.f32 %v2363, %v2608
      %v2637 = vadd.f32 %v2364, %v2613
      %v2638 = vadd.f32 %v2365, %v2616
      %2639 = vst.msk [vmem:[#allocation2] sm:$0xff] %vm249, %v2619
      %2640 = vst.msk [vmem:[#allocation2 + $0x8] sm:$0xff] %vm249, %v2620
      %2641 = vst.msk [vmem:[#allocation2 + $0x10] sm:$0xff] %vm249, %v2621
      %2642 = vst.msk [vmem:[#allocation2 + $0x18] sm:$0xff] %vm249, %v2622
      %2643 = vst.msk [vmem:[#allocation2 + $0x20] sm:$0xff] %vm249, %v2623
      %2644 = vst.msk [vmem:[#allocation2 + $0x28] sm:$0xff] %vm249, %v2624
      %2645 = vst.msk [vmem:[#allocation2 + $0x30] sm:$0xff] %vm249, %v2625
      %2646 = vst.msk [vmem:[#allocation2 + $0x38] sm:$0xff] %vm249, %v2626
      %2647 = vst.msk [vmem:[#allocation2 + $0x40] sm:$0xff] %vm249, %v2627
      %2648 = vst.msk [vmem:[#allocation2 + $0x48] sm:$0xff] %vm249, %v2628
      %2649 = vst.msk [vmem:[#allocation2 + $0x50] sm:$0xff] %vm249, %v2629
      %2650 = vst.msk [vmem:[#allocation2 + $0x58] sm:$0xff] %vm249, %v2630
      %2651 = vst.msk [vmem:[#allocation2 + $0x60] sm:$0xff] %vm249, %v2631
      %2652 = vst.msk [vmem:[#allocation2 + $0x68] sm:$0xff] %vm249, %v2632
      %2653 = vst.msk [vmem:[#allocation2 + $0x70] sm:$0xff] %vm249, %v2633
      %2654 = vst.msk [vmem:[#allocation2 + $0x78] sm:$0xff] %vm249, %v2634
      %2655 = vst.msk [vmem:[#allocation2 + $0x80] sm:$0xff] %vm249, %v2635
      %2656 = vst.msk [vmem:[#allocation2 + $0x88] sm:$0xff] %vm249, %v2636
      %2657 = vst.msk [vmem:[#allocation2 + $0x90] sm:$0xff] %vm249, %v2637
      %2658 = vst.msk [vmem:[#allocation2 + $0x98] sm:$0xff] %vm249, %v2638
      %v2659 = vld [vmem:[#allocation2] sm:$0xff]
      %v2660 = vld [vmem:[#allocation2 + $0x8] sm:$0xff]
      %v2661 = vld [vmem:[#allocation2 + $0x10] sm:$0xff]
      %v2662 = vld [vmem:[#allocation2 + $0x18] sm:$0xff]
      %v2663 = vld [vmem:[#allocation2 + $0x20] sm:$0xff]
      %v2664 = vld [vmem:[#allocation2 + $0x28] sm:$0xff]
      %v2665 = vld [vmem:[#allocation2 + $0x30] sm:$0xff]
      %v2666 = vld [vmem:[#allocation2 + $0x38] sm:$0xff]
      %v2667 = vld [vmem:[#allocation2 + $0x40] sm:$0xff]
      %v2668 = vld [vmem:[#allocation2 + $0x48] sm:$0xff]
      %v2669 = vld [vmem:[#allocation2 + $0x50] sm:$0xff]
      %v2670 = vld [vmem:[#allocation2 + $0x58] sm:$0xff]
      %v2671 = vld [vmem:[#allocation2 + $0x60] sm:$0xff]
      %v2672 = vld [vmem:[#allocation2 + $0x68] sm:$0xff]
      %v2673 = vld [vmem:[#allocation2 + $0x70] sm:$0xff]
      %v2674 = vld [vmem:[#allocation2 + $0x78] sm:$0xff]
      %v2675 = vld [vmem:[#allocation2 + $0x80] sm:$0xff]
      %v2676 = vld [vmem:[#allocation2 + $0x88] sm:$0xff]
      %v2677 = vld [vmem:[#allocation2 + $0x90] sm:$0xff]
      %v2678 = vld [vmem:[#allocation2 + $0x98] sm:$0xff]
      %s2679 = scalar_lea.vmem %s223, 256
      %v2680 = vld [vmem:[%s2679] sm:$0xf]
      %v2681 = vld [vmem:[%s2679 + $0x4] sm:$0xf]
      %v2682 = vld [vmem:[%s2679 + $0x8] sm:$0xf]
      %v2683 = vld [vmem:[%s2679 + $0xc] sm:$0xf]
      %v2684 = vld [vmem:[%s2679 + $0x10] sm:$0xf]
      %v2685 = vld [vmem:[%s2679 + $0x14] sm:$0xf]
      %v2686 = vld [vmem:[%s2679 + $0x18] sm:$0xf]
      %v2687 = vld [vmem:[%s2679 + $0x1c] sm:$0xf]
      %v2688 = vrot.slane %v2129, 1
      %v2689 = vrot.slane %v2130, 1
      %v2690 = vsel %vm923, %v2688, %v2689
      %v2691 = vrot.slane %v2131, 1
      %v2692 = vsel %vm923, %v2689, %v2691
      %v2693 = vrot.slane %v2132, 1
      %v2694 = vsel %vm923, %v2691, %v2693
      %v2695 = vrot.slane %v2133, 1
      %v2696 = vsel %vm923, %v2693, %v2695
      %v2697 = vrot.slane %v2134, 1
      %v2698 = vsel %vm923, %v2695, %v2697
      %v2699 = vrot.slane %v2135, 1
      %v2700 = vsel %vm923, %v2697, %v2699
      %v2701 = vrot.slane %v2136, 1
      %v2702 = vsel %vm923, %v2699, %v2701
      %v2703 = vrot.slane %v2137, 1
      %v2704 = vsel %vm923, %v2701, %v2703
      %v2705 = vrot.slane %v2138, 1
      %v2706 = vsel %vm923, %v2703, %v2705
      %v2707 = vrot.slane %v2377, 1
      %v2708 = vsel %vm923, %v2705, %v2707
      %v2717 = vunpack.c.l.b16 %v2680
      %v2718 = vunpack.c.l.b16 %v2681
      %v2719 = vunpack.c.l.b16 %v2682
      %v2720 = vunpack.c.l.b16 %v2683
      %v2721 = vunpack.c.l.b16 %v2684
      %v2722 = vunpack.c.l.b16 %v2685
      %v2723 = vunpack.c.l.b16 %v2686
      %v2724 = vunpack.c.l.b16 %v2687
      %v2725 = vpack.c.b16 %v2718, %v2717
      %v2726 = vpack.c.b16 %v2720, %v2719
      %v2727 = vpack.c.b16 %v2722, %v2721
      %v2728 = vpack.c.b16 %v2724, %v2723
      %v2734 = vsel %vm249, %v2690, 0
      %v2737 = vsel %vm249, %v2692, 0
      %v2740 = vsel %vm249, %v2694, 0
      %v2743 = vsel %vm249, %v2696, 0
      %v2746 = vsel %vm249, %v2698, 0
      %v2749 = vsel %vm249, %v2700, 0
      %v2752 = vsel %vm249, %v2702, 0
      %v2755 = vsel %vm249, %v2704, 0
      %v2758 = vsel %vm249, %v2706, 0
      %v2761 = vsel %vm249, %v2708, 0
      %2763 = vmatprep.subr.bf16.mxu0 0
      %2764 = vmatpush1.bf16.msra.mxu0 %v2725
      %2765 = vmatprep.subr.bf16.mxu0 0
      %2766 = vmatpush1.bf16.msra.mxu0 %v2726
      %2767 = vmatprep.subr.bf16.mxu0 0
      %2768 = vmatpush1.bf16.msra.mxu0 %v2727
      %2769 = vmatprep.subr.bf16.mxu0 0
      %2770 = vmatpush1.bf16.msra.mxu0 %v2728
      %2771 = vmatprep.subr.bf16.mxu0 0
      %2772 = vmatpush1.bf16.msra.mxu0 0
      %2773 = vmatprep.subr.bf16.mxu0 0
      %2774 = vmatpush1.bf16.msra.mxu0 0
      %2775 = vmatprep.subr.bf16.mxu0 0
      %2776 = vmatpush1.bf16.msra.mxu0 0
      %2777 = vmatprep.subr.bf16.mxu0 0
      %2778 = vmatpush1.bf16.msra.mxu0 0
      %2779 = vmatprep.subr.bf16.mxu0 0
      %2780 = vmatpush1.bf16.msra.mxu0 0
      %2781 = vmatprep.subr.bf16.mxu0 0
      %2782 = vmatpush1.bf16.msra.mxu0 0
      %2783 = vmatprep.subr.bf16.mxu0 0
      %2784 = vmatpush1.bf16.msra.mxu0 0
      %2785 = vmatprep.subr.bf16.mxu0 0
      %2786 = vmatpush1.bf16.msra.mxu0 0
      %2787 = vmatprep.subr.bf16.mxu0 0
      %2788 = vmatpush1.bf16.msra.mxu0 0
      %2789 = vmatprep.subr.bf16.mxu0 0
      %2790 = vmatpush1.bf16.msra.mxu0 0
      %2791 = vmatprep.subr.bf16.mxu0 0
      %2792 = vmatpush1.bf16.msra.mxu0 0
      %2793 = vmatprep.subr.bf16.mxu0 0
      %2794 = vmatpush1.bf16.msra.mxu0 0
      %2795 = vmatprep.mubr.bf16.mxu0 0
      %2796 = vmatmul.mubr.bf16.gmra.mrb[0].mxu0 %v2734
      %v2797 = vpop.f32.mrb[0].mxu0
      %v2798 = vadd.f32 0.0, %v2797
      %v2799 = vpop.f32.mrb[0].mxu0
      %v2800 = vpop.f32.mrb[0].mxu0
      %v2801 = vadd.f32 0.0, %v2800
      %v2802 = vpop.f32.mrb[0].mxu0
      %2803 = vmatprep.mubr.bf16.mxu0 0
      %2804 = vmatmul.mubr.bf16.gmra.mrb[0].mxu0 %v2737
      %v2805 = vpop.f32.mrb[0].mxu0
      %v2806 = vadd.f32 0.0, %v2805
      %v2807 = vpop.f32.mrb[0].mxu0
      %v2808 = vpop.f32.mrb[0].mxu0
      %v2809 = vadd.f32 0.0, %v2808
      %v2810 = vpop.f32.mrb[0].mxu0
      %2811 = vmatprep.mubr.bf16.mxu0 0
      %2812 = vmatmul.mubr.bf16.gmra.mrb[0].mxu0 %v2740
      %v2813 = vpop.f32.mrb[0].mxu0
      %v2814 = vadd.f32 0.0, %v2813
      %v2815 = vpop.f32.mrb[0].mxu0
      %v2816 = vpop.f32.mrb[0].mxu0
      %v2817 = vadd.f32 0.0, %v2816
      %v2818 = vpop.f32.mrb[0].mxu0
      %2819 = vmatprep.mubr.bf16.mxu0 0
      %2820 = vmatmul.mubr.bf16.gmra.mrb[0].mxu0 %v2743
      %v2821 = vpop.f32.mrb[0].mxu0
      %v2822 = vadd.f32 0.0, %v2821
      %v2823 = vpop.f32.mrb[0].mxu0
      %v2824 = vpop.f32.mrb[0].mxu0
      %v2825 = vadd.f32 0.0, %v2824
      %v2826 = vpop.f32.mrb[0].mxu0
      %2827 = vmatprep.mubr.bf16.mxu0 0
      %2828 = vmatmul.mubr.bf16.gmra.mrb[0].mxu0 %v2746
      %v2829 = vpop.f32.mrb[0].mxu0
      %v2830 = vadd.f32 0.0, %v2829
      %v2831 = vpop.f32.mrb[0].mxu0
      %v2832 = vpop.f32.mrb[0].mxu0
      %v2833 = vadd.f32 0.0, %v2832
      %v2834 = vpop.f32.mrb[0].mxu0
      %2835 = vmatprep.mubr.bf16.mxu0 0
      %2836 = vmatmul.mubr.bf16.gmra.mrb[0].mxu0 %v2749
      %v2837 = vpop.f32.mrb[0].mxu0
      %v2838 = vadd.f32 0.0, %v2837
      %v2839 = vpop.f32.mrb[0].mxu0
      %v2840 = vpop.f32.mrb[0].mxu0
      %v2841 = vadd.f32 0.0, %v2840
      %v2842 = vpop.f32.mrb[0].mxu0
      %2843 = vmatprep.mubr.bf16.mxu0 0
      %2844 = vmatmul.mubr.bf16.gmra.mrb[0].mxu0 %v2752
      %v2845 = vpop.f32.mrb[0].mxu0
      %v2846 = vadd.f32 0.0, %v2845
      %v2847 = vpop.f32.mrb[0].mxu0
      %v2848 = vpop.f32.mrb[0].mxu0
      %v2849 = vadd.f32 0.0, %v2848
      %v2850 = vpop.f32.mrb[0].mxu0
      %2851 = vmatprep.mubr.bf16.mxu0 0
      %2852 = vmatmul.mubr.bf16.gmra.mrb[0].mxu0 %v2755
      %v2853 = vpop.f32.mrb[0].mxu0
      %v2854 = vadd.f32 0.0, %v2853
      %v2855 = vpop.f32.mrb[0].mxu0
      %v2856 = vpop.f32.mrb[0].mxu0
      %v2857 = vadd.f32 0.0, %v2856
      %v2858 = vpop.f32.mrb[0].mxu0
      %2859 = vmatprep.mubr.bf16.mxu0 0
      %2860 = vmatmul.mubr.bf16.gmra.mrb[0].mxu0 %v2758
      %v2861 = vpop.f32.mrb[0].mxu0
      %v2862 = vadd.f32 0.0, %v2861
      %v2863 = vpop.f32.mrb[0].mxu0
      %v2864 = vpop.f32.mrb[0].mxu0
      %v2865 = vadd.f32 0.0, %v2864
      %v2866 = vpop.f32.mrb[0].mxu0
      %2867 = vmatprep.mubr.bf16.mxu0 0
      %2868 = vmatmul.mubr.bf16.gmra.mrb[0].mxu0 %v2761
      %v2869 = vpop.f32.mrb[0].mxu0
      %v2870 = vadd.f32 0.0, %v2869
      %v2871 = vpop.f32.mrb[0].mxu0
      %v2872 = vpop.f32.mrb[0].mxu0
      %v2873 = vadd.f32 0.0, %v2872
      %v2874 = vpop.f32.mrb[0].mxu0
      %2875 = vdwg.mxu0
      %v2876 = vadd.f32 %v2659, %v2798
      %v2877 = vadd.f32 %v2660, %v2801
      %v2878 = vadd.f32 %v2661, %v2806
      %v2879 = vadd.f32 %v2662, %v2809
      %v2880 = vadd.f32 %v2663, %v2814
      %v2881 = vadd.f32 %v2664, %v2817
      %v2882 = vadd.f32 %v2665, %v2822
      %v2883 = vadd.f32 %v2666, %v2825
      %v2884 = vadd.f32 %v2667, %v2830
      %v2885 = vadd.f32 %v2668, %v2833
      %v2886 = vadd.f32 %v2669, %v2838
      %v2887 = vadd.f32 %v2670, %v2841
      %v2888 = vadd.f32 %v2671, %v2846
      %v2889 = vadd.f32 %v2672, %v2849
      %v2890 = vadd.f32 %v2673, %v2854
      %v2891 = vadd.f32 %v2674, %v2857
      %v2892 = vadd.f32 %v2675, %v2862
      %v2893 = vadd.f32 %v2676, %v2865
      %v2894 = vadd.f32 %v2677, %v2870
      %v2895 = vadd.f32 %v2678, %v2873
      %2896 = vst.msk [vmem:[#allocation2] sm:$0xff] %vm249, %v2876
      %2897 = vst.msk [vmem:[#allocation2 + $0x8] sm:$0xff] %vm249, %v2877
      %2898 = vst.msk [vmem:[#allocation2 + $0x10] sm:$0xff] %vm249, %v2878
      %2899 = vst.msk [vmem:[#allocation2 + $0x18] sm:$0xff] %vm249, %v2879
      %2900 = vst.msk [vmem:[#allocation2 + $0x20] sm:$0xff] %vm249, %v2880
      %2901 = vst.msk [vmem:[#allocation2 + $0x28] sm:$0xff] %vm249, %v2881
      %2902 = vst.msk [vmem:[#allocation2 + $0x30] sm:$0xff] %vm249, %v2882
      %2903 = vst.msk [vmem:[#allocation2 + $0x38] sm:$0xff] %vm249, %v2883
      %2904 = vst.msk [vmem:[#allocation2 + $0x40] sm:$0xff] %vm249, %v2884
      %2905 = vst.msk [vmem:[#allocation2 + $0x48] sm:$0xff] %vm249, %v2885
      %2906 = vst.msk [vmem:[#allocation2 + $0x50] sm:$0xff] %vm249, %v2886
      %2907 = vst.msk [vmem:[#allocation2 + $0x58] sm:$0xff] %vm249, %v2887
      %2908 = vst.msk [vmem:[#allocation2 + $0x60] sm:$0xff] %vm249, %v2888
      %2909 = vst.msk [vmem:[#allocation2 + $0x68] sm:$0xff] %vm249, %v2889
      %2910 = vst.msk [vmem:[#allocation2 + $0x70] sm:$0xff] %vm249, %v2890
      %2911 = vst.msk [vmem:[#allocation2 + $0x78] sm:$0xff] %vm249, %v2891
      %2912 = vst.msk [vmem:[#allocation2 + $0x80] sm:$0xff] %vm249, %v2892
      %2913 = vst.msk [vmem:[#allocation2 + $0x88] sm:$0xff] %vm249, %v2893
      %2914 = vst.msk [vmem:[#allocation2 + $0x90] sm:$0xff] %vm249, %v2894
      %2915 = vst.msk [vmem:[#allocation2 + $0x98] sm:$0xff] %vm249, %v2895
      %v2916 = vld [vmem:[#allocation2] sm:$0xff]
      %v2917 = vld [vmem:[#allocation2 + $0x8] sm:$0xff]
      %v2918 = vld [vmem:[#allocation2 + $0x10] sm:$0xff]
      %v2919 = vld [vmem:[#allocation2 + $0x18] sm:$0xff]
      %v2920 = vld [vmem:[#allocation2 + $0x20] sm:$0xff]
      %v2921 = vld [vmem:[#allocation2 + $0x28] sm:$0xff]
      %v2922 = vld [vmem:[#allocation2 + $0x30] sm:$0xff]
      %v2923 = vld [vmem:[#allocation2 + $0x38] sm:$0xff]
      %v2924 = vld [vmem:[#allocation2 + $0x40] sm:$0xff]
      %v2925 = vld [vmem:[#allocation2 + $0x48] sm:$0xff]
      %v2926 = vld [vmem:[#allocation2 + $0x50] sm:$0xff]
      %v2927 = vld [vmem:[#allocation2 + $0x58] sm:$0xff]
      %v2928 = vld [vmem:[#allocation2 + $0x60] sm:$0xff]
      %v2929 = vld [vmem:[#allocation2 + $0x68] sm:$0xff]
      %v2930 = vld [vmem:[#allocation2 + $0x70] sm:$0xff]
      %v2931 = vld [vmem:[#allocation2 + $0x78] sm:$0xff]
      %v2932 = vld [vmem:[#allocation2 + $0x80] sm:$0xff]
      %v2933 = vld [vmem:[#allocation2 + $0x88] sm:$0xff]
      %v2934 = vld [vmem:[#allocation2 + $0x90] sm:$0xff]
      %v2935 = vld [vmem:[#allocation2 + $0x98] sm:$0xff]
      %v2936 = vmax.f32 %v2916, 0.0
      %v2937 = vmax.f32 %v2917, 0.0
      %v2938 = vmax.f32 %v2918, 0.0
      %v2939 = vmax.f32 %v2919, 0.0
      %v2940 = vmax.f32 %v2920, 0.0
      %v2941 = vmax.f32 %v2921, 0.0
      %v2942 = vmax.f32 %v2922, 0.0
      %v2943 = vmax.f32 %v2923, 0.0
      %v2944 = vmax.f32 %v2924, 0.0
      %v2945 = vmax.f32 %v2925, 0.0
      %v2946 = vmax.f32 %v2926, 0.0
      %v2947 = vmax.f32 %v2927, 0.0
      %v2948 = vmax.f32 %v2928, 0.0
      %v2949 = vmax.f32 %v2929, 0.0
      %v2950 = vmax.f32 %v2930, 0.0
      %v2951 = vmax.f32 %v2931, 0.0
      %v2952 = vmax.f32 %v2932, 0.0
      %v2953 = vmax.f32 %v2933, 0.0
      %v2954 = vmax.f32 %v2934, 0.0
      %v2955 = vmax.f32 %v2935, 0.0
      %v2956 = vpack.c.bf16 %v2937, %v2936
      %v2957 = vpack.c.bf16 %v2939, %v2938
      %v2958 = vpack.c.bf16 %v2941, %v2940
      %v2959 = vpack.c.bf16 %v2943, %v2942
      %v2960 = vpack.c.bf16 %v2945, %v2944
      %v2961 = vpack.c.bf16 %v2947, %v2946
      %v2962 = vpack.c.bf16 %v2949, %v2948
      %v2963 = vpack.c.bf16 %v2951, %v2950
      %v2964 = vpack.c.bf16 %v2953, %v2952
      %v2965 = vpack.c.bf16 %v2955, %v2954
      %v2976 = vunpack.c.l.b16 %v2956
      %v2977 = vunpack.c.h.b16 %v2956
      %v2978 = vunpack.c.l.b16 %v2957
      %v2979 = vunpack.c.h.b16 %v2957
      %v2980 = vunpack.c.l.b16 %v2958
      %v2981 = vunpack.c.h.b16 %v2958
      %v2982 = vunpack.c.l.b16 %v2959
      %v2983 = vunpack.c.h.b16 %v2959
      %v2984 = vunpack.c.l.b16 %v2960
      %v2985 = vunpack.c.h.b16 %v2960
      %v2986 = vunpack.c.l.b16 %v2961
      %v2987 = vunpack.c.h.b16 %v2961
      %v2988 = vunpack.c.l.b16 %v2962
      %v2989 = vunpack.c.h.b16 %v2962
      %v2990 = vunpack.c.l.b16 %v2963
      %v2991 = vunpack.c.h.b16 %v2963
      %v2992 = vunpack.c.l.b16 %v2964
      %v2993 = vunpack.c.h.b16 %v2964
      %v2994 = vunpack.c.l.b16 %v2965
      %v2995 = vunpack.c.h.b16 %v2965
      %v2996 = vpack.c.b16 %v2976, %v2976
      %v2997 = vpack.c.b16 %v2977, %v2977
      %v2998 = vpack.c.b16 %v2978, %v2978
      %v2999 = vpack.c.b16 %v2979, %v2979
      %v3000 = vpack.c.b16 %v2980, %v2980
      %v3001 = vpack.c.b16 %v2981, %v2981
      %v3002 = vpack.c.b16 %v2982, %v2982
      %v3003 = vpack.c.b16 %v2983, %v2983
      %v3004 = vpack.c.b16 %v2984, %v2984
      %v3005 = vpack.c.b16 %v2985, %v2985
      %v3006 = vpack.c.b16 %v2986, %v2986
      %v3007 = vpack.c.b16 %v2987, %v2987
      %v3008 = vpack.c.b16 %v2988, %v2988
      %v3009 = vpack.c.b16 %v2989, %v2989
      %v3010 = vpack.c.b16 %v2990, %v2990
      %v3011 = vpack.c.b16 %v2991, %v2991
      %v3012 = vpack.c.b16 %v2992, %v2992
      %v3013 = vpack.c.b16 %v2993, %v2993
      %v3014 = vpack.c.b16 %v2994, %v2994
      %v3015 = vpack.c.b16 %v2995, %v2995
      %vm3036 = vcmask 519168
      %3037 = vst.msk [vmem:[%s238] sm:$0xf] %vm3036, %v2996
      %3038 = vst.msk [vmem:[%s238 + $0x4] sm:$0xf] %vm3036, %v2997
      %3039 = vst.msk [vmem:[%s238 + $0x8] sm:$0xf] %vm3036, %v2998
      %3040 = vst.msk [vmem:[%s238 + $0xc] sm:$0xf] %vm3036, %v2999
      %3041 = vst.msk [vmem:[%s238 + $0x10] sm:$0xf] %vm3036, %v3000
      %3042 = vst.msk [vmem:[%s238 + $0x14] sm:$0xf] %vm3036, %v3001
      %3043 = vst.msk [vmem:[%s238 + $0x18] sm:$0xf] %vm3036, %v3002
      %3044 = vst.msk [vmem:[%s238 + $0x1c] sm:$0xf] %vm3036, %v3003
      %3045 = vst.msk [vmem:[%s238 + $0x20] sm:$0xf] %vm3036, %v3004
      %3046 = vst.msk [vmem:[%s238 + $0x24] sm:$0xf] %vm3036, %v3005
      %3047 = vst.msk [vmem:[%s238 + $0x28] sm:$0xf] %vm3036, %v3006
      %3048 = vst.msk [vmem:[%s238 + $0x2c] sm:$0xf] %vm3036, %v3007
      %3049 = vst.msk [vmem:[%s238 + $0x30] sm:$0xf] %vm3036, %v3008
      %3050 = vst.msk [vmem:[%s238 + $0x34] sm:$0xf] %vm3036, %v3009
      %3051 = vst.msk [vmem:[%s238 + $0x38] sm:$0xf] %vm3036, %v3010
      %3052 = vst.msk [vmem:[%s238 + $0x3c] sm:$0xf] %vm3036, %v3011
      %3053 = vst.msk [vmem:[%s238 + $0x40] sm:$0xf] %vm3036, %v3012
      %3054 = vst.msk [vmem:[%s238 + $0x44] sm:$0xf] %vm3036, %v3013
      %3055 = vst.msk [vmem:[%s238 + $0x48] sm:$0xf] %vm3036, %v3014
      %3056 = vst.msk [vmem:[%s238 + $0x4c] sm:$0xf] %vm3036, %v3015
      %s3057 = smul.u32 20, %s20
      %p3058 = scmp.lt.s32.totalorder %s19, 1
      %s3059 = scalar_select %p3058, %s19, 1
      %p3060 = scmp.lt.s32.totalorder %s3057, 19
      %s3061 = scalar_select %p3060, %s3057, 19
      %p3062 = scmp.lt.s32.totalorder %s21, 0
      %s3063 = scalar_select %p3062, %s21, 0
      %s3064 = sadd.s32 %s3063, %s3061
      %s3065 = smul.addr %s3059, 20
      %s3066 = sadd.s32 %s3064, %s3065
      %s3067 = smul.addr %s3066, 4
      %s3068 = scalar_lea.vmem %s3, %s3067
      // Predicated region
      $region33: #{tpu_custom_call.1} parent=31 // pred_check
        %p3069 = pneg %p133
      $region34: #{tpu_custom_call.1} parent=31 // pred_check_branch
        %3071 = sbr.rel (%p3069) target = $region36
      $region35: #{tpu_custom_call.1} parent=31 // pred_region
        %s3072 = smul.u32 20, %s20
      $region36: #{tpu_custom_call.1} parent=31 // pred_fallthru
        _
    $region32: #{tpu_custom_call.1} parent=5 // pred_fallthru
      _
    %p3073 = scmp.le.s32.totalorder 2, %s9
    // Predicated region
    $region37: #{tpu_custom_call.1} parent=5 // pred_check
      %p3074 = pneg %p3073
    $region38: #{tpu_custom_call.1} parent=5 // pred_check_branch
      %3076 = sbr.rel (%p3074) target = $region40
    $region39: #{tpu_custom_call.1} parent=5 // pred_region
      %s3077 = ssub.s32 %s9, 2
      // Predicated region
      $region41: #{tpu_custom_call.1} parent=39 // pred_check
        %p3078 = pneg %p139
      $region42: #{tpu_custom_call.1} parent=39 // pred_check_branch
        %3080 = sbr.rel (%p3078) target = $region44
      $region43: #{tpu_custom_call.1} parent=39 // pred_region
        %s3081 = smul.u32 20, %s23
        %p3082 = scmp.lt.s32.totalorder %s22, 1
        %s3083 = scalar_select %p3082, %s22, 1
        %p3084 = scmp.lt.s32.totalorder %s3081, 19
        %s3085 = scalar_select %p3084, %s3081, 19
        %p3086 = scmp.lt.s32.totalorder %s24, 0
        %s3087 = scalar_select %p3086, %s24, 0
        %s3088 = sadd.s32 %s3087, %s3085
        %s3089 = smul.addr %s3083, 20
        %s3090 = sadd.s32 %s3088, %s3089
        %s3091 = smul.addr %s3090, 4
        %s3092 = scalar_lea.vmem %s3, %s3091
      $region44: #{tpu_custom_call.1} parent=39 // pred_fallthru
        _
    $region40: #{tpu_custom_call.1} parent=5 // pred_fallthru
      _
  $region6: #{tpu_custom_call.1} parent=0 // loop_footer
    %s13 = sadd.s32 1, %s9
  $region7: #{tpu_custom_call.1} parent=0 // loop_footer_branch
    %8 = sbr.rel target = $region3
  $region8: #{tpu_custom_call.1} parent=0 // loop_exit
    _

</llo_original>
